<compile_context>
chip_gen: v7x
topology: tpu7x:2x2x1
jax: 0.10.0
libtpu: 0.0.40
codegen_flags: <defaults>
</compile_context>

<pallas_src>
import numpy as np
import jax
import jax.numpy as jnp
from jax import lax
from jax.experimental import pallas as pl
from jax.experimental.pallas import tpu as pltpu


def _round_up(x, m):
    return ((x + m - 1) // m) * m


# ----------------------------- fused NMT kernel -----------------------------

def _nmt_fused_kernel(src_x_ref, trg_x_ref, src_last_ref, perm_ref,
                      enc_wih_ref, enc_whh_ref, enc_bih_ref, enc_bhh_ref,
                      h2h_w_ref, h2h_b_ref,
                      dec_wih_ref, dec_whh_ref, dec_bih_ref, dec_bhh_ref,
                      h2v_w_ref, h2v_b_ref,
                      logits_ref,
                      gi_src_scr, gi_trg_scr, h_trg_scr):
    Bp = perm_ref.shape[0]                 # padded batch (multiple of 8)
    Dp = h2h_b_ref.shape[-1]               # padded hidden (multiple of 128)
    S_src = src_x_ref.shape[0] // Bp
    S_trg = trg_x_ref.shape[0] // Bp

    # ---- prologue: hoisted input projections (one big MXU matmul per GRU) ----
    gi_src_scr[...] = (jnp.dot(src_x_ref[...], enc_wih_ref[...],
                               preferred_element_type=jnp.float32)
                       + enc_bih_ref[...])
    gi_trg_scr[...] = (jnp.dot(trg_x_ref[...], dec_wih_ref[...],
                               preferred_element_type=jnp.float32)
                       + dec_bih_ref[...])

    def gru_cell(gi, gh, h_prev):
        # PyTorch GRU gate order [r, z, n]; slices are 128-lane aligned (Dp=128k).
        r = jax.nn.sigmoid(gi[:, 0:Dp] + gh[:, 0:Dp])
        z = jax.nn.sigmoid(gi[:, Dp:2 * Dp] + gh[:, Dp:2 * Dp])
        n = jnp.tanh(gi[:, 2 * Dp:3 * Dp] + r * gh[:, 2 * Dp:3 * Dp])
        return (1.0 - z) * n + z * h_prev

    # ---- encoder GRU: only h @ Whh + gates left in the strictly-serial loop ----
    def enc_step(t, carry):
        h, h_n = carry
        off = pl.multiple_of(t * Bp, Bp)
        gi = gi_src_scr[pl.ds(off, Bp), :]
        gh = (jnp.dot(h, enc_whh_ref[...], preferred_element_type=jnp.float32)
              + enc_bhh_ref[...])
        h_new = gru_cell(gi, gh, h)
        # packed-GRU final hidden: state at t == len[b]-1 for each row
        h_n = jnp.where(src_last_ref[...] == t, h_new, h_n)
        return h_new, h_n

    h0 = jnp.zeros((Bp, Dp), jnp.float32)
    _, h_n = lax.fori_loop(0, S_src, enc_step, (h0, h0), unroll=True)

    # ---- hid_to_hid epilogue + torch.index_select(enc_hid, 0, trg_sorted_idx)
    #      (batch permutation applied as a tiny 0/1 matmul, stays in VMEM) ----
    enc_hid = (jnp.dot(h_n, h2h_w_ref[...], preferred_element_type=jnp.float32)
               + h2h_b_ref[...])
    dec_h0 = jnp.dot(perm_ref[...], enc_hid, preferred_element_type=jnp.float32)

    # ---- decoder GRU: hidden states accumulated in VMEM scratch ----
    def dec_step(t, h):
        off = pl.multiple_of(t * Bp, Bp)
        gi = gi_trg_scr[pl.ds(off, Bp), :]
        gh = (jnp.dot(h, dec_whh_ref[...], preferred_element_type=jnp.float32)
              + dec_bhh_ref[...])
        h_new = gru_cell(gi, gh, h)
        h_trg_scr[pl.ds(off, Bp), :] = h_new
        return h_new

    lax.fori_loop(0, S_trg, dec_step, dec_h0, unroll=True)

    # ---- hid_to_voc epilogue: one lane-dense (S*B, Dp) x (Dp, Vp) matmul ----
    logits_ref[...] = (jnp.dot(h_trg_scr[...], h2v_w_ref[...],
                               preferred_element_type=jnp.float32)
                       + h2v_b_ref[...])


# ----------------------------- parameters -----------------------------

def init_nmt_params(key, V_src, V_trg, D_emb, D_hid):
    ks = jax.random.split(key, 14)
    s = 0.1
    p = {}
    p["enc_emb"] = (s * jax.random.normal(ks[0], (V_src, D_emb), jnp.float32)).at[0].set(0.0)
    p["enc_w_ih"] = s * jax.random.normal(ks[1], (3 * D_hid, D_emb), jnp.float32)
    p["enc_w_hh"] = s * jax.random.normal(ks[2], (3 * D_hid, D_hid), jnp.float32)
    p["enc_b_ih"] = s * jax.random.normal(ks[3], (3 * D_hid,), jnp.float32)
    p["enc_b_hh"] = s * jax.random.normal(ks[4], (3 * D_hid,), jnp.float32)
    p["h2h_w"] = s * jax.random.normal(ks[5], (D_hid, D_hid), jnp.float32)
    p["h2h_b"] = s * jax.random.normal(ks[6], (D_hid,), jnp.float32)
    p["dec_emb"] = (s * jax.random.normal(ks[7], (V_trg, D_emb), jnp.float32)).at[0].set(0.0)
    p["dec_w_ih"] = s * jax.random.normal(ks[8], (3 * D_hid, D_emb), jnp.float32)
    p["dec_w_hh"] = s * jax.random.normal(ks[9], (3 * D_hid, D_hid), jnp.float32)
    p["dec_b_ih"] = s * jax.random.normal(ks[10], (3 * D_hid,), jnp.float32)
    p["dec_b_hh"] = s * jax.random.normal(ks[11], (3 * D_hid,), jnp.float32)
    p["h2v_w"] = s * jax.random.normal(ks[12], (V_trg, D_hid), jnp.float32)
    p["h2v_b"] = s * jax.random.normal(ks[13], (V_trg,), jnp.float32)
    return p


def prep_nmt_params(p, batch_size):
    """One-time pre-transpose + zero-pad to lane/sublane-aligned shapes."""
    D = p["h2h_b"].shape[0]
    E = p["enc_emb"].shape[1]
    V = p["h2v_b"].shape[0]
    Dp, Ep, Vp = _round_up(D, 128), _round_up(E, 128), _round_up(V, 128)
    Bp = _round_up(batch_size, 8)

    def pad2(x, r, c):
        return jnp.pad(x, ((0, r - x.shape[0]), (0, c - x.shape[1])))

    def gru_w_t(w, in_dim, in_pad):
        # torch layout (3*D, in) -> padded, transposed (in_pad, 3*Dp), gate blocks
        # each Dp wide so in-kernel gate slices are 128-lane aligned.
        w3 = w.reshape(3, D, in_dim)
        w3 = jnp.pad(w3, ((0, 0), (0, Dp - D), (0, in_pad - in_dim)))
        return jnp.transpose(w3, (2, 0, 1)).reshape(in_pad, 3 * Dp)

    def gru_b(b):
        return jnp.pad(b.reshape(3, D), ((0, 0), (0, Dp - D))).reshape(1, 3 * Dp)

    pp = dict(Bp=Bp, Dp=Dp, Ep=Ep, Vp=Vp, V_trg=V)
    pp["enc_emb"] = pad2(p["enc_emb"], p["enc_emb"].shape[0], Ep)
    pp["dec_emb"] = pad2(p["dec_emb"], p["dec_emb"].shape[0], Ep)
    pp["enc_wih_t"] = gru_w_t(p["enc_w_ih"], E, Ep)
    pp["enc_whh_t"] = gru_w_t(p["enc_w_hh"], D, Dp)
    pp["enc_bih"] = gru_b(p["enc_b_ih"])
    pp["enc_bhh"] = gru_b(p["enc_b_hh"])
    pp["dec_wih_t"] = gru_w_t(p["dec_w_ih"], E, Ep)
    pp["dec_whh_t"] = gru_w_t(p["dec_w_hh"], D, Dp)
    pp["dec_bih"] = gru_b(p["dec_b_ih"])
    pp["dec_bhh"] = gru_b(p["dec_b_hh"])
    pp["h2h_w_t"] = pad2(jnp.transpose(p["h2h_w"]), Dp, Dp)
    pp["h2h_b"] = jnp.pad(p["h2h_b"], (0, Dp - D)).reshape(1, Dp)
    pp["h2v_w_t"] = pad2(jnp.transpose(p["h2v_w"]), Dp, Vp)
    pp["h2v_b"] = jnp.pad(p["h2v_b"], (0, Vp - V)).reshape(1, Vp)
    return pp


# ----------------------------- forward wrapper -----------------------------

def _packed_flat_indices(lens, seq_len, b_stride):
    # pack_padded_sequence row order (batch_first=True, lens sorted descending):
    # time-major over the valid positions; flat index into an (S*b_stride, .) slab.
    idx = []
    for t in range(seq_len):
        for b in range(len(lens)):
            if lens[b] > t:
                idx.append(t * b_stride + b)
    return np.asarray(idx, np.int32)


def nmt_forward_pallas(pp, src_ids, src_lens, trg_sorted_idx, trg_ids, trg_lens):
    B, S_src = src_ids.shape
    _, S_trg = trg_ids.shape
    Bp, Dp, Ep, Vp = pp["Bp"], pp["Dp"], pp["Ep"], pp["Vp"]

    def to_time_major_padded(emb_tbl, ids):
        x = emb_tbl[ids]                               # (B, S, Ep) embedding gather (glue)
        x = jnp.transpose(x, (1, 0, 2))                # (S, B, Ep) time-major
        x = jnp.pad(x, ((0, 0), (0, Bp - B), (0, 0)))  # pad batch to multiple of 8
        return x.reshape(-1, Ep)                       # (S*Bp, Ep)

    src_x = to_time_major_padded(pp["enc_emb"], src_ids)
    trg_x = to_time_major_padded(pp["dec_emb"], trg_ids)

    src_last = np.full((Bp, 1), -1, np.int32)
    src_last[:B, 0] = np.asarray(src_lens, np.int32) - 1
    src_last = jnp.asarray(src_last)

    # torch.index_select(enc_hid, 0, trg_sorted_idx) as a 0/1 permutation matrix
    perm = np.zeros((Bp, Bp), np.float32)
    perm[np.arange(B), np.asarray(trg_sorted_idx, np.int64)] = 1.0
    perm = jnp.asarray(perm)

    dense_logits = pl.pallas_call(
        _nmt_fused_kernel,
        out_shape=jax.ShapeDtypeStruct((S_trg * Bp, Vp), jnp.float32),
        scratch_shapes=[
            pltpu.VMEM((S_src * Bp, 3 * Dp), jnp.float32),   # hoisted encoder gi
            pltpu.VMEM((S_trg * Bp, 3 * Dp), jnp.float32),   # hoisted decoder gi
            pltpu.VMEM((S_trg * Bp, Dp), jnp.float32),       # decoder hidden states
        ],
        compiler_params=pltpu.CompilerParams(vmem_limit_bytes=32 * 1024 * 1024),
    )(src_x, trg_x, src_last, perm,
      pp["enc_wih_t"], pp["enc_whh_t"], pp["enc_bih"], pp["enc_bhh"],
      pp["h2h_w_t"], pp["h2h_b"],
      pp["dec_wih_t"], pp["dec_whh_t"], pp["dec_bih"], pp["dec_bhh"],
      pp["h2v_w_t"], pp["h2v_b"])

    # packed-row selection on the dense slab (simple row gather, done once outside)
    flat_idx = _packed_flat_indices(list(np.asarray(trg_lens)), S_trg, Bp)
    return dense_logits[jnp.asarray(flat_idx)][:, :pp["V_trg"]]


# ----------------------------- pure-JAX reference -----------------------------

def _gru_ref(x_tbd, h0, w_ih, w_hh, b_ih, b_hh):
    D = h0.shape[-1]

    def step(h, x):
        gi = x @ w_ih.T + b_ih
        gh = h @ w_hh.T + b_hh
        r = jax.nn.sigmoid(gi[:, :D] + gh[:, :D])
        z = jax.nn.sigmoid(gi[:, D:2 * D] + gh[:, D:2 * D])
        n = jnp.tanh(gi[:, 2 * D:] + r * gh[:, 2 * D:])
        h_new = (1.0 - z) * n + z * h
        return h_new, h_new

    _, hs = lax.scan(step, h0, x_tbd)
    return hs


def nmt_forward_ref(params, src_ids, src_lens, trg_sorted_idx, trg_ids, trg_lens):
    B, S_src = src_ids.shape
    _, S_trg = trg_ids.shape
    D_hid = params["h2h_b"].shape[0]
    src_emb_tbd = jnp.transpose(params["enc_emb"][src_ids], (1, 0, 2))
    enc_h_all = _gru_ref(src_emb_tbd, jnp.zeros((B, D_hid), jnp.float32),
                         params["enc_w_ih"], params["enc_w_hh"],
                         params["enc_b_ih"], params["enc_b_hh"])
    h_n = enc_h_all[jnp.asarray(np.asarray(src_lens), jnp.int32) - 1, jnp.arange(B)]
    enc_hid = h_n @ params["h2h_w"].T + params["h2h_b"]
    enc_hid = enc_hid[jnp.asarray(np.asarray(trg_sorted_idx), jnp.int32)]
    trg_emb_tbd = jnp.transpose(params["dec_emb"][trg_ids], (1, 0, 2))
    dec_h_all = _gru_ref(trg_emb_tbd, enc_hid,
                         params["dec_w_ih"], params["dec_w_hh"],
                         params["dec_b_ih"], params["dec_b_hh"])
    flat_idx = _packed_flat_indices(list(np.asarray(trg_lens)), S_trg, B)
    packed_h = dec_h_all.reshape(S_trg * B, D_hid)[jnp.asarray(flat_idx)]
    return packed_h @ params["h2v_w"].T + params["h2v_b"]


# ----------------------------- main -----------------------------

if __name__ == "__main__":
    B, S_src, S_trg = 4, 8, 8
    D_emb, D_hid = 32, 32
    V_src, V_trg = 32, 48

    key = jax.random.PRNGKey(0)
    pkey, dkey1, dkey2 = jax.random.split(key, 3)
    params = init_nmt_params(pkey, V_src, V_trg, D_emb, D_hid)
    prepped = prep_nmt_params(params, B)

    # lens sorted descending (pack_padded_sequence contract)
    src_lens = np.array([8, 6, 5, 3], np.int32)
    trg_lens = np.array([7, 6, 4, 2], np.int32)
    trg_sorted_idx = np.array([2, 0, 3, 1], np.int32)

    # token ids, zeroed (padding_idx=0) beyond each sequence's length
    # (built with np.where — no in-place writes into read-only device buffers)
    src_raw = np.asarray(jax.random.randint(dkey1, (B, S_src), 1, V_src))
    trg_raw = np.asarray(jax.random.randint(dkey2, (B, S_trg), 1, V_trg))
    src_pos = np.arange(S_src)[None, :]
    trg_pos = np.arange(S_trg)[None, :]
    src_ids = np.where(src_pos < src_lens[:, None], src_raw, 0).astype(np.int32)
    trg_ids = np.where(trg_pos < trg_lens[:, None], trg_raw, 0).astype(np.int32)
    src_caps_in = jnp.asarray(src_ids)
    trg_caps_in = jnp.asarray(trg_ids)

    dec_logits = nmt_forward_pallas(prepped, src_caps_in, src_lens,
                                    trg_sorted_idx, trg_caps_in, trg_lens)
    dec_logits = jax.block_until_ready(dec_logits)

    ref = jax.block_until_ready(
        nmt_forward_ref(params, src_caps_in, src_lens, trg_sorted_idx,
                        trg_caps_in, trg_lens))

    assert dec_logits.shape == (int(trg_lens.sum()), V_trg), dec_logits.shape
    np.testing.assert_allclose(np.asarray(dec_logits), np.asarray(ref),
                               rtol=1e-2, atol=1e-3)
    print("KERNEL_OK")
</pallas_src>

<mosaic_0001>
module attributes {stable_mosaic.version = 11 : i64} {
  func.func @_nmt_fused_kernel(%arg0: memref<64x128xf32, #tpu.memory_space<vmem>>, %arg1: memref<64x128xf32, #tpu.memory_space<vmem>>, %arg2: memref<8x1xi32, #tpu.memory_space<vmem>>, %arg3: memref<8x8xf32, #tpu.memory_space<vmem>>, %arg4: memref<128x384xf32, #tpu.memory_space<vmem>>, %arg5: memref<128x384xf32, #tpu.memory_space<vmem>>, %arg6: memref<1x384xf32, #tpu.memory_space<vmem>>, %arg7: memref<1x384xf32, #tpu.memory_space<vmem>>, %arg8: memref<128x128xf32, #tpu.memory_space<vmem>>, %arg9: memref<1x128xf32, #tpu.memory_space<vmem>>, %arg10: memref<128x384xf32, #tpu.memory_space<vmem>>, %arg11: memref<128x384xf32, #tpu.memory_space<vmem>>, %arg12: memref<1x384xf32, #tpu.memory_space<vmem>>, %arg13: memref<1x384xf32, #tpu.memory_space<vmem>>, %arg14: memref<128x128xf32, #tpu.memory_space<vmem>>, %arg15: memref<1x128xf32, #tpu.memory_space<vmem>>, %arg16: memref<64x128xf32, #tpu.memory_space<vmem>>, %arg17: memref<64x384xf32, #tpu.memory_space<vmem>>, %arg18: memref<64x384xf32, #tpu.memory_space<vmem>>, %arg19: memref<64x128xf32, #tpu.memory_space<vmem>>) attributes {dimension_semantics = [], scalar_prefetch = 0 : i64, scratch_operands = 3 : i64, tpu.core_type = #tpu.core_type<tc>} {
    %c0 = arith.constant 0 : index
    %c0_0 = arith.constant 0 : index
    %0 = vector.load %arg0[%c0, %c0_0] : memref<64x128xf32, #tpu.memory_space<vmem>>, vector<64x128xf32>
    %c0_1 = arith.constant 0 : index
    %c0_2 = arith.constant 0 : index
    %1 = vector.load %arg4[%c0_1, %c0_2] : memref<128x384xf32, #tpu.memory_space<vmem>>, vector<128x384xf32>
    %cst = arith.constant dense<0.000000e+00> : vector<64x384xf32>
    %2 = tpu.matmul %0, %1, %cst {dimension_numbers = #tpu.dot_dimension_numbers<[1], [0], [0], [1], [0, 0, 1, 1], [], []>} : vector<64x128xf32>, vector<128x384xf32>, vector<64x384xf32> -> vector<64x384xf32>
    %c0_3 = arith.constant 0 : index
    %c0_4 = arith.constant 0 : index
    %3 = vector.load %arg6[%c0_3, %c0_4] : memref<1x384xf32, #tpu.memory_space<vmem>>, vector<1x384xf32>
    %4 = vector.broadcast %3 : vector<1x384xf32> to vector<64x384xf32>
    %5 = arith.addf %2, %4 : vector<64x384xf32>
    %c0_5 = arith.constant 0 : index
    %c0_6 = arith.constant 0 : index
    %6 = vector.load %arg17[%c0_5, %c0_6] : memref<64x384xf32, #tpu.memory_space<vmem>>, vector<64x384xf32>
    tpu.vector_store %arg17[%c0_5, %c0_6], %5 {strides = array<i32>} : memref<64x384xf32, #tpu.memory_space<vmem>>, vector<64x384xf32>,
    %c0_7 = arith.constant 0 : index
    %c0_8 = arith.constant 0 : index
    %7 = vector.load %arg1[%c0_7, %c0_8] : memref<64x128xf32, #tpu.memory_space<vmem>>, vector<64x128xf32>
    %c0_9 = arith.constant 0 : index
    %c0_10 = arith.constant 0 : index
    %8 = vector.load %arg10[%c0_9, %c0_10] : memref<128x384xf32, #tpu.memory_space<vmem>>, vector<128x384xf32>
    %cst_11 = arith.constant dense<0.000000e+00> : vector<64x384xf32>
    %9 = tpu.matmul %7, %8, %cst_11 {dimension_numbers = #tpu.dot_dimension_numbers<[1], [0], [0], [1], [0, 0, 1, 1], [], []>} : vector<64x128xf32>, vector<128x384xf32>, vector<64x384xf32> -> vector<64x384xf32>
    %c0_12 = arith.constant 0 : index
    %c0_13 = arith.constant 0 : index
    %10 = vector.load %arg12[%c0_12, %c0_13] : memref<1x384xf32, #tpu.memory_space<vmem>>, vector<1x384xf32>
    %11 = vector.broadcast %10 : vector<1x384xf32> to vector<64x384xf32>
    %12 = arith.addf %9, %11 : vector<64x384xf32>
    %c0_14 = arith.constant 0 : index
    %c0_15 = arith.constant 0 : index
    %13 = vector.load %arg18[%c0_14, %c0_15] : memref<64x384xf32, #tpu.memory_space<vmem>>, vector<64x384xf32>
    tpu.vector_store %arg18[%c0_14, %c0_15], %12 {strides = array<i32>} : memref<64x384xf32, #tpu.memory_space<vmem>>, vector<64x384xf32>,
    %cst_16 = arith.constant 0.000000e+00 : f32
    %14 = vector.broadcast %cst_16 : f32 to vector<8x128xf32>
    %c0_i32 = arith.constant 0 : i32
    %c8_i32 = arith.constant 8 : i32
    %15 = arith.muli %c0_i32, %c8_i32 : i32
    %16 = tpu.assume_multiple %15, 8 : i32
    %17 = arith.index_cast %16 : i32 to index
    %c0_17 = arith.constant 0 : index
    %18 = vector.load %arg17[%17, %c0_17] : memref<64x384xf32, #tpu.memory_space<vmem>>, vector<8x384xf32>
    %c0_18 = arith.constant 0 : index
    %c0_19 = arith.constant 0 : index
    %19 = vector.load %arg5[%c0_18, %c0_19] : memref<128x384xf32, #tpu.memory_space<vmem>>, vector<128x384xf32>
    %cst_20 = arith.constant dense<0.000000e+00> : vector<8x384xf32>
    %20 = tpu.matmul %14, %19, %cst_20 {dimension_numbers = #tpu.dot_dimension_numbers<[1], [0], [0], [1], [0, 0, 1, 1], [], []>} : vector<8x128xf32>, vector<128x384xf32>, vector<8x384xf32> -> vector<8x384xf32>
    %c0_21 = arith.constant 0 : index
    %c0_22 = arith.constant 0 : index
    %21 = vector.load %arg7[%c0_21, %c0_22] : memref<1x384xf32, #tpu.memory_space<vmem>>, vector<1x384xf32>
    %22 = vector.broadcast %21 : vector<1x384xf32> to vector<8x384xf32>
    %23 = arith.addf %20, %22 : vector<8x384xf32>
    %24 = vector.extract_strided_slice %18 {offsets = [0, 0], sizes = [8, 128], strides = [1, 1]} : vector<8x384xf32> to vector<8x128xf32>
    %25 = vector.extract_strided_slice %23 {offsets = [0, 0], sizes = [8, 128], strides = [1, 1]} : vector<8x384xf32> to vector<8x128xf32>
    %26 = arith.addf %24, %25 : vector<8x128xf32>
    %27 = arith.negf %26 : vector<8x128xf32>
    %28 = math.exp %27 : vector<8x128xf32>
    %cst_23 = arith.constant 1.000000e+00 : f32
    %29 = vector.broadcast %cst_23 : f32 to vector<8x128xf32>
    %30 = arith.addf %29, %28 : vector<8x128xf32>
    %31 = arith.divf %29, %30 : vector<8x128xf32>
    %32 = vector.extract_strided_slice %18 {offsets = [0, 128], sizes = [8, 128], strides = [1, 1]} : vector<8x384xf32> to vector<8x128xf32>
    %33 = vector.extract_strided_slice %23 {offsets = [0, 128], sizes = [8, 128], strides = [1, 1]} : vector<8x384xf32> to vector<8x128xf32>
    %34 = arith.addf %32, %33 : vector<8x128xf32>
    %35 = arith.negf %34 : vector<8x128xf32>
    %36 = math.exp %35 : vector<8x128xf32>
    %cst_24 = arith.constant 1.000000e+00 : f32
    %37 = vector.broadcast %cst_24 : f32 to vector<8x128xf32>
    %38 = arith.addf %37, %36 : vector<8x128xf32>
    %39 = arith.divf %37, %38 : vector<8x128xf32>
    %40 = vector.extract_strided_slice %18 {offsets = [0, 256], sizes = [8, 128], strides = [1, 1]} : vector<8x384xf32> to vector<8x128xf32>
    %41 = vector.extract_strided_slice %23 {offsets = [0, 256], sizes = [8, 128], strides = [1, 1]} : vector<8x384xf32> to vector<8x128xf32>
    %42 = arith.mulf %31, %41 : vector<8x128xf32>
    %43 = arith.addf %40, %42 : vector<8x128xf32>
    %44 = math.tanh %43 : vector<8x128xf32>
    %cst_25 = arith.constant 1.000000e+00 : f32
    %45 = vector.broadcast %cst_25 : f32 to vector<8x128xf32>
    %46 = arith.subf %45, %39 : vector<8x128xf32>
    %47 = arith.mulf %46, %44 : vector<8x128xf32>
    %48 = arith.mulf %39, %14 : vector<8x128xf32>
    %49 = arith.addf %47, %48 : vector<8x128xf32>
    %c0_26 = arith.constant 0 : index
    %c0_27 = arith.constant 0 : index
    %50 = vector.load %arg2[%c0_26, %c0_27] : memref<8x1xi32, #tpu.memory_space<vmem>>, vector<8x1xi32>
    %51 = vector.broadcast %c0_i32 : i32 to vector<8x1xi32>
    %52 = arith.cmpi eq, %50, %51 : vector<8x1xi32>
    %53 = vector.shape_cast %52 : vector<8x1xi1> to vector<8x1xi1>
    %54 = vector.broadcast %53 : vector<8x1xi1> to vector<8x128xi1>
    %55 = arith.select %54, %49, %14 : vector<8x128xi1>, vector<8x128xf32>
    %c1_i32 = arith.constant 1 : i32
    %c8_i32_28 = arith.constant 8 : i32
    %56 = arith.muli %c1_i32, %c8_i32_28 : i32
    %57 = tpu.assume_multiple %56, 8 : i32
    %58 = arith.index_cast %57 : i32 to index
    %c0_29 = arith.constant 0 : index
    %59 = vector.load %arg17[%58, %c0_29] : memref<64x384xf32, #tpu.memory_space<vmem>>, vector<8x384xf32>
    %c0_30 = arith.constant 0 : index
    %c0_31 = arith.constant 0 : index
    %60 = vector.load %arg5[%c0_30, %c0_31] : memref<128x384xf32, #tpu.memory_space<vmem>>, vector<128x384xf32>
    %cst_32 = arith.constant dense<0.000000e+00> : vector<8x384xf32>
    %61 = tpu.matmul %49, %60, %cst_32 {dimension_numbers = #tpu.dot_dimension_numbers<[1], [0], [0], [1], [0, 0, 1, 1], [], []>} : vector<8x128xf32>, vector<128x384xf32>, vector<8x384xf32> -> vector<8x384xf32>
    %c0_33 = arith.constant 0 : index
    %c0_34 = arith.constant 0 : index
    %62 = vector.load %arg7[%c0_33, %c0_34] : memref<1x384xf32, #tpu.memory_space<vmem>>, vector<1x384xf32>
    %63 = vector.broadcast %62 : vector<1x384xf32> to vector<8x384xf32>
    %64 = arith.addf %61, %63 : vector<8x384xf32>
    %65 = vector.extract_strided_slice %59 {offsets = [0, 0], sizes = [8, 128], strides = [1, 1]} : vector<8x384xf32> to vector<8x128xf32>
    %66 = vector.extract_strided_slice %64 {offsets = [0, 0], sizes = [8, 128], strides = [1, 1]} : vector<8x384xf32> to vector<8x128xf32>
    %67 = arith.addf %65, %66 : vector<8x128xf32>
    %68 = arith.negf %67 : vector<8x128xf32>
    %69 = math.exp %68 : vector<8x128xf32>
    %cst_35 = arith.constant 1.000000e+00 : f32
    %70 = vector.broadcast %cst_35 : f32 to vector<8x128xf32>
    %71 = arith.addf %70, %69 : vector<8x128xf32>
    %72 = arith.divf %70, %71 : vector<8x128xf32>
    %73 = vector.extract_strided_slice %59 {offsets = [0, 128], sizes = [8, 128], strides = [1, 1]} : vector<8x384xf32> to vector<8x128xf32>
    %74 = vector.extract_strided_slice %64 {offsets = [0, 128], sizes = [8, 128], strides = [1, 1]} : vector<8x384xf32> to vector<8x128xf32>
    %75 = arith.addf %73, %74 : vector<8x128xf32>
    %76 = arith.negf %75 : vector<8x128xf32>
    %77 = math.exp %76 : vector<8x128xf32>
    %cst_36 = arith.constant 1.000000e+00 : f32
    %78 = vector.broadcast %cst_36 : f32 to vector<8x128xf32>
    %79 = arith.addf %78, %77 : vector<8x128xf32>
    %80 = arith.divf %78, %79 : vector<8x128xf32>
    %81 = vector.extract_strided_slice %59 {offsets = [0, 256], sizes = [8, 128], strides = [1, 1]} : vector<8x384xf32> to vector<8x128xf32>
    %82 = vector.extract_strided_slice %64 {offsets = [0, 256], sizes = [8, 128], strides = [1, 1]} : vector<8x384xf32> to vector<8x128xf32>
    %83 = arith.mulf %72, %82 : vector<8x128xf32>
    %84 = arith.addf %81, %83 : vector<8x128xf32>
    %85 = math.tanh %84 : vector<8x128xf32>
    %cst_37 = arith.constant 1.000000e+00 : f32
    %86 = vector.broadcast %cst_37 : f32 to vector<8x128xf32>
    %87 = arith.subf %86, %80 : vector<8x128xf32>
    %88 = arith.mulf %87, %85 : vector<8x128xf32>
    %89 = arith.mulf %80, %49 : vector<8x128xf32>
    %90 = arith.addf %88, %89 : vector<8x128xf32>
    %c0_38 = arith.constant 0 : index
    %c0_39 = arith.constant 0 : index
    %91 = vector.load %arg2[%c0_38, %c0_39] : memref<8x1xi32, #tpu.memory_space<vmem>>, vector<8x1xi32>
    %92 = vector.broadcast %c1_i32 : i32 to vector<8x1xi32>
    %93 = arith.cmpi eq, %91, %92 : vector<8x1xi32>
    %94 = vector.shape_cast %93 : vector<8x1xi1> to vector<8x1xi1>
    %95 = vector.broadcast %94 : vector<8x1xi1> to vector<8x128xi1>
    %96 = arith.select %95, %90, %55 : vector<8x128xi1>, vector<8x128xf32>
    %c2_i32 = arith.constant 2 : i32
    %c8_i32_40 = arith.constant 8 : i32
    %97 = arith.muli %c2_i32, %c8_i32_40 : i32
    %98 = tpu.assume_multiple %97, 8 : i32
    %99 = arith.index_cast %98 : i32 to index
    %c0_41 = arith.constant 0 : index
    %100 = vector.load %arg17[%99, %c0_41] : memref<64x384xf32, #tpu.memory_space<vmem>>, vector<8x384xf32>
    %c0_42 = arith.constant 0 : index
    %c0_43 = arith.constant 0 : index
    %101 = vector.load %arg5[%c0_42, %c0_43] : memref<128x384xf32, #tpu.memory_space<vmem>>, vector<128x384xf32>
    %cst_44 = arith.constant dense<0.000000e+00> : vector<8x384xf32>
    %102 = tpu.matmul %90, %101, %cst_44 {dimension_numbers = #tpu.dot_dimension_numbers<[1], [0], [0], [1], [0, 0, 1, 1], [], []>} : vector<8x128xf32>, vector<128x384xf32>, vector<8x384xf32> -> vector<8x384xf32>
    %c0_45 = arith.constant 0 : index
    %c0_46 = arith.constant 0 : index
    %103 = vector.load %arg7[%c0_45, %c0_46] : memref<1x384xf32, #tpu.memory_space<vmem>>, vector<1x384xf32>
    %104 = vector.broadcast %103 : vector<1x384xf32> to vector<8x384xf32>
    %105 = arith.addf %102, %104 : vector<8x384xf32>
    %106 = vector.extract_strided_slice %100 {offsets = [0, 0], sizes = [8, 128], strides = [1, 1]} : vector<8x384xf32> to vector<8x128xf32>
    %107 = vector.extract_strided_slice %105 {offsets = [0, 0], sizes = [8, 128], strides = [1, 1]} : vector<8x384xf32> to vector<8x128xf32>
    %108 = arith.addf %106, %107 : vector<8x128xf32>
    %109 = arith.negf %108 : vector<8x128xf32>
    %110 = math.exp %109 : vector<8x128xf32>
    %cst_47 = arith.constant 1.000000e+00 : f32
    %111 = vector.broadcast %cst_47 : f32 to vector<8x128xf32>
    %112 = arith.addf %111, %110 : vector<8x128xf32>
    %113 = arith.divf %111, %112 : vector<8x128xf32>
    %114 = vector.extract_strided_slice %100 {offsets = [0, 128], sizes = [8, 128], strides = [1, 1]} : vector<8x384xf32> to vector<8x128xf32>
    %115 = vector.extract_strided_slice %105 {offsets = [0, 128], sizes = [8, 128], strides = [1, 1]} : vector<8x384xf32> to vector<8x128xf32>
    %116 = arith.addf %114, %115 : vector<8x128xf32>
    %117 = arith.negf %116 : vector<8x128xf32>
    %118 = math.exp %117 : vector<8x128xf32>
    %cst_48 = arith.constant 1.000000e+00 : f32
    %119 = vector.broadcast %cst_48 : f32 to vector<8x128xf32>
    %120 = arith.addf %119, %118 : vector<8x128xf32>
    %121 = arith.divf %119, %120 : vector<8x128xf32>
    %122 = vector.extract_strided_slice %100 {offsets = [0, 256], sizes = [8, 128], strides = [1, 1]} : vector<8x384xf32> to vector<8x128xf32>
    %123 = vector.extract_strided_slice %105 {offsets = [0, 256], sizes = [8, 128], strides = [1, 1]} : vector<8x384xf32> to vector<8x128xf32>
    %124 = arith.mulf %113, %123 : vector<8x128xf32>
    %125 = arith.addf %122, %124 : vector<8x128xf32>
    %126 = math.tanh %125 : vector<8x128xf32>
    %cst_49 = arith.constant 1.000000e+00 : f32
    %127 = vector.broadcast %cst_49 : f32 to vector<8x128xf32>
    %128 = arith.subf %127, %121 : vector<8x128xf32>
    %129 = arith.mulf %128, %126 : vector<8x128xf32>
    %130 = arith.mulf %121, %90 : vector<8x128xf32>
    %131 = arith.addf %129, %130 : vector<8x128xf32>
    %c0_50 = arith.constant 0 : index
    %c0_51 = arith.constant 0 : index
    %132 = vector.load %arg2[%c0_50, %c0_51] : memref<8x1xi32, #tpu.memory_space<vmem>>, vector<8x1xi32>
    %133 = vector.broadcast %c2_i32 : i32 to vector<8x1xi32>
    %134 = arith.cmpi eq, %132, %133 : vector<8x1xi32>
    %135 = vector.shape_cast %134 : vector<8x1xi1> to vector<8x1xi1>
    %136 = vector.broadcast %135 : vector<8x1xi1> to vector<8x128xi1>
    %137 = arith.select %136, %131, %96 : vector<8x128xi1>, vector<8x128xf32>
    %c3_i32 = arith.constant 3 : i32
    %c8_i32_52 = arith.constant 8 : i32
    %138 = arith.muli %c3_i32, %c8_i32_52 : i32
    %139 = tpu.assume_multiple %138, 8 : i32
    %140 = arith.index_cast %139 : i32 to index
    %c0_53 = arith.constant 0 : index
    %141 = vector.load %arg17[%140, %c0_53] : memref<64x384xf32, #tpu.memory_space<vmem>>, vector<8x384xf32>
    %c0_54 = arith.constant 0 : index
    %c0_55 = arith.constant 0 : index
    %142 = vector.load %arg5[%c0_54, %c0_55] : memref<128x384xf32, #tpu.memory_space<vmem>>, vector<128x384xf32>
    %cst_56 = arith.constant dense<0.000000e+00> : vector<8x384xf32>
    %143 = tpu.matmul %131, %142, %cst_56 {dimension_numbers = #tpu.dot_dimension_numbers<[1], [0], [0], [1], [0, 0, 1, 1], [], []>} : vector<8x128xf32>, vector<128x384xf32>, vector<8x384xf32> -> vector<8x384xf32>
    %c0_57 = arith.constant 0 : index
    %c0_58 = arith.constant 0 : index
    %144 = vector.load %arg7[%c0_57, %c0_58] : memref<1x384xf32, #tpu.memory_space<vmem>>, vector<1x384xf32>
    %145 = vector.broadcast %144 : vector<1x384xf32> to vector<8x384xf32>
    %146 = arith.addf %143, %145 : vector<8x384xf32>
    %147 = vector.extract_strided_slice %141 {offsets = [0, 0], sizes = [8, 128], strides = [1, 1]} : vector<8x384xf32> to vector<8x128xf32>
    %148 = vector.extract_strided_slice %146 {offsets = [0, 0], sizes = [8, 128], strides = [1, 1]} : vector<8x384xf32> to vector<8x128xf32>
    %149 = arith.addf %147, %148 : vector<8x128xf32>
    %150 = arith.negf %149 : vector<8x128xf32>
    %151 = math.exp %150 : vector<8x128xf32>
    %cst_59 = arith.constant 1.000000e+00 : f32
    %152 = vector.broadcast %cst_59 : f32 to vector<8x128xf32>
    %153 = arith.addf %152, %151 : vector<8x128xf32>
    %154 = arith.divf %152, %153 : vector<8x128xf32>
    %155 = vector.extract_strided_slice %141 {offsets = [0, 128], sizes = [8, 128], strides = [1, 1]} : vector<8x384xf32> to vector<8x128xf32>
    %156 = vector.extract_strided_slice %146 {offsets = [0, 128], sizes = [8, 128], strides = [1, 1]} : vector<8x384xf32> to vector<8x128xf32>
    %157 = arith.addf %155, %156 : vector<8x128xf32>
    %158 = arith.negf %157 : vector<8x128xf32>
    %159 = math.exp %158 : vector<8x128xf32>
    %cst_60 = arith.constant 1.000000e+00 : f32
    %160 = vector.broadcast %cst_60 : f32 to vector<8x128xf32>
    %161 = arith.addf %160, %159 : vector<8x128xf32>
    %162 = arith.divf %160, %161 : vector<8x128xf32>
    %163 = vector.extract_strided_slice %141 {offsets = [0, 256], sizes = [8, 128], strides = [1, 1]} : vector<8x384xf32> to vector<8x128xf32>
    %164 = vector.extract_strided_slice %146 {offsets = [0, 256], sizes = [8, 128], strides = [1, 1]} : vector<8x384xf32> to vector<8x128xf32>
    %165 = arith.mulf %154, %164 : vector<8x128xf32>
    %166 = arith.addf %163, %165 : vector<8x128xf32>
    %167 = math.tanh %166 : vector<8x128xf32>
    %cst_61 = arith.constant 1.000000e+00 : f32
    %168 = vector.broadcast %cst_61 : f32 to vector<8x128xf32>
    %169 = arith.subf %168, %162 : vector<8x128xf32>
    %170 = arith.mulf %169, %167 : vector<8x128xf32>
    %171 = arith.mulf %162, %131 : vector<8x128xf32>
    %172 = arith.addf %170, %171 : vector<8x128xf32>
    %c0_62 = arith.constant 0 : index
    %c0_63 = arith.constant 0 : index
    %173 = vector.load %arg2[%c0_62, %c0_63] : memref<8x1xi32, #tpu.memory_space<vmem>>, vector<8x1xi32>
    %174 = vector.broadcast %c3_i32 : i32 to vector<8x1xi32>
    %175 = arith.cmpi eq, %173, %174 : vector<8x1xi32>
    %176 = vector.shape_cast %175 : vector<8x1xi1> to vector<8x1xi1>
    %177 = vector.broadcast %176 : vector<8x1xi1> to vector<8x128xi1>
    %178 = arith.select %177, %172, %137 : vector<8x128xi1>, vector<8x128xf32>
    %c4_i32 = arith.constant 4 : i32
    %c8_i32_64 = arith.constant 8 : i32
    %179 = arith.muli %c4_i32, %c8_i32_64 : i32
    %180 = tpu.assume_multiple %179, 8 : i32
    %181 = arith.index_cast %180 : i32 to index
    %c0_65 = arith.constant 0 : index
    %182 = vector.load %arg17[%181, %c0_65] : memref<64x384xf32, #tpu.memory_space<vmem>>, vector<8x384xf32>
    %c0_66 = arith.constant 0 : index
    %c0_67 = arith.constant 0 : index
    %183 = vector.load %arg5[%c0_66, %c0_67] : memref<128x384xf32, #tpu.memory_space<vmem>>, vector<128x384xf32>
    %cst_68 = arith.constant dense<0.000000e+00> : vector<8x384xf32>
    %184 = tpu.matmul %172, %183, %cst_68 {dimension_numbers = #tpu.dot_dimension_numbers<[1], [0], [0], [1], [0, 0, 1, 1], [], []>} : vector<8x128xf32>, vector<128x384xf32>, vector<8x384xf32> -> vector<8x384xf32>
    %c0_69 = arith.constant 0 : index
    %c0_70 = arith.constant 0 : index
    %185 = vector.load %arg7[%c0_69, %c0_70] : memref<1x384xf32, #tpu.memory_space<vmem>>, vector<1x384xf32>
    %186 = vector.broadcast %185 : vector<1x384xf32> to vector<8x384xf32>
    %187 = arith.addf %184, %186 : vector<8x384xf32>
    %188 = vector.extract_strided_slice %182 {offsets = [0, 0], sizes = [8, 128], strides = [1, 1]} : vector<8x384xf32> to vector<8x128xf32>
    %189 = vector.extract_strided_slice %187 {offsets = [0, 0], sizes = [8, 128], strides = [1, 1]} : vector<8x384xf32> to vector<8x128xf32>
    %190 = arith.addf %188, %189 : vector<8x128xf32>
    %191 = arith.negf %190 : vector<8x128xf32>
    %192 = math.exp %191 : vector<8x128xf32>
    %cst_71 = arith.constant 1.000000e+00 : f32
    %193 = vector.broadcast %cst_71 : f32 to vector<8x128xf32>
    %194 = arith.addf %193, %192 : vector<8x128xf32>
    %195 = arith.divf %193, %194 : vector<8x128xf32>
    %196 = vector.extract_strided_slice %182 {offsets = [0, 128], sizes = [8, 128], strides = [1, 1]} : vector<8x384xf32> to vector<8x128xf32>
    %197 = vector.extract_strided_slice %187 {offsets = [0, 128], sizes = [8, 128], strides = [1, 1]} : vector<8x384xf32> to vector<8x128xf32>
    %198 = arith.addf %196, %197 : vector<8x128xf32>
    %199 = arith.negf %198 : vector<8x128xf32>
    %200 = math.exp %199 : vector<8x128xf32>
    %cst_72 = arith.constant 1.000000e+00 : f32
    %201 = vector.broadcast %cst_72 : f32 to vector<8x128xf32>
    %202 = arith.addf %201, %200 : vector<8x128xf32>
    %203 = arith.divf %201, %202 : vector<8x128xf32>
    %204 = vector.extract_strided_slice %182 {offsets = [0, 256], sizes = [8, 128], strides = [1, 1]} : vector<8x384xf32> to vector<8x128xf32>
    %205 = vector.extract_strided_slice %187 {offsets = [0, 256], sizes = [8, 128], strides = [1, 1]} : vector<8x384xf32> to vector<8x128xf32>
    %206 = arith.mulf %195, %205 : vector<8x128xf32>
    %207 = arith.addf %204, %206 : vector<8x128xf32>
    %208 = math.tanh %207 : vector<8x128xf32>
    %cst_73 = arith.constant 1.000000e+00 : f32
    %209 = vector.broadcast %cst_73 : f32 to vector<8x128xf32>
    %210 = arith.subf %209, %203 : vector<8x128xf32>
    %211 = arith.mulf %210, %208 : vector<8x128xf32>
    %212 = arith.mulf %203, %172 : vector<8x128xf32>
    %213 = arith.addf %211, %212 : vector<8x128xf32>
    %c0_74 = arith.constant 0 : index
    %c0_75 = arith.constant 0 : index
    %214 = vector.load %arg2[%c0_74, %c0_75] : memref<8x1xi32, #tpu.memory_space<vmem>>, vector<8x1xi32>
    %215 = vector.broadcast %c4_i32 : i32 to vector<8x1xi32>
    %216 = arith.cmpi eq, %214, %215 : vector<8x1xi32>
    %217 = vector.shape_cast %216 : vector<8x1xi1> to vector<8x1xi1>
    %218 = vector.broadcast %217 : vector<8x1xi1> to vector<8x128xi1>
    %219 = arith.select %218, %213, %178 : vector<8x128xi1>, vector<8x128xf32>
    %c5_i32 = arith.constant 5 : i32
    %c8_i32_76 = arith.constant 8 : i32
    %220 = arith.muli %c5_i32, %c8_i32_76 : i32
    %221 = tpu.assume_multiple %220, 8 : i32
    %222 = arith.index_cast %221 : i32 to index
    %c0_77 = arith.constant 0 : index
    %223 = vector.load %arg17[%222, %c0_77] : memref<64x384xf32, #tpu.memory_space<vmem>>, vector<8x384xf32>
    %c0_78 = arith.constant 0 : index
    %c0_79 = arith.constant 0 : index
    %224 = vector.load %arg5[%c0_78, %c0_79] : memref<128x384xf32, #tpu.memory_space<vmem>>, vector<128x384xf32>
    %cst_80 = arith.constant dense<0.000000e+00> : vector<8x384xf32>
    %225 = tpu.matmul %213, %224, %cst_80 {dimension_numbers = #tpu.dot_dimension_numbers<[1], [0], [0], [1], [0, 0, 1, 1], [], []>} : vector<8x128xf32>, vector<128x384xf32>, vector<8x384xf32> -> vector<8x384xf32>
    %c0_81 = arith.constant 0 : index
    %c0_82 = arith.constant 0 : index
    %226 = vector.load %arg7[%c0_81, %c0_82] : memref<1x384xf32, #tpu.memory_space<vmem>>, vector<1x384xf32>
    %227 = vector.broadcast %226 : vector<1x384xf32> to vector<8x384xf32>
    %228 = arith.addf %225, %227 : vector<8x384xf32>
    %229 = vector.extract_strided_slice %223 {offsets = [0, 0], sizes = [8, 128], strides = [1, 1]} : vector<8x384xf32> to vector<8x128xf32>
    %230 = vector.extract_strided_slice %228 {offsets = [0, 0], sizes = [8, 128], strides = [1, 1]} : vector<8x384xf32> to vector<8x128xf32>
    %231 = arith.addf %229, %230 : vector<8x128xf32>
    %232 = arith.negf %231 : vector<8x128xf32>
    %233 = math.exp %232 : vector<8x128xf32>
    %cst_83 = arith.constant 1.000000e+00 : f32
    %234 = vector.broadcast %cst_83 : f32 to vector<8x128xf32>
    %235 = arith.addf %234, %233 : vector<8x128xf32>
    %236 = arith.divf %234, %235 : vector<8x128xf32>
    %237 = vector.extract_strided_slice %223 {offsets = [0, 128], sizes = [8, 128], strides = [1, 1]} : vector<8x384xf32> to vector<8x128xf32>
    %238 = vector.extract_strided_slice %228 {offsets = [0, 128], sizes = [8, 128], strides = [1, 1]} : vector<8x384xf32> to vector<8x128xf32>
    %239 = arith.addf %237, %238 : vector<8x128xf32>
    %240 = arith.negf %239 : vector<8x128xf32>
    %241 = math.exp %240 : vector<8x128xf32>
    %cst_84 = arith.constant 1.000000e+00 : f32
    %242 = vector.broadcast %cst_84 : f32 to vector<8x128xf32>
    %243 = arith.addf %242, %241 : vector<8x128xf32>
    %244 = arith.divf %242, %243 : vector<8x128xf32>
    %245 = vector.extract_strided_slice %223 {offsets = [0, 256], sizes = [8, 128], strides = [1, 1]} : vector<8x384xf32> to vector<8x128xf32>
    %246 = vector.extract_strided_slice %228 {offsets = [0, 256], sizes = [8, 128], strides = [1, 1]} : vector<8x384xf32> to vector<8x128xf32>
    %247 = arith.mulf %236, %246 : vector<8x128xf32>
    %248 = arith.addf %245, %247 : vector<8x128xf32>
    %249 = math.tanh %248 : vector<8x128xf32>
    %cst_85 = arith.constant 1.000000e+00 : f32
    %250 = vector.broadcast %cst_85 : f32 to vector<8x128xf32>
    %251 = arith.subf %250, %244 : vector<8x128xf32>
    %252 = arith.mulf %251, %249 : vector<8x128xf32>
    %253 = arith.mulf %244, %213 : vector<8x128xf32>
    %254 = arith.addf %252, %253 : vector<8x128xf32>
    %c0_86 = arith.constant 0 : index
    %c0_87 = arith.constant 0 : index
    %255 = vector.load %arg2[%c0_86, %c0_87] : memref<8x1xi32, #tpu.memory_space<vmem>>, vector<8x1xi32>
    %256 = vector.broadcast %c5_i32 : i32 to vector<8x1xi32>
    %257 = arith.cmpi eq, %255, %256 : vector<8x1xi32>
    %258 = vector.shape_cast %257 : vector<8x1xi1> to vector<8x1xi1>
    %259 = vector.broadcast %258 : vector<8x1xi1> to vector<8x128xi1>
    %260 = arith.select %259, %254, %219 : vector<8x128xi1>, vector<8x128xf32>
    %c6_i32 = arith.constant 6 : i32
    %c8_i32_88 = arith.constant 8 : i32
    %261 = arith.muli %c6_i32, %c8_i32_88 : i32
    %262 = tpu.assume_multiple %261, 8 : i32
    %263 = arith.index_cast %262 : i32 to index
    %c0_89 = arith.constant 0 : index
    %264 = vector.load %arg17[%263, %c0_89] : memref<64x384xf32, #tpu.memory_space<vmem>>, vector<8x384xf32>
    %c0_90 = arith.constant 0 : index
    %c0_91 = arith.constant 0 : index
    %265 = vector.load %arg5[%c0_90, %c0_91] : memref<128x384xf32, #tpu.memory_space<vmem>>, vector<128x384xf32>
    %cst_92 = arith.constant dense<0.000000e+00> : vector<8x384xf32>
    %266 = tpu.matmul %254, %265, %cst_92 {dimension_numbers = #tpu.dot_dimension_numbers<[1], [0], [0], [1], [0, 0, 1, 1], [], []>} : vector<8x128xf32>, vector<128x384xf32>, vector<8x384xf32> -> vector<8x384xf32>
    %c0_93 = arith.constant 0 : index
    %c0_94 = arith.constant 0 : index
    %267 = vector.load %arg7[%c0_93, %c0_94] : memref<1x384xf32, #tpu.memory_space<vmem>>, vector<1x384xf32>
    %268 = vector.broadcast %267 : vector<1x384xf32> to vector<8x384xf32>
    %269 = arith.addf %266, %268 : vector<8x384xf32>
    %270 = vector.extract_strided_slice %264 {offsets = [0, 0], sizes = [8, 128], strides = [1, 1]} : vector<8x384xf32> to vector<8x128xf32>
    %271 = vector.extract_strided_slice %269 {offsets = [0, 0], sizes = [8, 128], strides = [1, 1]} : vector<8x384xf32> to vector<8x128xf32>
    %272 = arith.addf %270, %271 : vector<8x128xf32>
    %273 = arith.negf %272 : vector<8x128xf32>
    %274 = math.exp %273 : vector<8x128xf32>
    %cst_95 = arith.constant 1.000000e+00 : f32
    %275 = vector.broadcast %cst_95 : f32 to vector<8x128xf32>
    %276 = arith.addf %275, %274 : vector<8x128xf32>
    %277 = arith.divf %275, %276 : vector<8x128xf32>
    %278 = vector.extract_strided_slice %264 {offsets = [0, 128], sizes = [8, 128], strides = [1, 1]} : vector<8x384xf32> to vector<8x128xf32>
    %279 = vector.extract_strided_slice %269 {offsets = [0, 128], sizes = [8, 128], strides = [1, 1]} : vector<8x384xf32> to vector<8x128xf32>
    %280 = arith.addf %278, %279 : vector<8x128xf32>
    %281 = arith.negf %280 : vector<8x128xf32>
    %282 = math.exp %281 : vector<8x128xf32>
    %cst_96 = arith.constant 1.000000e+00 : f32
    %283 = vector.broadcast %cst_96 : f32 to vector<8x128xf32>
    %284 = arith.addf %283, %282 : vector<8x128xf32>
    %285 = arith.divf %283, %284 : vector<8x128xf32>
    %286 = vector.extract_strided_slice %264 {offsets = [0, 256], sizes = [8, 128], strides = [1, 1]} : vector<8x384xf32> to vector<8x128xf32>
    %287 = vector.extract_strided_slice %269 {offsets = [0, 256], sizes = [8, 128], strides = [1, 1]} : vector<8x384xf32> to vector<8x128xf32>
    %288 = arith.mulf %277, %287 : vector<8x128xf32>
    %289 = arith.addf %286, %288 : vector<8x128xf32>
    %290 = math.tanh %289 : vector<8x128xf32>
    %cst_97 = arith.constant 1.000000e+00 : f32
    %291 = vector.broadcast %cst_97 : f32 to vector<8x128xf32>
    %292 = arith.subf %291, %285 : vector<8x128xf32>
    %293 = arith.mulf %292, %290 : vector<8x128xf32>
    %294 = arith.mulf %285, %254 : vector<8x128xf32>
    %295 = arith.addf %293, %294 : vector<8x128xf32>
    %c0_98 = arith.constant 0 : index
    %c0_99 = arith.constant 0 : index
    %296 = vector.load %arg2[%c0_98, %c0_99] : memref<8x1xi32, #tpu.memory_space<vmem>>, vector<8x1xi32>
    %297 = vector.broadcast %c6_i32 : i32 to vector<8x1xi32>
    %298 = arith.cmpi eq, %296, %297 : vector<8x1xi32>
    %299 = vector.shape_cast %298 : vector<8x1xi1> to vector<8x1xi1>
    %300 = vector.broadcast %299 : vector<8x1xi1> to vector<8x128xi1>
    %301 = arith.select %300, %295, %260 : vector<8x128xi1>, vector<8x128xf32>
    %c7_i32 = arith.constant 7 : i32
    %c8_i32_100 = arith.constant 8 : i32
    %302 = arith.muli %c7_i32, %c8_i32_100 : i32
    %303 = tpu.assume_multiple %302, 8 : i32
    %304 = arith.index_cast %303 : i32 to index
    %c0_101 = arith.constant 0 : index
    %305 = vector.load %arg17[%304, %c0_101] : memref<64x384xf32, #tpu.memory_space<vmem>>, vector<8x384xf32>
    %c0_102 = arith.constant 0 : index
    %c0_103 = arith.constant 0 : index
    %306 = vector.load %arg5[%c0_102, %c0_103] : memref<128x384xf32, #tpu.memory_space<vmem>>, vector<128x384xf32>
    %cst_104 = arith.constant dense<0.000000e+00> : vector<8x384xf32>
    %307 = tpu.matmul %295, %306, %cst_104 {dimension_numbers = #tpu.dot_dimension_numbers<[1], [0], [0], [1], [0, 0, 1, 1], [], []>} : vector<8x128xf32>, vector<128x384xf32>, vector<8x384xf32> -> vector<8x384xf32>
    %c0_105 = arith.constant 0 : index
    %c0_106 = arith.constant 0 : index
    %308 = vector.load %arg7[%c0_105, %c0_106] : memref<1x384xf32, #tpu.memory_space<vmem>>, vector<1x384xf32>
    %309 = vector.broadcast %308 : vector<1x384xf32> to vector<8x384xf32>
    %310 = arith.addf %307, %309 : vector<8x384xf32>
    %311 = vector.extract_strided_slice %305 {offsets = [0, 0], sizes = [8, 128], strides = [1, 1]} : vector<8x384xf32> to vector<8x128xf32>
    %312 = vector.extract_strided_slice %310 {offsets = [0, 0], sizes = [8, 128], strides = [1, 1]} : vector<8x384xf32> to vector<8x128xf32>
    %313 = arith.addf %311, %312 : vector<8x128xf32>
    %314 = arith.negf %313 : vector<8x128xf32>
    %315 = math.exp %314 : vector<8x128xf32>
    %cst_107 = arith.constant 1.000000e+00 : f32
    %316 = vector.broadcast %cst_107 : f32 to vector<8x128xf32>
    %317 = arith.addf %316, %315 : vector<8x128xf32>
    %318 = arith.divf %316, %317 : vector<8x128xf32>
    %319 = vector.extract_strided_slice %305 {offsets = [0, 128], sizes = [8, 128], strides = [1, 1]} : vector<8x384xf32> to vector<8x128xf32>
    %320 = vector.extract_strided_slice %310 {offsets = [0, 128], sizes = [8, 128], strides = [1, 1]} : vector<8x384xf32> to vector<8x128xf32>
    %321 = arith.addf %319, %320 : vector<8x128xf32>
    %322 = arith.negf %321 : vector<8x128xf32>
    %323 = math.exp %322 : vector<8x128xf32>
    %cst_108 = arith.constant 1.000000e+00 : f32
    %324 = vector.broadcast %cst_108 : f32 to vector<8x128xf32>
    %325 = arith.addf %324, %323 : vector<8x128xf32>
    %326 = arith.divf %324, %325 : vector<8x128xf32>
    %327 = vector.extract_strided_slice %305 {offsets = [0, 256], sizes = [8, 128], strides = [1, 1]} : vector<8x384xf32> to vector<8x128xf32>
    %328 = vector.extract_strided_slice %310 {offsets = [0, 256], sizes = [8, 128], strides = [1, 1]} : vector<8x384xf32> to vector<8x128xf32>
    %329 = arith.mulf %318, %328 : vector<8x128xf32>
    %330 = arith.addf %327, %329 : vector<8x128xf32>
    %331 = math.tanh %330 : vector<8x128xf32>
    %cst_109 = arith.constant 1.000000e+00 : f32
    %332 = vector.broadcast %cst_109 : f32 to vector<8x128xf32>
    %333 = arith.subf %332, %326 : vector<8x128xf32>
    %334 = arith.mulf %333, %331 : vector<8x128xf32>
    %335 = arith.mulf %326, %295 : vector<8x128xf32>
    %336 = arith.addf %334, %335 : vector<8x128xf32>
    %c0_110 = arith.constant 0 : index
    %c0_111 = arith.constant 0 : index
    %337 = vector.load %arg2[%c0_110, %c0_111] : memref<8x1xi32, #tpu.memory_space<vmem>>, vector<8x1xi32>
    %338 = vector.broadcast %c7_i32 : i32 to vector<8x1xi32>
    %339 = arith.cmpi eq, %337, %338 : vector<8x1xi32>
    %340 = vector.shape_cast %339 : vector<8x1xi1> to vector<8x1xi1>
    %341 = vector.broadcast %340 : vector<8x1xi1> to vector<8x128xi1>
    %342 = arith.select %341, %336, %301 : vector<8x128xi1>, vector<8x128xf32>
    %c8_i32_112 = arith.constant 8 : i32
    %c0_113 = arith.constant 0 : index
    %c0_114 = arith.constant 0 : index
    %343 = vector.load %arg8[%c0_113, %c0_114] : memref<128x128xf32, #tpu.memory_space<vmem>>, vector<128x128xf32>
    %cst_115 = arith.constant dense<0.000000e+00> : vector<8x128xf32>
    %344 = tpu.matmul %342, %343, %cst_115 {dimension_numbers = #tpu.dot_dimension_numbers<[1], [0], [0], [1], [0, 0, 1, 1], [], []>} : vector<8x128xf32>, vector<128x128xf32>, vector<8x128xf32> -> vector<8x128xf32>
    %c0_116 = arith.constant 0 : index
    %c0_117 = arith.constant 0 : index
    %345 = vector.load %arg9[%c0_116, %c0_117] : memref<1x128xf32, #tpu.memory_space<vmem>>, vector<1x128xf32>
    %346 = vector.broadcast %345 : vector<1x128xf32> to vector<8x128xf32>
    %347 = arith.addf %344, %346 : vector<8x128xf32>
    %c0_118 = arith.constant 0 : index
    %c0_119 = arith.constant 0 : index
    %348 = vector.load %arg3[%c0_118, %c0_119] : memref<8x8xf32, #tpu.memory_space<vmem>>, vector<8x8xf32>
    %cst_120 = arith.constant dense<0.000000e+00> : vector<8x128xf32>
    %349 = tpu.matmul %348, %347, %cst_120 {dimension_numbers = #tpu.dot_dimension_numbers<[1], [0], [0], [1], [0, 0, 1, 1], [], []>} : vector<8x8xf32>, vector<8x128xf32>, vector<8x128xf32> -> vector<8x128xf32>
    %c0_i32_121 = arith.constant 0 : i32
    %c8_i32_122 = arith.constant 8 : i32
    %350 = arith.muli %c0_i32_121, %c8_i32_122 : i32
    %351 = tpu.assume_multiple %350, 8 : i32
    %352 = arith.index_cast %351 : i32 to index
    %c0_123 = arith.constant 0 : index
    %353 = vector.load %arg18[%352, %c0_123] : memref<64x384xf32, #tpu.memory_space<vmem>>, vector<8x384xf32>
    %c0_124 = arith.constant 0 : index
    %c0_125 = arith.constant 0 : index
    %354 = vector.load %arg11[%c0_124, %c0_125] : memref<128x384xf32, #tpu.memory_space<vmem>>, vector<128x384xf32>
    %cst_126 = arith.constant dense<0.000000e+00> : vector<8x384xf32>
    %355 = tpu.matmul %349, %354, %cst_126 {dimension_numbers = #tpu.dot_dimension_numbers<[1], [0], [0], [1], [0, 0, 1, 1], [], []>} : vector<8x128xf32>, vector<128x384xf32>, vector<8x384xf32> -> vector<8x384xf32>
    %c0_127 = arith.constant 0 : index
    %c0_128 = arith.constant 0 : index
    %356 = vector.load %arg13[%c0_127, %c0_128] : memref<1x384xf32, #tpu.memory_space<vmem>>, vector<1x384xf32>
    %357 = vector.broadcast %356 : vector<1x384xf32> to vector<8x384xf32>
    %358 = arith.addf %355, %357 : vector<8x384xf32>
    %359 = vector.extract_strided_slice %353 {offsets = [0, 0], sizes = [8, 128], strides = [1, 1]} : vector<8x384xf32> to vector<8x128xf32>
    %360 = vector.extract_strided_slice %358 {offsets = [0, 0], sizes = [8, 128], strides = [1, 1]} : vector<8x384xf32> to vector<8x128xf32>
    %361 = arith.addf %359, %360 : vector<8x128xf32>
    %362 = arith.negf %361 : vector<8x128xf32>
    %363 = math.exp %362 : vector<8x128xf32>
    %cst_129 = arith.constant 1.000000e+00 : f32
    %364 = vector.broadcast %cst_129 : f32 to vector<8x128xf32>
    %365 = arith.addf %364, %363 : vector<8x128xf32>
    %366 = arith.divf %364, %365 : vector<8x128xf32>
    %367 = vector.extract_strided_slice %353 {offsets = [0, 128], sizes = [8, 128], strides = [1, 1]} : vector<8x384xf32> to vector<8x128xf32>
    %368 = vector.extract_strided_slice %358 {offsets = [0, 128], sizes = [8, 128], strides = [1, 1]} : vector<8x384xf32> to vector<8x128xf32>
    %369 = arith.addf %367, %368 : vector<8x128xf32>
    %370 = arith.negf %369 : vector<8x128xf32>
    %371 = math.exp %370 : vector<8x128xf32>
    %cst_130 = arith.constant 1.000000e+00 : f32
    %372 = vector.broadcast %cst_130 : f32 to vector<8x128xf32>
    %373 = arith.addf %372, %371 : vector<8x128xf32>
    %374 = arith.divf %372, %373 : vector<8x128xf32>
    %375 = vector.extract_strided_slice %353 {offsets = [0, 256], sizes = [8, 128], strides = [1, 1]} : vector<8x384xf32> to vector<8x128xf32>
    %376 = vector.extract_strided_slice %358 {offsets = [0, 256], sizes = [8, 128], strides = [1, 1]} : vector<8x384xf32> to vector<8x128xf32>
    %377 = arith.mulf %366, %376 : vector<8x128xf32>
    %378 = arith.addf %375, %377 : vector<8x128xf32>
    %379 = math.tanh %378 : vector<8x128xf32>
    %cst_131 = arith.constant 1.000000e+00 : f32
    %380 = vector.broadcast %cst_131 : f32 to vector<8x128xf32>
    %381 = arith.subf %380, %374 : vector<8x128xf32>
    %382 = arith.mulf %381, %379 : vector<8x128xf32>
    %383 = arith.mulf %374, %349 : vector<8x128xf32>
    %384 = arith.addf %382, %383 : vector<8x128xf32>
    %385 = arith.index_cast %351 : i32 to index
    %c0_132 = arith.constant 0 : index
    %386 = vector.load %arg19[%385, %c0_132] : memref<64x128xf32, #tpu.memory_space<vmem>>, vector<8x128xf32>
    tpu.vector_store %arg19[%385, %c0_132], %384 {strides = array<i32>} : memref<64x128xf32, #tpu.memory_space<vmem>>, vector<8x128xf32>,
    %c1_i32_133 = arith.constant 1 : i32
    %c8_i32_134 = arith.constant 8 : i32
    %387 = arith.muli %c1_i32_133, %c8_i32_134 : i32
    %388 = tpu.assume_multiple %387, 8 : i32
    %389 = arith.index_cast %388 : i32 to index
    %c0_135 = arith.constant 0 : index
    %390 = vector.load %arg18[%389, %c0_135] : memref<64x384xf32, #tpu.memory_space<vmem>>, vector<8x384xf32>
    %c0_136 = arith.constant 0 : index
    %c0_137 = arith.constant 0 : index
    %391 = vector.load %arg11[%c0_136, %c0_137] : memref<128x384xf32, #tpu.memory_space<vmem>>, vector<128x384xf32>
    %cst_138 = arith.constant dense<0.000000e+00> : vector<8x384xf32>
    %392 = tpu.matmul %384, %391, %cst_138 {dimension_numbers = #tpu.dot_dimension_numbers<[1], [0], [0], [1], [0, 0, 1, 1], [], []>} : vector<8x128xf32>, vector<128x384xf32>, vector<8x384xf32> -> vector<8x384xf32>
    %c0_139 = arith.constant 0 : index
    %c0_140 = arith.constant 0 : index
    %393 = vector.load %arg13[%c0_139, %c0_140] : memref<1x384xf32, #tpu.memory_space<vmem>>, vector<1x384xf32>
    %394 = vector.broadcast %393 : vector<1x384xf32> to vector<8x384xf32>
    %395 = arith.addf %392, %394 : vector<8x384xf32>
    %396 = vector.extract_strided_slice %390 {offsets = [0, 0], sizes = [8, 128], strides = [1, 1]} : vector<8x384xf32> to vector<8x128xf32>
    %397 = vector.extract_strided_slice %395 {offsets = [0, 0], sizes = [8, 128], strides = [1, 1]} : vector<8x384xf32> to vector<8x128xf32>
    %398 = arith.addf %396, %397 : vector<8x128xf32>
    %399 = arith.negf %398 : vector<8x128xf32>
    %400 = math.exp %399 : vector<8x128xf32>
    %cst_141 = arith.constant 1.000000e+00 : f32
    %401 = vector.broadcast %cst_141 : f32 to vector<8x128xf32>
    %402 = arith.addf %401, %400 : vector<8x128xf32>
    %403 = arith.divf %401, %402 : vector<8x128xf32>
    %404 = vector.extract_strided_slice %390 {offsets = [0, 128], sizes = [8, 128], strides = [1, 1]} : vector<8x384xf32> to vector<8x128xf32>
    %405 = vector.extract_strided_slice %395 {offsets = [0, 128], sizes = [8, 128], strides = [1, 1]} : vector<8x384xf32> to vector<8x128xf32>
    %406 = arith.addf %404, %405 : vector<8x128xf32>
    %407 = arith.negf %406 : vector<8x128xf32>
    %408 = math.exp %407 : vector<8x128xf32>
    %cst_142 = arith.constant 1.000000e+00 : f32
    %409 = vector.broadcast %cst_142 : f32 to vector<8x128xf32>
    %410 = arith.addf %409, %408 : vector<8x128xf32>
    %411 = arith.divf %409, %410 : vector<8x128xf32>
    %412 = vector.extract_strided_slice %390 {offsets = [0, 256], sizes = [8, 128], strides = [1, 1]} : vector<8x384xf32> to vector<8x128xf32>
    %413 = vector.extract_strided_slice %395 {offsets = [0, 256], sizes = [8, 128], strides = [1, 1]} : vector<8x384xf32> to vector<8x128xf32>
    %414 = arith.mulf %403, %413 : vector<8x128xf32>
    %415 = arith.addf %412, %414 : vector<8x128xf32>
    %416 = math.tanh %415 : vector<8x128xf32>
    %cst_143 = arith.constant 1.000000e+00 : f32
    %417 = vector.broadcast %cst_143 : f32 to vector<8x128xf32>
    %418 = arith.subf %417, %411 : vector<8x128xf32>
    %419 = arith.mulf %418, %416 : vector<8x128xf32>
    %420 = arith.mulf %411, %384 : vector<8x128xf32>
    %421 = arith.addf %419, %420 : vector<8x128xf32>
    %422 = arith.index_cast %388 : i32 to index
    %c0_144 = arith.constant 0 : index
    %423 = vector.load %arg19[%422, %c0_144] : memref<64x128xf32, #tpu.memory_space<vmem>>, vector<8x128xf32>
    tpu.vector_store %arg19[%422, %c0_144], %421 {strides = array<i32>} : memref<64x128xf32, #tpu.memory_space<vmem>>, vector<8x128xf32>,
    %c2_i32_145 = arith.constant 2 : i32
    %c8_i32_146 = arith.constant 8 : i32
    %424 = arith.muli %c2_i32_145, %c8_i32_146 : i32
    %425 = tpu.assume_multiple %424, 8 : i32
    %426 = arith.index_cast %425 : i32 to index
    %c0_147 = arith.constant 0 : index
    %427 = vector.load %arg18[%426, %c0_147] : memref<64x384xf32, #tpu.memory_space<vmem>>, vector<8x384xf32>
    %c0_148 = arith.constant 0 : index
    %c0_149 = arith.constant 0 : index
    %428 = vector.load %arg11[%c0_148, %c0_149] : memref<128x384xf32, #tpu.memory_space<vmem>>, vector<128x384xf32>
    %cst_150 = arith.constant dense<0.000000e+00> : vector<8x384xf32>
    %429 = tpu.matmul %421, %428, %cst_150 {dimension_numbers = #tpu.dot_dimension_numbers<[1], [0], [0], [1], [0, 0, 1, 1], [], []>} : vector<8x128xf32>, vector<128x384xf32>, vector<8x384xf32> -> vector<8x384xf32>
    %c0_151 = arith.constant 0 : index
    %c0_152 = arith.constant 0 : index
    %430 = vector.load %arg13[%c0_151, %c0_152] : memref<1x384xf32, #tpu.memory_space<vmem>>, vector<1x384xf32>
    %431 = vector.broadcast %430 : vector<1x384xf32> to vector<8x384xf32>
    %432 = arith.addf %429, %431 : vector<8x384xf32>
    %433 = vector.extract_strided_slice %427 {offsets = [0, 0], sizes = [8, 128], strides = [1, 1]} : vector<8x384xf32> to vector<8x128xf32>
    %434 = vector.extract_strided_slice %432 {offsets = [0, 0], sizes = [8, 128], strides = [1, 1]} : vector<8x384xf32> to vector<8x128xf32>
    %435 = arith.addf %433, %434 : vector<8x128xf32>
    %436 = arith.negf %435 : vector<8x128xf32>
    %437 = math.exp %436 : vector<8x128xf32>
    %cst_153 = arith.constant 1.000000e+00 : f32
    %438 = vector.broadcast %cst_153 : f32 to vector<8x128xf32>
    %439 = arith.addf %438, %437 : vector<8x128xf32>
    %440 = arith.divf %438, %439 : vector<8x128xf32>
    %441 = vector.extract_strided_slice %427 {offsets = [0, 128], sizes = [8, 128], strides = [1, 1]} : vector<8x384xf32> to vector<8x128xf32>
    %442 = vector.extract_strided_slice %432 {offsets = [0, 128], sizes = [8, 128], strides = [1, 1]} : vector<8x384xf32> to vector<8x128xf32>
    %443 = arith.addf %441, %442 : vector<8x128xf32>
    %444 = arith.negf %443 : vector<8x128xf32>
    %445 = math.exp %444 : vector<8x128xf32>
    %cst_154 = arith.constant 1.000000e+00 : f32
    %446 = vector.broadcast %cst_154 : f32 to vector<8x128xf32>
    %447 = arith.addf %446, %445 : vector<8x128xf32>
    %448 = arith.divf %446, %447 : vector<8x128xf32>
    %449 = vector.extract_strided_slice %427 {offsets = [0, 256], sizes = [8, 128], strides = [1, 1]} : vector<8x384xf32> to vector<8x128xf32>
    %450 = vector.extract_strided_slice %432 {offsets = [0, 256], sizes = [8, 128], strides = [1, 1]} : vector<8x384xf32> to vector<8x128xf32>
    %451 = arith.mulf %440, %450 : vector<8x128xf32>
    %452 = arith.addf %449, %451 : vector<8x128xf32>
    %453 = math.tanh %452 : vector<8x128xf32>
    %cst_155 = arith.constant 1.000000e+00 : f32
    %454 = vector.broadcast %cst_155 : f32 to vector<8x128xf32>
    %455 = arith.subf %454, %448 : vector<8x128xf32>
    %456 = arith.mulf %455, %453 : vector<8x128xf32>
    %457 = arith.mulf %448, %421 : vector<8x128xf32>
    %458 = arith.addf %456, %457 : vector<8x128xf32>
    %459 = arith.index_cast %425 : i32 to index
    %c0_156 = arith.constant 0 : index
    %460 = vector.load %arg19[%459, %c0_156] : memref<64x128xf32, #tpu.memory_space<vmem>>, vector<8x128xf32>
    tpu.vector_store %arg19[%459, %c0_156], %458 {strides = array<i32>} : memref<64x128xf32, #tpu.memory_space<vmem>>, vector<8x128xf32>,
    %c3_i32_157 = arith.constant 3 : i32
    %c8_i32_158 = arith.constant 8 : i32
    %461 = arith.muli %c3_i32_157, %c8_i32_158 : i32
    %462 = tpu.assume_multiple %461, 8 : i32
    %463 = arith.index_cast %462 : i32 to index
    %c0_159 = arith.constant 0 : index
    %464 = vector.load %arg18[%463, %c0_159] : memref<64x384xf32, #tpu.memory_space<vmem>>, vector<8x384xf32>
    %c0_160 = arith.constant 0 : index
    %c0_161 = arith.constant 0 : index
    %465 = vector.load %arg11[%c0_160, %c0_161] : memref<128x384xf32, #tpu.memory_space<vmem>>, vector<128x384xf32>
    %cst_162 = arith.constant dense<0.000000e+00> : vector<8x384xf32>
    %466 = tpu.matmul %458, %465, %cst_162 {dimension_numbers = #tpu.dot_dimension_numbers<[1], [0], [0], [1], [0, 0, 1, 1], [], []>} : vector<8x128xf32>, vector<128x384xf32>, vector<8x384xf32> -> vector<8x384xf32>
    %c0_163 = arith.constant 0 : index
    %c0_164 = arith.constant 0 : index
    %467 = vector.load %arg13[%c0_163, %c0_164] : memref<1x384xf32, #tpu.memory_space<vmem>>, vector<1x384xf32>
    %468 = vector.broadcast %467 : vector<1x384xf32> to vector<8x384xf32>
    %469 = arith.addf %466, %468 : vector<8x384xf32>
    %470 = vector.extract_strided_slice %464 {offsets = [0, 0], sizes = [8, 128], strides = [1, 1]} : vector<8x384xf32> to vector<8x128xf32>
    %471 = vector.extract_strided_slice %469 {offsets = [0, 0], sizes = [8, 128], strides = [1, 1]} : vector<8x384xf32> to vector<8x128xf32>
    %472 = arith.addf %470, %471 : vector<8x128xf32>
    %473 = arith.negf %472 : vector<8x128xf32>
    %474 = math.exp %473 : vector<8x128xf32>
    %cst_165 = arith.constant 1.000000e+00 : f32
    %475 = vector.broadcast %cst_165 : f32 to vector<8x128xf32>
    %476 = arith.addf %475, %474 : vector<8x128xf32>
    %477 = arith.divf %475, %476 : vector<8x128xf32>
    %478 = vector.extract_strided_slice %464 {offsets = [0, 128], sizes = [8, 128], strides = [1, 1]} : vector<8x384xf32> to vector<8x128xf32>
    %479 = vector.extract_strided_slice %469 {offsets = [0, 128], sizes = [8, 128], strides = [1, 1]} : vector<8x384xf32> to vector<8x128xf32>
    %480 = arith.addf %478, %479 : vector<8x128xf32>
    %481 = arith.negf %480 : vector<8x128xf32>
    %482 = math.exp %481 : vector<8x128xf32>
    %cst_166 = arith.constant 1.000000e+00 : f32
    %483 = vector.broadcast %cst_166 : f32 to vector<8x128xf32>
    %484 = arith.addf %483, %482 : vector<8x128xf32>
    %485 = arith.divf %483, %484 : vector<8x128xf32>
    %486 = vector.extract_strided_slice %464 {offsets = [0, 256], sizes = [8, 128], strides = [1, 1]} : vector<8x384xf32> to vector<8x128xf32>
    %487 = vector.extract_strided_slice %469 {offsets = [0, 256], sizes = [8, 128], strides = [1, 1]} : vector<8x384xf32> to vector<8x128xf32>
    %488 = arith.mulf %477, %487 : vector<8x128xf32>
    %489 = arith.addf %486, %488 : vector<8x128xf32>
    %490 = math.tanh %489 : vector<8x128xf32>
    %cst_167 = arith.constant 1.000000e+00 : f32
    %491 = vector.broadcast %cst_167 : f32 to vector<8x128xf32>
    %492 = arith.subf %491, %485 : vector<8x128xf32>
    %493 = arith.mulf %492, %490 : vector<8x128xf32>
    %494 = arith.mulf %485, %458 : vector<8x128xf32>
    %495 = arith.addf %493, %494 : vector<8x128xf32>
    %496 = arith.index_cast %462 : i32 to index
    %c0_168 = arith.constant 0 : index
    %497 = vector.load %arg19[%496, %c0_168] : memref<64x128xf32, #tpu.memory_space<vmem>>, vector<8x128xf32>
    tpu.vector_store %arg19[%496, %c0_168], %495 {strides = array<i32>} : memref<64x128xf32, #tpu.memory_space<vmem>>, vector<8x128xf32>,
    %c4_i32_169 = arith.constant 4 : i32
    %c8_i32_170 = arith.constant 8 : i32
    %498 = arith.muli %c4_i32_169, %c8_i32_170 : i32
    %499 = tpu.assume_multiple %498, 8 : i32
    %500 = arith.index_cast %499 : i32 to index
    %c0_171 = arith.constant 0 : index
    %501 = vector.load %arg18[%500, %c0_171] : memref<64x384xf32, #tpu.memory_space<vmem>>, vector<8x384xf32>
    %c0_172 = arith.constant 0 : index
    %c0_173 = arith.constant 0 : index
    %502 = vector.load %arg11[%c0_172, %c0_173] : memref<128x384xf32, #tpu.memory_space<vmem>>, vector<128x384xf32>
    %cst_174 = arith.constant dense<0.000000e+00> : vector<8x384xf32>
    %503 = tpu.matmul %495, %502, %cst_174 {dimension_numbers = #tpu.dot_dimension_numbers<[1], [0], [0], [1], [0, 0, 1, 1], [], []>} : vector<8x128xf32>, vector<128x384xf32>, vector<8x384xf32> -> vector<8x384xf32>
    %c0_175 = arith.constant 0 : index
    %c0_176 = arith.constant 0 : index
    %504 = vector.load %arg13[%c0_175, %c0_176] : memref<1x384xf32, #tpu.memory_space<vmem>>, vector<1x384xf32>
    %505 = vector.broadcast %504 : vector<1x384xf32> to vector<8x384xf32>
    %506 = arith.addf %503, %505 : vector<8x384xf32>
    %507 = vector.extract_strided_slice %501 {offsets = [0, 0], sizes = [8, 128], strides = [1, 1]} : vector<8x384xf32> to vector<8x128xf32>
    %508 = vector.extract_strided_slice %506 {offsets = [0, 0], sizes = [8, 128], strides = [1, 1]} : vector<8x384xf32> to vector<8x128xf32>
    %509 = arith.addf %507, %508 : vector<8x128xf32>
    %510 = arith.negf %509 : vector<8x128xf32>
    %511 = math.exp %510 : vector<8x128xf32>
    %cst_177 = arith.constant 1.000000e+00 : f32
    %512 = vector.broadcast %cst_177 : f32 to vector<8x128xf32>
    %513 = arith.addf %512, %511 : vector<8x128xf32>
    %514 = arith.divf %512, %513 : vector<8x128xf32>
    %515 = vector.extract_strided_slice %501 {offsets = [0, 128], sizes = [8, 128], strides = [1, 1]} : vector<8x384xf32> to vector<8x128xf32>
    %516 = vector.extract_strided_slice %506 {offsets = [0, 128], sizes = [8, 128], strides = [1, 1]} : vector<8x384xf32> to vector<8x128xf32>
    %517 = arith.addf %515, %516 : vector<8x128xf32>
    %518 = arith.negf %517 : vector<8x128xf32>
    %519 = math.exp %518 : vector<8x128xf32>
    %cst_178 = arith.constant 1.000000e+00 : f32
    %520 = vector.broadcast %cst_178 : f32 to vector<8x128xf32>
    %521 = arith.addf %520, %519 : vector<8x128xf32>
    %522 = arith.divf %520, %521 : vector<8x128xf32>
    %523 = vector.extract_strided_slice %501 {offsets = [0, 256], sizes = [8, 128], strides = [1, 1]} : vector<8x384xf32> to vector<8x128xf32>
    %524 = vector.extract_strided_slice %506 {offsets = [0, 256], sizes = [8, 128], strides = [1, 1]} : vector<8x384xf32> to vector<8x128xf32>
    %525 = arith.mulf %514, %524 : vector<8x128xf32>
    %526 = arith.addf %523, %525 : vector<8x128xf32>
    %527 = math.tanh %526 : vector<8x128xf32>
    %cst_179 = arith.constant 1.000000e+00 : f32
    %528 = vector.broadcast %cst_179 : f32 to vector<8x128xf32>
    %529 = arith.subf %528, %522 : vector<8x128xf32>
    %530 = arith.mulf %529, %527 : vector<8x128xf32>
    %531 = arith.mulf %522, %495 : vector<8x128xf32>
    %532 = arith.addf %530, %531 : vector<8x128xf32>
    %533 = arith.index_cast %499 : i32 to index
    %c0_180 = arith.constant 0 : index
    %534 = vector.load %arg19[%533, %c0_180] : memref<64x128xf32, #tpu.memory_space<vmem>>, vector<8x128xf32>
    tpu.vector_store %arg19[%533, %c0_180], %532 {strides = array<i32>} : memref<64x128xf32, #tpu.memory_space<vmem>>, vector<8x128xf32>,
    %c5_i32_181 = arith.constant 5 : i32
    %c8_i32_182 = arith.constant 8 : i32
    %535 = arith.muli %c5_i32_181, %c8_i32_182 : i32
    %536 = tpu.assume_multiple %535, 8 : i32
    %537 = arith.index_cast %536 : i32 to index
    %c0_183 = arith.constant 0 : index
    %538 = vector.load %arg18[%537, %c0_183] : memref<64x384xf32, #tpu.memory_space<vmem>>, vector<8x384xf32>
    %c0_184 = arith.constant 0 : index
    %c0_185 = arith.constant 0 : index
    %539 = vector.load %arg11[%c0_184, %c0_185] : memref<128x384xf32, #tpu.memory_space<vmem>>, vector<128x384xf32>
    %cst_186 = arith.constant dense<0.000000e+00> : vector<8x384xf32>
    %540 = tpu.matmul %532, %539, %cst_186 {dimension_numbers = #tpu.dot_dimension_numbers<[1], [0], [0], [1], [0, 0, 1, 1], [], []>} : vector<8x128xf32>, vector<128x384xf32>, vector<8x384xf32> -> vector<8x384xf32>
    %c0_187 = arith.constant 0 : index
    %c0_188 = arith.constant 0 : index
    %541 = vector.load %arg13[%c0_187, %c0_188] : memref<1x384xf32, #tpu.memory_space<vmem>>, vector<1x384xf32>
    %542 = vector.broadcast %541 : vector<1x384xf32> to vector<8x384xf32>
    %543 = arith.addf %540, %542 : vector<8x384xf32>
    %544 = vector.extract_strided_slice %538 {offsets = [0, 0], sizes = [8, 128], strides = [1, 1]} : vector<8x384xf32> to vector<8x128xf32>
    %545 = vector.extract_strided_slice %543 {offsets = [0, 0], sizes = [8, 128], strides = [1, 1]} : vector<8x384xf32> to vector<8x128xf32>
    %546 = arith.addf %544, %545 : vector<8x128xf32>
    %547 = arith.negf %546 : vector<8x128xf32>
    %548 = math.exp %547 : vector<8x128xf32>
    %cst_189 = arith.constant 1.000000e+00 : f32
    %549 = vector.broadcast %cst_189 : f32 to vector<8x128xf32>
    %550 = arith.addf %549, %548 : vector<8x128xf32>
    %551 = arith.divf %549, %550 : vector<8x128xf32>
    %552 = vector.extract_strided_slice %538 {offsets = [0, 128], sizes = [8, 128], strides = [1, 1]} : vector<8x384xf32> to vector<8x128xf32>
    %553 = vector.extract_strided_slice %543 {offsets = [0, 128], sizes = [8, 128], strides = [1, 1]} : vector<8x384xf32> to vector<8x128xf32>
    %554 = arith.addf %552, %553 : vector<8x128xf32>
    %555 = arith.negf %554 : vector<8x128xf32>
    %556 = math.exp %555 : vector<8x128xf32>
    %cst_190 = arith.constant 1.000000e+00 : f32
    %557 = vector.broadcast %cst_190 : f32 to vector<8x128xf32>
    %558 = arith.addf %557, %556 : vector<8x128xf32>
    %559 = arith.divf %557, %558 : vector<8x128xf32>
    %560 = vector.extract_strided_slice %538 {offsets = [0, 256], sizes = [8, 128], strides = [1, 1]} : vector<8x384xf32> to vector<8x128xf32>
    %561 = vector.extract_strided_slice %543 {offsets = [0, 256], sizes = [8, 128], strides = [1, 1]} : vector<8x384xf32> to vector<8x128xf32>
    %562 = arith.mulf %551, %561 : vector<8x128xf32>
    %563 = arith.addf %560, %562 : vector<8x128xf32>
    %564 = math.tanh %563 : vector<8x128xf32>
    %cst_191 = arith.constant 1.000000e+00 : f32
    %565 = vector.broadcast %cst_191 : f32 to vector<8x128xf32>
    %566 = arith.subf %565, %559 : vector<8x128xf32>
    %567 = arith.mulf %566, %564 : vector<8x128xf32>
    %568 = arith.mulf %559, %532 : vector<8x128xf32>
    %569 = arith.addf %567, %568 : vector<8x128xf32>
    %570 = arith.index_cast %536 : i32 to index
    %c0_192 = arith.constant 0 : index
    %571 = vector.load %arg19[%570, %c0_192] : memref<64x128xf32, #tpu.memory_space<vmem>>, vector<8x128xf32>
    tpu.vector_store %arg19[%570, %c0_192], %569 {strides = array<i32>} : memref<64x128xf32, #tpu.memory_space<vmem>>, vector<8x128xf32>,
    %c6_i32_193 = arith.constant 6 : i32
    %c8_i32_194 = arith.constant 8 : i32
    %572 = arith.muli %c6_i32_193, %c8_i32_194 : i32
    %573 = tpu.assume_multiple %572, 8 : i32
    %574 = arith.index_cast %573 : i32 to index
    %c0_195 = arith.constant 0 : index
    %575 = vector.load %arg18[%574, %c0_195] : memref<64x384xf32, #tpu.memory_space<vmem>>, vector<8x384xf32>
    %c0_196 = arith.constant 0 : index
    %c0_197 = arith.constant 0 : index
    %576 = vector.load %arg11[%c0_196, %c0_197] : memref<128x384xf32, #tpu.memory_space<vmem>>, vector<128x384xf32>
    %cst_198 = arith.constant dense<0.000000e+00> : vector<8x384xf32>
    %577 = tpu.matmul %569, %576, %cst_198 {dimension_numbers = #tpu.dot_dimension_numbers<[1], [0], [0], [1], [0, 0, 1, 1], [], []>} : vector<8x128xf32>, vector<128x384xf32>, vector<8x384xf32> -> vector<8x384xf32>
    %c0_199 = arith.constant 0 : index
    %c0_200 = arith.constant 0 : index
    %578 = vector.load %arg13[%c0_199, %c0_200] : memref<1x384xf32, #tpu.memory_space<vmem>>, vector<1x384xf32>
    %579 = vector.broadcast %578 : vector<1x384xf32> to vector<8x384xf32>
    %580 = arith.addf %577, %579 : vector<8x384xf32>
    %581 = vector.extract_strided_slice %575 {offsets = [0, 0], sizes = [8, 128], strides = [1, 1]} : vector<8x384xf32> to vector<8x128xf32>
    %582 = vector.extract_strided_slice %580 {offsets = [0, 0], sizes = [8, 128], strides = [1, 1]} : vector<8x384xf32> to vector<8x128xf32>
    %583 = arith.addf %581, %582 : vector<8x128xf32>
    %584 = arith.negf %583 : vector<8x128xf32>
    %585 = math.exp %584 : vector<8x128xf32>
    %cst_201 = arith.constant 1.000000e+00 : f32
    %586 = vector.broadcast %cst_201 : f32 to vector<8x128xf32>
    %587 = arith.addf %586, %585 : vector<8x128xf32>
    %588 = arith.divf %586, %587 : vector<8x128xf32>
    %589 = vector.extract_strided_slice %575 {offsets = [0, 128], sizes = [8, 128], strides = [1, 1]} : vector<8x384xf32> to vector<8x128xf32>
    %590 = vector.extract_strided_slice %580 {offsets = [0, 128], sizes = [8, 128], strides = [1, 1]} : vector<8x384xf32> to vector<8x128xf32>
    %591 = arith.addf %589, %590 : vector<8x128xf32>
    %592 = arith.negf %591 : vector<8x128xf32>
    %593 = math.exp %592 : vector<8x128xf32>
    %cst_202 = arith.constant 1.000000e+00 : f32
    %594 = vector.broadcast %cst_202 : f32 to vector<8x128xf32>
    %595 = arith.addf %594, %593 : vector<8x128xf32>
    %596 = arith.divf %594, %595 : vector<8x128xf32>
    %597 = vector.extract_strided_slice %575 {offsets = [0, 256], sizes = [8, 128], strides = [1, 1]} : vector<8x384xf32> to vector<8x128xf32>
    %598 = vector.extract_strided_slice %580 {offsets = [0, 256], sizes = [8, 128], strides = [1, 1]} : vector<8x384xf32> to vector<8x128xf32>
    %599 = arith.mulf %588, %598 : vector<8x128xf32>
    %600 = arith.addf %597, %599 : vector<8x128xf32>
    %601 = math.tanh %600 : vector<8x128xf32>
    %cst_203 = arith.constant 1.000000e+00 : f32
    %602 = vector.broadcast %cst_203 : f32 to vector<8x128xf32>
    %603 = arith.subf %602, %596 : vector<8x128xf32>
    %604 = arith.mulf %603, %601 : vector<8x128xf32>
    %605 = arith.mulf %596, %569 : vector<8x128xf32>
    %606 = arith.addf %604, %605 : vector<8x128xf32>
    %607 = arith.index_cast %573 : i32 to index
    %c0_204 = arith.constant 0 : index
    %608 = vector.load %arg19[%607, %c0_204] : memref<64x128xf32, #tpu.memory_space<vmem>>, vector<8x128xf32>
    tpu.vector_store %arg19[%607, %c0_204], %606 {strides = array<i32>} : memref<64x128xf32, #tpu.memory_space<vmem>>, vector<8x128xf32>,
    %c7_i32_205 = arith.constant 7 : i32
    %c8_i32_206 = arith.constant 8 : i32
    %609 = arith.muli %c7_i32_205, %c8_i32_206 : i32
    %610 = tpu.assume_multiple %609, 8 : i32
    %611 = arith.index_cast %610 : i32 to index
    %c0_207 = arith.constant 0 : index
    %612 = vector.load %arg18[%611, %c0_207] : memref<64x384xf32, #tpu.memory_space<vmem>>, vector<8x384xf32>
    %c0_208 = arith.constant 0 : index
    %c0_209 = arith.constant 0 : index
    %613 = vector.load %arg11[%c0_208, %c0_209] : memref<128x384xf32, #tpu.memory_space<vmem>>, vector<128x384xf32>
    %cst_210 = arith.constant dense<0.000000e+00> : vector<8x384xf32>
    %614 = tpu.matmul %606, %613, %cst_210 {dimension_numbers = #tpu.dot_dimension_numbers<[1], [0], [0], [1], [0, 0, 1, 1], [], []>} : vector<8x128xf32>, vector<128x384xf32>, vector<8x384xf32> -> vector<8x384xf32>
    %c0_211 = arith.constant 0 : index
    %c0_212 = arith.constant 0 : index
    %615 = vector.load %arg13[%c0_211, %c0_212] : memref<1x384xf32, #tpu.memory_space<vmem>>, vector<1x384xf32>
    %616 = vector.broadcast %615 : vector<1x384xf32> to vector<8x384xf32>
    %617 = arith.addf %614, %616 : vector<8x384xf32>
    %618 = vector.extract_strided_slice %612 {offsets = [0, 0], sizes = [8, 128], strides = [1, 1]} : vector<8x384xf32> to vector<8x128xf32>
    %619 = vector.extract_strided_slice %617 {offsets = [0, 0], sizes = [8, 128], strides = [1, 1]} : vector<8x384xf32> to vector<8x128xf32>
    %620 = arith.addf %618, %619 : vector<8x128xf32>
    %621 = arith.negf %620 : vector<8x128xf32>
    %622 = math.exp %621 : vector<8x128xf32>
    %cst_213 = arith.constant 1.000000e+00 : f32
    %623 = vector.broadcast %cst_213 : f32 to vector<8x128xf32>
    %624 = arith.addf %623, %622 : vector<8x128xf32>
    %625 = arith.divf %623, %624 : vector<8x128xf32>
    %626 = vector.extract_strided_slice %612 {offsets = [0, 128], sizes = [8, 128], strides = [1, 1]} : vector<8x384xf32> to vector<8x128xf32>
    %627 = vector.extract_strided_slice %617 {offsets = [0, 128], sizes = [8, 128], strides = [1, 1]} : vector<8x384xf32> to vector<8x128xf32>
    %628 = arith.addf %626, %627 : vector<8x128xf32>
    %629 = arith.negf %628 : vector<8x128xf32>
    %630 = math.exp %629 : vector<8x128xf32>
    %cst_214 = arith.constant 1.000000e+00 : f32
    %631 = vector.broadcast %cst_214 : f32 to vector<8x128xf32>
    %632 = arith.addf %631, %630 : vector<8x128xf32>
    %633 = arith.divf %631, %632 : vector<8x128xf32>
    %634 = vector.extract_strided_slice %612 {offsets = [0, 256], sizes = [8, 128], strides = [1, 1]} : vector<8x384xf32> to vector<8x128xf32>
    %635 = vector.extract_strided_slice %617 {offsets = [0, 256], sizes = [8, 128], strides = [1, 1]} : vector<8x384xf32> to vector<8x128xf32>
    %636 = arith.mulf %625, %635 : vector<8x128xf32>
    %637 = arith.addf %634, %636 : vector<8x128xf32>
    %638 = math.tanh %637 : vector<8x128xf32>
    %cst_215 = arith.constant 1.000000e+00 : f32
    %639 = vector.broadcast %cst_215 : f32 to vector<8x128xf32>
    %640 = arith.subf %639, %633 : vector<8x128xf32>
    %641 = arith.mulf %640, %638 : vector<8x128xf32>
    %642 = arith.mulf %633, %606 : vector<8x128xf32>
    %643 = arith.addf %641, %642 : vector<8x128xf32>
    %644 = arith.index_cast %610 : i32 to index
    %c0_216 = arith.constant 0 : index
    %645 = vector.load %arg19[%644, %c0_216] : memref<64x128xf32, #tpu.memory_space<vmem>>, vector<8x128xf32>
    tpu.vector_store %arg19[%644, %c0_216], %643 {strides = array<i32>} : memref<64x128xf32, #tpu.memory_space<vmem>>, vector<8x128xf32>,
    %c8_i32_217 = arith.constant 8 : i32
    %c0_218 = arith.constant 0 : index
    %c0_219 = arith.constant 0 : index
    %646 = vector.load %arg19[%c0_218, %c0_219] : memref<64x128xf32, #tpu.memory_space<vmem>>, vector<64x128xf32>
    %c0_220 = arith.constant 0 : index
    %c0_221 = arith.constant 0 : index
    %647 = vector.load %arg14[%c0_220, %c0_221] : memref<128x128xf32, #tpu.memory_space<vmem>>, vector<128x128xf32>
    %cst_222 = arith.constant dense<0.000000e+00> : vector<64x128xf32>
    %648 = tpu.matmul %646, %647, %cst_222 {dimension_numbers = #tpu.dot_dimension_numbers<[1], [0], [0], [1], [0, 0, 1, 1], [], []>} : vector<64x128xf32>, vector<128x128xf32>, vector<64x128xf32> -> vector<64x128xf32>
    %c0_223 = arith.constant 0 : index
    %c0_224 = arith.constant 0 : index
    %649 = vector.load %arg15[%c0_223, %c0_224] : memref<1x128xf32, #tpu.memory_space<vmem>>, vector<1x128xf32>
    %650 = vector.broadcast %649 : vector<1x128xf32> to vector<64x128xf32>
    %651 = arith.addf %648, %650 : vector<64x128xf32>
    %c0_225 = arith.constant 0 : index
    %c0_226 = arith.constant 0 : index
    %652 = vector.load %arg16[%c0_225, %c0_226] : memref<64x128xf32, #tpu.memory_space<vmem>>, vector<64x128xf32>
    tpu.vector_store %arg16[%c0_225, %c0_226], %651 {strides = array<i32>} : memref<64x128xf32, #tpu.memory_space<vmem>>, vector<64x128xf32>,
    return
  }
}

</mosaic_0001>

<llo_original>
// kernel: tpu_custom_call.1
$region0: #{tpu_custom_call.1}
  #allocation0 [shape = 'u32[]', space=smem, size = 0x4, offset = 0x4, fixed_abs, tag = 'smem constant byte address 0x4 - core index']
  #allocation1 [shape = 'u32[144,128]{1,0:T(1,128)}', space=vmem, size = 0x12000, scoped, tag = 'internal scratch']
  #allocation2 [shape = 'f32[64,384]{1,0:T(8,128)}', space=vmem, size = 0x18000, scoped, tag = 'scratch operand']
  #allocation3 [shape = 'f32[64,384]{1,0:T(8,128)}', space=vmem, size = 0x18000, scoped, tag = 'scratch operand']
  #allocation4 [shape = 'f32[64,128]{1,0:T(8,128)}', space=vmem, size = 0x8000, scoped, tag = 'scratch operand']
  %s0 = inlined_call_operand.hbm [shape: f32[64,128], index: 0, kind: input, shape index: {}]
  %s1 = inlined_call_operand.hbm [shape: f32[64,128], index: 1, kind: input, shape index: {}]
  %s2 = inlined_call_operand.vmem [shape: s32[8,1], index: 2, kind: input, shape index: {}]
  %s3 = inlined_call_operand.vmem [shape: f32[8,8], index: 3, kind: input, shape index: {}]
  %s4 = inlined_call_operand.hbm [shape: f32[128,384], index: 4, kind: input, shape index: {}]
  %s5 = inlined_call_operand.hbm [shape: f32[128,384], index: 5, kind: input, shape index: {}]
  %s6 = inlined_call_operand.vmem [shape: f32[1,384], index: 6, kind: input, shape index: {}]
  %s7 = inlined_call_operand.vmem [shape: f32[1,384], index: 7, kind: input, shape index: {}]
  %s8 = inlined_call_operand.hbm [shape: f32[128,128], index: 8, kind: input, shape index: {}]
  %s9 = inlined_call_operand.vmem [shape: f32[1,128], index: 9, kind: input, shape index: {}]
  %s10 = inlined_call_operand.hbm [shape: f32[128,384], index: 10, kind: input, shape index: {}]
  %s11 = inlined_call_operand.hbm [shape: f32[128,384], index: 11, kind: input, shape index: {}]
  %s12 = inlined_call_operand.vmem [shape: f32[1,384], index: 12, kind: input, shape index: {}]
  %s13 = inlined_call_operand.vmem [shape: f32[1,384], index: 13, kind: input, shape index: {}]
  %s14 = inlined_call_operand.hbm [shape: f32[128,128], index: 14, kind: input, shape index: {}]
  %s15 = inlined_call_operand.vmem [shape: f32[1,128], index: 15, kind: input, shape index: {}]
  %s16 = inlined_call_operand.hbm [shape: f32[64,128], index: 16, kind: output, shape index: {}]
  %s17 = sld [smem:[#allocation0]]
  $region106: #{tpu_custom_call.1} parent=0
    _
  %s19 = ssub.s32 1, %s17
  %s20 = scalar_select 0, %s19, %s17
  $region1: #{tpu_custom_call.1} parent=0
    #allocation5 [shape = 'u8[32768]{0}', space=vmem, size = 0x8000, scoped, tag = 'input window, operand 0, single buffered']
    #allocation6 [shape = 's32[1]{0}', space=sflag, size = 0x4, scoped, tag = 'scoped memory for tpu_custom_call.1']
    #allocation7 [shape = 's32[1]{0}', space=sflag, size = 0x4, scoped, tag = 'scoped memory for tpu_custom_call.1']
    #allocation8 [shape = 'u8[32768]{0}', space=vmem, size = 0x8000, scoped, tag = 'input window, operand 1, single buffered']
    #allocation9 [shape = 's32[1]{0}', space=sflag, size = 0x4, scoped, tag = 'scoped memory for tpu_custom_call.1']
    #allocation10 [shape = 'u8[196608]{0}', space=vmem, size = 0x30000, scoped, tag = 'input window, operand 4, single buffered']
    #allocation11 [shape = 'u8[196608]{0}', space=vmem, size = 0x30000, scoped, tag = 'input window, operand 5, single buffered']
    #allocation12 [shape = 's32[1]{0}', space=sflag, size = 0x4, scoped, tag = 'scoped memory for tpu_custom_call.1']
    #allocation13 [shape = 'u8[65536]{0}', space=vmem, size = 0x10000, scoped, tag = 'input window, operand 8, single buffered']
    #allocation14 [shape = 'u8[196608]{0}', space=vmem, size = 0x30000, scoped, tag = 'input window, operand 10, single buffered']
    #allocation15 [shape = 's32[1]{0}', space=sflag, size = 0x4, scoped, tag = 'scoped memory for tpu_custom_call.1']
    #allocation16 [shape = 'u8[196608]{0}', space=vmem, size = 0x30000, scoped, tag = 'input window, operand 11, single buffered']
    #allocation17 [shape = 'u8[65536]{0}', space=vmem, size = 0x10000, scoped, tag = 'input window, operand 14, single buffered']
    #allocation18 [shape = 's32[1]{0}', space=sflag, size = 0x4, scoped, tag = 'scoped memory for tpu_custom_call.1']
    #allocation19 [shape = 'u8[32768]{0}', space=vmem, size = 0x8000, scoped, tag = 'output window, operand 0, single buffered']
    %21 = vsyncpa [#allocation6], 0
    %22 = vsyncpa [#allocation9], 0
    %23 = vsyncpa [#allocation12], 0
    %24 = vsyncpa [#allocation15], 0
    %25 = vsyncpa [#allocation18], 0
    %26 = vsyncpa [#allocation7], 0
    // Predicated region
    $region2: #{tpu_custom_call.1} parent=1 // pred_check
      _
    $region3: #{tpu_custom_call.1} parent=1 // pred_check_branch
      %28 = sbr.rel (0) target = $region5
    $region4: #{tpu_custom_call.1} parent=1 // pred_region
      %s30 = ssub.s32 1024, 1024
      %31 = vsyncadd [#allocation6], %s30
      %s32 = sshll.u32 [#allocation5], 4
      %s33 = int_to_ptr.vmem [resolvable:$true] %s32
      %38 = dma.hbm_to_vmem [thread:$0]  %s0, 1024, %s33, [#allocation6], 128, 128, 8
    $region5: #{tpu_custom_call.1} parent=1 // pred_fallthru
      _
    // Predicated region
    $region6: #{tpu_custom_call.1} parent=1 // pred_check
      _
    $region7: #{tpu_custom_call.1} parent=1 // pred_check_branch
      %40 = sbr.rel (0) target = $region9
    $region8: #{tpu_custom_call.1} parent=1 // pred_region
      %s42 = ssub.s32 1024, 1024
      %43 = vsyncadd [#allocation9], %s42
      %s44 = sshll.u32 [#allocation8], 4
      %s45 = int_to_ptr.vmem [resolvable:$true] %s44
      %50 = dma.hbm_to_vmem [thread:$0]  %s1, 1024, %s45, [#allocation9], 128, 128, 8
    $region9: #{tpu_custom_call.1} parent=1 // pred_fallthru
      _
    // Predicated region
    $region10: #{tpu_custom_call.1} parent=1 // pred_check
      _
    $region11: #{tpu_custom_call.1} parent=1 // pred_check_branch
      %52 = sbr.rel (0) target = $region13
    $region12: #{tpu_custom_call.1} parent=1 // pred_region
      _
    $region13: #{tpu_custom_call.1} parent=1 // pred_fallthru
      _
    // Predicated region
    $region14: #{tpu_custom_call.1} parent=1 // pred_check
      _
    $region15: #{tpu_custom_call.1} parent=1 // pred_check_branch
      %54 = sbr.rel (0) target = $region17
    $region16: #{tpu_custom_call.1} parent=1 // pred_region
      _
    $region17: #{tpu_custom_call.1} parent=1 // pred_fallthru
      _
    // Predicated region
    $region18: #{tpu_custom_call.1} parent=1 // pred_check
      _
    $region19: #{tpu_custom_call.1} parent=1 // pred_check_branch
      %56 = sbr.rel (0) target = $region21
    $region20: #{tpu_custom_call.1} parent=1 // pred_region
      %s58 = ssub.s32 6144, 6144
      %59 = vsyncadd [#allocation9], %s58
      %s60 = sshll.u32 [#allocation10], 4
      %s61 = int_to_ptr.vmem [resolvable:$true] %s60
      %66 = dma.hbm_to_vmem [thread:$0]  %s4, 6144, %s61, [#allocation9], 384, 384, 24
    $region21: #{tpu_custom_call.1} parent=1 // pred_fallthru
      _
    // Predicated region
    $region22: #{tpu_custom_call.1} parent=1 // pred_check
      _
    $region23: #{tpu_custom_call.1} parent=1 // pred_check_branch
      %68 = sbr.rel (0) target = $region25
    $region24: #{tpu_custom_call.1} parent=1 // pred_region
      %s70 = ssub.s32 6144, 6144
      %71 = vsyncadd [#allocation12], %s70
      %s72 = sshll.u32 [#allocation11], 4
      %s73 = int_to_ptr.vmem [resolvable:$true] %s72
      %78 = dma.hbm_to_vmem [thread:$0]  %s5, 6144, %s73, [#allocation12], 384, 384, 24
    $region25: #{tpu_custom_call.1} parent=1 // pred_fallthru
      _
    // Predicated region
    $region26: #{tpu_custom_call.1} parent=1 // pred_check
      _
    $region27: #{tpu_custom_call.1} parent=1 // pred_check_branch
      %80 = sbr.rel (0) target = $region29
    $region28: #{tpu_custom_call.1} parent=1 // pred_region
      _
    $region29: #{tpu_custom_call.1} parent=1 // pred_fallthru
      _
    // Predicated region
    $region30: #{tpu_custom_call.1} parent=1 // pred_check
      _
    $region31: #{tpu_custom_call.1} parent=1 // pred_check_branch
      %82 = sbr.rel (0) target = $region33
    $region32: #{tpu_custom_call.1} parent=1 // pred_region
      _
    $region33: #{tpu_custom_call.1} parent=1 // pred_fallthru
      _
    // Predicated region
    $region34: #{tpu_custom_call.1} parent=1 // pred_check
      _
    $region35: #{tpu_custom_call.1} parent=1 // pred_check_branch
      %84 = sbr.rel (0) target = $region37
    $region36: #{tpu_custom_call.1} parent=1 // pred_region
      %s86 = ssub.s32 2048, 2048
      %87 = vsyncadd [#allocation12], %s86
      %s88 = sshll.u32 [#allocation13], 4
      %s89 = int_to_ptr.vmem [resolvable:$true] %s88
      %94 = dma.hbm_to_vmem [thread:$0]  %s8, 2048, %s89, [#allocation12], 128, 128, 8
    $region37: #{tpu_custom_call.1} parent=1 // pred_fallthru
      _
    // Predicated region
    $region38: #{tpu_custom_call.1} parent=1 // pred_check
      _
    $region39: #{tpu_custom_call.1} parent=1 // pred_check_branch
      %96 = sbr.rel (0) target = $region41
    $region40: #{tpu_custom_call.1} parent=1 // pred_region
      _
    $region41: #{tpu_custom_call.1} parent=1 // pred_fallthru
      _
    // Predicated region
    $region42: #{tpu_custom_call.1} parent=1 // pred_check
      _
    $region43: #{tpu_custom_call.1} parent=1 // pred_check_branch
      %98 = sbr.rel (0) target = $region45
    $region44: #{tpu_custom_call.1} parent=1 // pred_region
      %s100 = ssub.s32 6144, 6144
      %101 = vsyncadd [#allocation15], %s100
      %s102 = sshll.u32 [#allocation14], 4
      %s103 = int_to_ptr.vmem [resolvable:$true] %s102
      %108 = dma.hbm_to_vmem [thread:$0]  %s10, 6144, %s103, [#allocation15], 384, 384, 24
    $region45: #{tpu_custom_call.1} parent=1 // pred_fallthru
      _
    // Predicated region
    $region46: #{tpu_custom_call.1} parent=1 // pred_check
      _
    $region47: #{tpu_custom_call.1} parent=1 // pred_check_branch
      %110 = sbr.rel (0) target = $region49
    $region48: #{tpu_custom_call.1} parent=1 // pred_region
      %s112 = ssub.s32 6144, 6144
      %113 = vsyncadd [#allocation15], %s112
      %s114 = sshll.u32 [#allocation16], 4
      %s115 = int_to_ptr.vmem [resolvable:$true] %s114
      %120 = dma.hbm_to_vmem [thread:$0]  %s11, 6144, %s115, [#allocation15], 384, 384, 24
    $region49: #{tpu_custom_call.1} parent=1 // pred_fallthru
      _
    // Predicated region
    $region50: #{tpu_custom_call.1} parent=1 // pred_check
      _
    $region51: #{tpu_custom_call.1} parent=1 // pred_check_branch
      %122 = sbr.rel (0) target = $region53
    $region52: #{tpu_custom_call.1} parent=1 // pred_region
      _
    $region53: #{tpu_custom_call.1} parent=1 // pred_fallthru
      _
    // Predicated region
    $region54: #{tpu_custom_call.1} parent=1 // pred_check
      _
    $region55: #{tpu_custom_call.1} parent=1 // pred_check_branch
      %124 = sbr.rel (0) target = $region57
    $region56: #{tpu_custom_call.1} parent=1 // pred_region
      _
    $region57: #{tpu_custom_call.1} parent=1 // pred_fallthru
      _
    // Predicated region
    $region58: #{tpu_custom_call.1} parent=1 // pred_check
      _
    $region59: #{tpu_custom_call.1} parent=1 // pred_check_branch
      %126 = sbr.rel (0) target = $region61
    $region60: #{tpu_custom_call.1} parent=1 // pred_region
      %s128 = ssub.s32 2048, 2048
      %129 = vsyncadd [#allocation18], %s128
      %s130 = sshll.u32 [#allocation17], 4
      %s131 = int_to_ptr.vmem [resolvable:$true] %s130
      %136 = dma.hbm_to_vmem [thread:$0]  %s14, 2048, %s131, [#allocation18], 128, 128, 8
    $region61: #{tpu_custom_call.1} parent=1 // pred_fallthru
      _
    // Predicated region
    $region62: #{tpu_custom_call.1} parent=1 // pred_check
      _
    $region63: #{tpu_custom_call.1} parent=1 // pred_check_branch
      %138 = sbr.rel (0) target = $region65
    $region64: #{tpu_custom_call.1} parent=1 // pred_region
      _
    $region65: #{tpu_custom_call.1} parent=1 // pred_fallthru
      _
    // Predicated region
    $region66: #{tpu_custom_call.1} parent=1 // pred_check
      _
    $region67: #{tpu_custom_call.1} parent=1 // pred_check_branch
      %140 = sbr.rel (0) target = $region69
    $region68: #{tpu_custom_call.1} parent=1 // pred_region
      %141 = dma.done [#allocation6], 1024
    $region69: #{tpu_custom_call.1} parent=1 // pred_fallthru
      _
    // Predicated region
    $region70: #{tpu_custom_call.1} parent=1 // pred_check
      _
    $region71: #{tpu_custom_call.1} parent=1 // pred_check_branch
      %143 = sbr.rel (0) target = $region73
    $region72: #{tpu_custom_call.1} parent=1 // pred_region
      %144 = dma.done [#allocation9], 1024
    $region73: #{tpu_custom_call.1} parent=1 // pred_fallthru
      _
    // Predicated region
    $region74: #{tpu_custom_call.1} parent=1 // pred_check
      _
    $region75: #{tpu_custom_call.1} parent=1 // pred_check_branch
      %146 = sbr.rel (0) target = $region77
    $region76: #{tpu_custom_call.1} parent=1 // pred_region
      %147 = dma.done [#allocation9], 6144
    $region77: #{tpu_custom_call.1} parent=1 // pred_fallthru
      _
    // Predicated region
    $region78: #{tpu_custom_call.1} parent=1 // pred_check
      _
    $region79: #{tpu_custom_call.1} parent=1 // pred_check_branch
      %149 = sbr.rel (0) target = $region81
    $region80: #{tpu_custom_call.1} parent=1 // pred_region
      %150 = dma.done [#allocation12], 6144
    $region81: #{tpu_custom_call.1} parent=1 // pred_fallthru
      _
    // Predicated region
    $region82: #{tpu_custom_call.1} parent=1 // pred_check
      _
    $region83: #{tpu_custom_call.1} parent=1 // pred_check_branch
      %152 = sbr.rel (0) target = $region85
    $region84: #{tpu_custom_call.1} parent=1 // pred_region
      %153 = dma.done [#allocation12], 2048
    $region85: #{tpu_custom_call.1} parent=1 // pred_fallthru
      _
    // Predicated region
    $region86: #{tpu_custom_call.1} parent=1 // pred_check
      _
    $region87: #{tpu_custom_call.1} parent=1 // pred_check_branch
      %155 = sbr.rel (0) target = $region89
    $region88: #{tpu_custom_call.1} parent=1 // pred_region
      %156 = dma.done [#allocation15], 6144
    $region89: #{tpu_custom_call.1} parent=1 // pred_fallthru
      _
    // Predicated region
    $region90: #{tpu_custom_call.1} parent=1 // pred_check
      _
    $region91: #{tpu_custom_call.1} parent=1 // pred_check_branch
      %158 = sbr.rel (0) target = $region93
    $region92: #{tpu_custom_call.1} parent=1 // pred_region
      %159 = dma.done [#allocation15], 6144
    $region93: #{tpu_custom_call.1} parent=1 // pred_fallthru
      _
    // Predicated region
    $region94: #{tpu_custom_call.1} parent=1 // pred_check
      _
    $region95: #{tpu_custom_call.1} parent=1 // pred_check_branch
      %161 = sbr.rel (0) target = $region97
    $region96: #{tpu_custom_call.1} parent=1 // pred_region
      %162 = dma.done [#allocation18], 2048
    $region97: #{tpu_custom_call.1} parent=1 // pred_fallthru
      _
    %v163 = vld [vmem:[#allocation5] sm:$0xff]
    %v164 = vld [vmem:[#allocation5 + $0x8] sm:$0xff]
    %v165 = vld [vmem:[#allocation5 + $0x10] sm:$0xff]
    %v166 = vld [vmem:[#allocation5 + $0x18] sm:$0xff]
    %v167 = vld [vmem:[#allocation5 + $0x20] sm:$0xff]
    %v168 = vld [vmem:[#allocation5 + $0x28] sm:$0xff]
    %v169 = vld [vmem:[#allocation5 + $0x30] sm:$0xff]
    %v170 = vld [vmem:[#allocation5 + $0x38] sm:$0xff]
    %v171 = vld [vmem:[#allocation10] sm:$0xff]
    %v172 = vld [vmem:[#allocation10 + $0x8] sm:$0xff]
    %v173 = vld [vmem:[#allocation10 + $0x10] sm:$0xff]
    %v174 = vld [vmem:[#allocation10 + $0x18] sm:$0xff]
    %v175 = vld [vmem:[#allocation10 + $0x20] sm:$0xff]
    %v176 = vld [vmem:[#allocation10 + $0x28] sm:$0xff]
    %v177 = vld [vmem:[#allocation10 + $0x30] sm:$0xff]
    %v178 = vld [vmem:[#allocation10 + $0x38] sm:$0xff]
    %v179 = vld [vmem:[#allocation10 + $0x40] sm:$0xff]
    %v180 = vld [vmem:[#allocation10 + $0x48] sm:$0xff]
    %v181 = vld [vmem:[#allocation10 + $0x50] sm:$0xff]
    %v182 = vld [vmem:[#allocation10 + $0x58] sm:$0xff]
    %v183 = vld [vmem:[#allocation10 + $0x60] sm:$0xff]
    %v184 = vld [vmem:[#allocation10 + $0x68] sm:$0xff]
    %v185 = vld [vmem:[#allocation10 + $0x70] sm:$0xff]
    %v186 = vld [vmem:[#allocation10 + $0x78] sm:$0xff]
    %v187 = vld [vmem:[#allocation10 + $0x80] sm:$0xff]
    %v188 = vld [vmem:[#allocation10 + $0x88] sm:$0xff]
    %v189 = vld [vmem:[#allocation10 + $0x90] sm:$0xff]
    %v190 = vld [vmem:[#allocation10 + $0x98] sm:$0xff]
    %v191 = vld [vmem:[#allocation10 + $0xa0] sm:$0xff]
    %v192 = vld [vmem:[#allocation10 + $0xa8] sm:$0xff]
    %v193 = vld [vmem:[#allocation10 + $0xb0] sm:$0xff]
    %v194 = vld [vmem:[#allocation10 + $0xb8] sm:$0xff]
    %v195 = vld [vmem:[#allocation10 + $0xc0] sm:$0xff]
    %v196 = vld [vmem:[#allocation10 + $0xc8] sm:$0xff]
    %v197 = vld [vmem:[#allocation10 + $0xd0] sm:$0xff]
    %v198 = vld [vmem:[#allocation10 + $0xd8] sm:$0xff]
    %v199 = vld [vmem:[#allocation10 + $0xe0] sm:$0xff]
    %v200 = vld [vmem:[#allocation10 + $0xe8] sm:$0xff]
    %v201 = vld [vmem:[#allocation10 + $0xf0] sm:$0xff]
    %v202 = vld [vmem:[#allocation10 + $0xf8] sm:$0xff]
    %v203 = vld [vmem:[#allocation10 + $0x100] sm:$0xff]
    %v204 = vld [vmem:[#allocation10 + $0x108] sm:$0xff]
    %v205 = vld [vmem:[#allocation10 + $0x110] sm:$0xff]
    %v206 = vld [vmem:[#allocation10 + $0x118] sm:$0xff]
    %v207 = vld [vmem:[#allocation10 + $0x120] sm:$0xff]
    %v208 = vld [vmem:[#allocation10 + $0x128] sm:$0xff]
    %v209 = vld [vmem:[#allocation10 + $0x130] sm:$0xff]
    %v210 = vld [vmem:[#allocation10 + $0x138] sm:$0xff]
    %v211 = vld [vmem:[#allocation10 + $0x140] sm:$0xff]
    %v212 = vld [vmem:[#allocation10 + $0x148] sm:$0xff]
    %v213 = vld [vmem:[#allocation10 + $0x150] sm:$0xff]
    %v214 = vld [vmem:[#allocation10 + $0x158] sm:$0xff]
    %v215 = vld [vmem:[#allocation10 + $0x160] sm:$0xff]
    %v216 = vld [vmem:[#allocation10 + $0x168] sm:$0xff]
    %v217 = vld [vmem:[#allocation10 + $0x170] sm:$0xff]
    %v218 = vld [vmem:[#allocation10 + $0x178] sm:$0xff]
    %v219 = vld [vmem:[%s6] sm:$0x7]
    %v221 = vlaneseq
    %v222 = vshrl.u32 %v221, 7
    %v223 = vsub.s32 0, %v222
    %v224 = vrot.slane %v219, %v223
    %v225 = vlaneseq
    %v226 = vshrl.u32 %v225, 7
    %v227 = vsub.s32 1, %v226
    %v228 = vrot.slane %v219, %v227
    %v229 = vlaneseq
    %v230 = vshrl.u32 %v229, 7
    %v231 = vsub.s32 2, %v230
    %v232 = vrot.slane %v219, %v231
    %236 = vmatprep.subr.mxu0 %v172
    %237 = vmatpush1.msra.mxu0 %v171
    %238 = vmatprep.subr.mxu0 %v175
    %239 = vmatpush1.msra.mxu0 %v174
    %240 = vmatprep.subr.mxu0 %v178
    %241 = vmatpush1.msra.mxu0 %v177
    %242 = vmatprep.subr.mxu0 %v181
    %243 = vmatpush1.msra.mxu0 %v180
    %244 = vmatprep.subr.mxu0 %v184
    %245 = vmatpush1.msra.mxu0 %v183
    %246 = vmatprep.subr.mxu0 %v187
    %247 = vmatpush1.msra.mxu0 %v186
    %248 = vmatprep.subr.mxu0 %v190
    %249 = vmatpush1.msra.mxu0 %v189
    %250 = vmatprep.subr.mxu0 %v193
    %251 = vmatpush1.msra.mxu0 %v192
    %252 = vmatprep.subr.mxu0 %v196
    %253 = vmatpush1.msra.mxu0 %v195
    %254 = vmatprep.subr.mxu0 %v199
    %255 = vmatpush1.msra.mxu0 %v198
    %256 = vmatprep.subr.mxu0 %v202
    %257 = vmatpush1.msra.mxu0 %v201
    %258 = vmatprep.subr.mxu0 %v205
    %259 = vmatpush1.msra.mxu0 %v204
    %260 = vmatprep.subr.mxu0 %v208
    %261 = vmatpush1.msra.mxu0 %v207
    %262 = vmatprep.subr.mxu0 %v211
    %263 = vmatpush1.msra.mxu0 %v210
    %264 = vmatprep.subr.mxu0 %v214
    %265 = vmatpush1.msra.mxu0 %v213
    %266 = vmatprep.subr.mxu0 %v217
    %267 = vmatpush1.msra.mxu0 %v216
    %268 = vmatprep.subr.mxu0 0.0
    %269 = vmatpush1.msra.mxu0 0.0
    %270 = vmatprep.subr.mxu0 0.0
    %271 = vmatpush1.msra.mxu0 0.0
    %272 = vmatprep.subr.mxu0 0.0
    %273 = vmatpush1.msra.mxu0 0.0
    %274 = vmatprep.subr.mxu0 0.0
    %275 = vmatpush1.msra.mxu0 0.0
    %276 = vmatprep.subr.mxu0 0.0
    %277 = vmatpush1.msra.mxu0 0.0
    %278 = vmatprep.subr.mxu0 0.0
    %279 = vmatpush1.msra.mxu0 0.0
    %280 = vmatprep.subr.mxu0 0.0
    %281 = vmatpush1.msra.mxu0 0.0
    %282 = vmatprep.subr.mxu0 0.0
    %283 = vmatpush1.msra.mxu0 0.0
    %284 = vmatprep.subr.mxu0 0.0
    %285 = vmatpush1.msra.mxu0 0.0
    %286 = vmatprep.subr.mxu0 0.0
    %287 = vmatpush1.msra.mxu0 0.0
    %288 = vmatprep.subr.mxu0 0.0
    %289 = vmatpush1.msra.mxu0 0.0
    %290 = vmatprep.subr.mxu0 0.0
    %291 = vmatpush1.msra.mxu0 0.0
    %292 = vmatprep.subr.mxu0 0.0
    %293 = vmatpush1.msra.mxu0 0.0
    %294 = vmatprep.subr.mxu0 0.0
    %295 = vmatpush1.msra.mxu0 0.0
    %296 = vmatprep.subr.mxu0 0.0
    %297 = vmatpush1.msra.mxu0 0.0
    %298 = vmatprep.subr.mxu0 0.0
    %299 = vmatpush1.msra.mxu0 0.0
    %300 = vmatprep.mubr.f32.mxu0 0.0
    %301 = vmatmul.mubr.f32.gmra.mrb[0].mxu0 %v163
    %v302 = vpop.f32.mrb[0].mxu0
    %v303 = vadd.f32 %v224, %v302
    %v304 = vpop.f32.mrb[0].mxu0
    %v305 = vadd.f32 %v228, %v304
    %306 = vmatprep.mubr.f32.mxu0 0.0
    %307 = vmatmul.mubr.f32.gmra.mrb[0].mxu0 %v164
    %v308 = vpop.f32.mrb[0].mxu0
    %v309 = vadd.f32 %v224, %v308
    %v310 = vpop.f32.mrb[0].mxu0
    %v311 = vadd.f32 %v228, %v310
    %312 = vmatprep.mubr.f32.mxu0 0.0
    %313 = vmatmul.mubr.f32.gmra.mrb[0].mxu0 %v165
    %v314 = vpop.f32.mrb[0].mxu0
    %v315 = vadd.f32 %v224, %v314
    %v316 = vpop.f32.mrb[0].mxu0
    %v317 = vadd.f32 %v228, %v316
    %318 = vmatprep.mubr.f32.mxu0 0.0
    %319 = vmatmul.mubr.f32.gmra.mrb[0].mxu0 %v166
    %v320 = vpop.f32.mrb[0].mxu0
    %v321 = vadd.f32 %v224, %v320
    %v322 = vpop.f32.mrb[0].mxu0
    %v323 = vadd.f32 %v228, %v322
    %324 = vmatprep.mubr.f32.mxu0 0.0
    %325 = vmatmul.mubr.f32.gmra.mrb[0].mxu0 %v167
    %v326 = vpop.f32.mrb[0].mxu0
    %v327 = vadd.f32 %v224, %v326
    %v328 = vpop.f32.mrb[0].mxu0
    %v329 = vadd.f32 %v228, %v328
    %330 = vmatprep.mubr.f32.mxu0 0.0
    %331 = vmatmul.mubr.f32.gmra.mrb[0].mxu0 %v168
    %v332 = vpop.f32.mrb[0].mxu0
    %v333 = vadd.f32 %v224, %v332
    %v334 = vpop.f32.mrb[0].mxu0
    %v335 = vadd.f32 %v228, %v334
    %336 = vmatprep.mubr.f32.mxu0 0.0
    %337 = vmatmul.mubr.f32.gmra.mrb[0].mxu0 %v169
    %v338 = vpop.f32.mrb[0].mxu0
    %v339 = vadd.f32 %v224, %v338
    %v340 = vpop.f32.mrb[0].mxu0
    %v341 = vadd.f32 %v228, %v340
    %342 = vmatprep.mubr.f32.mxu0 0.0
    %343 = vmatmul.mubr.f32.gmra.mrb[0].mxu0 %v170
    %v344 = vpop.f32.mrb[0].mxu0
    %v345 = vadd.f32 %v224, %v344
    %v346 = vpop.f32.mrb[0].mxu0
    %v347 = vadd.f32 %v228, %v346
    %348 = vdwg.mxu0
    %349 = vmatprep.subr.mxu0 0.0
    %350 = vmatpush1.msra.mxu0 %v173
    %351 = vmatprep.subr.mxu0 0.0
    %352 = vmatpush1.msra.mxu0 %v176
    %353 = vmatprep.subr.mxu0 0.0
    %354 = vmatpush1.msra.mxu0 %v179
    %355 = vmatprep.subr.mxu0 0.0
    %356 = vmatpush1.msra.mxu0 %v182
    %357 = vmatprep.subr.mxu0 0.0
    %358 = vmatpush1.msra.mxu0 %v185
    %359 = vmatprep.subr.mxu0 0.0
    %360 = vmatpush1.msra.mxu0 %v188
    %361 = vmatprep.subr.mxu0 0.0
    %362 = vmatpush1.msra.mxu0 %v191
    %363 = vmatprep.subr.mxu0 0.0
    %364 = vmatpush1.msra.mxu0 %v194
    %365 = vmatprep.subr.mxu0 0.0
    %366 = vmatpush1.msra.mxu0 %v197
    %367 = vmatprep.subr.mxu0 0.0
    %368 = vmatpush1.msra.mxu0 %v200
    %369 = vmatprep.subr.mxu0 0.0
    %370 = vmatpush1.msra.mxu0 %v203
    %371 = vmatprep.subr.mxu0 0.0
    %372 = vmatpush1.msra.mxu0 %v206
    %373 = vmatprep.subr.mxu0 0.0
    %374 = vmatpush1.msra.mxu0 %v209
    %375 = vmatprep.subr.mxu0 0.0
    %376 = vmatpush1.msra.mxu0 %v212
    %377 = vmatprep.subr.mxu0 0.0
    %378 = vmatpush1.msra.mxu0 %v215
    %379 = vmatprep.subr.mxu0 0.0
    %380 = vmatpush1.msra.mxu0 %v218
    %381 = vmatprep.subr.mxu0 0.0
    %382 = vmatpush1.msra.mxu0 0.0
    %383 = vmatprep.subr.mxu0 0.0
    %384 = vmatpush1.msra.mxu0 0.0
    %385 = vmatprep.subr.mxu0 0.0
    %386 = vmatpush1.msra.mxu0 0.0
    %387 = vmatprep.subr.mxu0 0.0
    %388 = vmatpush1.msra.mxu0 0.0
    %389 = vmatprep.subr.mxu0 0.0
    %390 = vmatpush1.msra.mxu0 0.0
    %391 = vmatprep.subr.mxu0 0.0
    %392 = vmatpush1.msra.mxu0 0.0
    %393 = vmatprep.subr.mxu0 0.0
    %394 = vmatpush1.msra.mxu0 0.0
    %395 = vmatprep.subr.mxu0 0.0
    %396 = vmatpush1.msra.mxu0 0.0
    %397 = vmatprep.subr.mxu0 0.0
    %398 = vmatpush1.msra.mxu0 0.0
    %399 = vmatprep.subr.mxu0 0.0
    %400 = vmatpush1.msra.mxu0 0.0
    %401 = vmatprep.subr.mxu0 0.0
    %402 = vmatpush1.msra.mxu0 0.0
    %403 = vmatprep.subr.mxu0 0.0
    %404 = vmatpush1.msra.mxu0 0.0
    %405 = vmatprep.subr.mxu0 0.0
    %406 = vmatpush1.msra.mxu0 0.0
    %407 = vmatprep.subr.mxu0 0.0
    %408 = vmatpush1.msra.mxu0 0.0
    %409 = vmatprep.subr.mxu0 0.0
    %410 = vmatpush1.msra.mxu0 0.0
    %411 = vmatprep.subr.mxu0 0.0
    %412 = vmatpush1.msra.mxu0 0.0
    %413 = vmatprep.mubr.f32.mxu0 0.0
    %414 = vmatmul.mubr.f32.gmra.mrb[0].mxu0 %v163
    %v415 = vpop.f32.mrb[0].mxu0
    %v416 = vadd.f32 %v232, %v415
    %v417 = vpop.f32.mrb[0].mxu0
    %418 = vmatprep.mubr.f32.mxu0 0.0
    %419 = vmatmul.mubr.f32.gmra.mrb[0].mxu0 %v164
    %v420 = vpop.f32.mrb[0].mxu0
    %v421 = vadd.f32 %v232, %v420
    %v422 = vpop.f32.mrb[0].mxu0
    %423 = vmatprep.mubr.f32.mxu0 0.0
    %424 = vmatmul.mubr.f32.gmra.mrb[0].mxu0 %v165
    %v425 = vpop.f32.mrb[0].mxu0
    %v426 = vadd.f32 %v232, %v425
    %v427 = vpop.f32.mrb[0].mxu0
    %428 = vmatprep.mubr.f32.mxu0 0.0
    %429 = vmatmul.mubr.f32.gmra.mrb[0].mxu0 %v166
    %v430 = vpop.f32.mrb[0].mxu0
    %v431 = vadd.f32 %v232, %v430
    %v432 = vpop.f32.mrb[0].mxu0
    %433 = vmatprep.mubr.f32.mxu0 0.0
    %434 = vmatmul.mubr.f32.gmra.mrb[0].mxu0 %v167
    %v435 = vpop.f32.mrb[0].mxu0
    %v436 = vadd.f32 %v232, %v435
    %v437 = vpop.f32.mrb[0].mxu0
    %438 = vmatprep.mubr.f32.mxu0 0.0
    %439 = vmatmul.mubr.f32.gmra.mrb[0].mxu0 %v168
    %v440 = vpop.f32.mrb[0].mxu0
    %v441 = vadd.f32 %v232, %v440
    %v442 = vpop.f32.mrb[0].mxu0
    %443 = vmatprep.mubr.f32.mxu0 0.0
    %444 = vmatmul.mubr.f32.gmra.mrb[0].mxu0 %v169
    %v445 = vpop.f32.mrb[0].mxu0
    %v446 = vadd.f32 %v232, %v445
    %v447 = vpop.f32.mrb[0].mxu0
    %448 = vmatprep.mubr.f32.mxu0 0.0
    %449 = vmatmul.mubr.f32.gmra.mrb[0].mxu0 %v170
    %v450 = vpop.f32.mrb[0].mxu0
    %v451 = vadd.f32 %v232, %v450
    %v452 = vpop.f32.mrb[0].mxu0
    %453 = vdwg.mxu0
    %454 = vst [vmem:[#allocation2] sm:$0xff] %v303
    %455 = vst [vmem:[#allocation2 + $0x8] sm:$0xff] %v305
    %456 = vst [vmem:[#allocation2 + $0x10] sm:$0xff] %v416
    %457 = vst [vmem:[#allocation2 + $0x18] sm:$0xff] %v309
    %458 = vst [vmem:[#allocation2 + $0x20] sm:$0xff] %v311
    %459 = vst [vmem:[#allocation2 + $0x28] sm:$0xff] %v421
    %460 = vst [vmem:[#allocation2 + $0x30] sm:$0xff] %v315
    %461 = vst [vmem:[#allocation2 + $0x38] sm:$0xff] %v317
    %462 = vst [vmem:[#allocation2 + $0x40] sm:$0xff] %v426
    %463 = vst [vmem:[#allocation2 + $0x48] sm:$0xff] %v321
    %464 = vst [vmem:[#allocation2 + $0x50] sm:$0xff] %v323
    %465 = vst [vmem:[#allocation2 + $0x58] sm:$0xff] %v431
    %466 = vst [vmem:[#allocation2 + $0x60] sm:$0xff] %v327
    %467 = vst [vmem:[#allocation2 + $0x68] sm:$0xff] %v329
    %468 = vst [vmem:[#allocation2 + $0x70] sm:$0xff] %v436
    %469 = vst [vmem:[#allocation2 + $0x78] sm:$0xff] %v333
    %470 = vst [vmem:[#allocation2 + $0x80] sm:$0xff] %v335
    %471 = vst [vmem:[#allocation2 + $0x88] sm:$0xff] %v441
    %472 = vst [vmem:[#allocation2 + $0x90] sm:$0xff] %v339
    %473 = vst [vmem:[#allocation2 + $0x98] sm:$0xff] %v341
    %474 = vst [vmem:[#allocation2 + $0xa0] sm:$0xff] %v446
    %475 = vst [vmem:[#allocation2 + $0xa8] sm:$0xff] %v345
    %476 = vst [vmem:[#allocation2 + $0xb0] sm:$0xff] %v347
    %477 = vst [vmem:[#allocation2 + $0xb8] sm:$0xff] %v451
    %v478 = vld [vmem:[#allocation8] sm:$0xff]
    %v479 = vld [vmem:[#allocation8 + $0x8] sm:$0xff]
    %v480 = vld [vmem:[#allocation8 + $0x10] sm:$0xff]
    %v481 = vld [vmem:[#allocation8 + $0x18] sm:$0xff]
    %v482 = vld [vmem:[#allocation8 + $0x20] sm:$0xff]
    %v483 = vld [vmem:[#allocation8 + $0x28] sm:$0xff]
    %v484 = vld [vmem:[#allocation8 + $0x30] sm:$0xff]
    %v485 = vld [vmem:[#allocation8 + $0x38] sm:$0xff]
    %v486 = vld [vmem:[#allocation14] sm:$0xff]
    %v487 = vld [vmem:[#allocation14 + $0x8] sm:$0xff]
    %v488 = vld [vmem:[#allocation14 + $0x10] sm:$0xff]
    %v489 = vld [vmem:[#allocation14 + $0x18] sm:$0xff]
    %v490 = vld [vmem:[#allocation14 + $0x20] sm:$0xff]
    %v491 = vld [vmem:[#allocation14 + $0x28] sm:$0xff]
    %v492 = vld [vmem:[#allocation14 + $0x30] sm:$0xff]
    %v493 = vld [vmem:[#allocation14 + $0x38] sm:$0xff]
    %v494 = vld [vmem:[#allocation14 + $0x40] sm:$0xff]
    %v495 = vld [vmem:[#allocation14 + $0x48] sm:$0xff]
    %v496 = vld [vmem:[#allocation14 + $0x50] sm:$0xff]
    %v497 = vld [vmem:[#allocation14 + $0x58] sm:$0xff]
    %v498 = vld [vmem:[#allocation14 + $0x60] sm:$0xff]
    %v499 = vld [vmem:[#allocation14 + $0x68] sm:$0xff]
    %v500 = vld [vmem:[#allocation14 + $0x70] sm:$0xff]
    %v501 = vld [vmem:[#allocation14 + $0x78] sm:$0xff]
    %v502 = vld [vmem:[#allocation14 + $0x80] sm:$0xff]
    %v503 = vld [vmem:[#allocation14 + $0x88] sm:$0xff]
    %v504 = vld [vmem:[#allocation14 + $0x90] sm:$0xff]
    %v505 = vld [vmem:[#allocation14 + $0x98] sm:$0xff]
    %v506 = vld [vmem:[#allocation14 + $0xa0] sm:$0xff]
    %v507 = vld [vmem:[#allocation14 + $0xa8] sm:$0xff]
    %v508 = vld [vmem:[#allocation14 + $0xb0] sm:$0xff]
    %v509 = vld [vmem:[#allocation14 + $0xb8] sm:$0xff]
    %v510 = vld [vmem:[#allocation14 + $0xc0] sm:$0xff]
    %v511 = vld [vmem:[#allocation14 + $0xc8] sm:$0xff]
    %v512 = vld [vmem:[#allocation14 + $0xd0] sm:$0xff]
    %v513 = vld [vmem:[#allocation14 + $0xd8] sm:$0xff]
    %v514 = vld [vmem:[#allocation14 + $0xe0] sm:$0xff]
    %v515 = vld [vmem:[#allocation14 + $0xe8] sm:$0xff]
    %v516 = vld [vmem:[#allocation14 + $0xf0] sm:$0xff]
    %v517 = vld [vmem:[#allocation14 + $0xf8] sm:$0xff]
    %v518 = vld [vmem:[#allocation14 + $0x100] sm:$0xff]
    %v519 = vld [vmem:[#allocation14 + $0x108] sm:$0xff]
    %v520 = vld [vmem:[#allocation14 + $0x110] sm:$0xff]
    %v521 = vld [vmem:[#allocation14 + $0x118] sm:$0xff]
    %v522 = vld [vmem:[#allocation14 + $0x120] sm:$0xff]
    %v523 = vld [vmem:[#allocation14 + $0x128] sm:$0xff]
    %v524 = vld [vmem:[#allocation14 + $0x130] sm:$0xff]
    %v525 = vld [vmem:[#allocation14 + $0x138] sm:$0xff]
    %v526 = vld [vmem:[#allocation14 + $0x140] sm:$0xff]
    %v527 = vld [vmem:[#allocation14 + $0x148] sm:$0xff]
    %v528 = vld [vmem:[#allocation14 + $0x150] sm:$0xff]
    %v529 = vld [vmem:[#allocation14 + $0x158] sm:$0xff]
    %v530 = vld [vmem:[#allocation14 + $0x160] sm:$0xff]
    %v531 = vld [vmem:[#allocation14 + $0x168] sm:$0xff]
    %v532 = vld [vmem:[#allocation14 + $0x170] sm:$0xff]
    %v533 = vld [vmem:[#allocation14 + $0x178] sm:$0xff]
    %v534 = vld [vmem:[%s12] sm:$0x7]
    %v536 = vlaneseq
    %v537 = vshrl.u32 %v536, 7
    %v538 = vsub.s32 0, %v537
    %v539 = vrot.slane %v534, %v538
    %v540 = vlaneseq
    %v541 = vshrl.u32 %v540, 7
    %v542 = vsub.s32 1, %v541
    %v543 = vrot.slane %v534, %v542
    %v544 = vlaneseq
    %v545 = vshrl.u32 %v544, 7
    %v546 = vsub.s32 2, %v545
    %v547 = vrot.slane %v534, %v546
    %551 = vmatprep.subr.mxu0 %v487
    %552 = vmatpush1.msra.mxu0 %v486
    %553 = vmatprep.subr.mxu0 %v490
    %554 = vmatpush1.msra.mxu0 %v489
    %555 = vmatprep.subr.mxu0 %v493
    %556 = vmatpush1.msra.mxu0 %v492
    %557 = vmatprep.subr.mxu0 %v496
    %558 = vmatpush1.msra.mxu0 %v495
    %559 = vmatprep.subr.mxu0 %v499
    %560 = vmatpush1.msra.mxu0 %v498
    %561 = vmatprep.subr.mxu0 %v502
    %562 = vmatpush1.msra.mxu0 %v501
    %563 = vmatprep.subr.mxu0 %v505
    %564 = vmatpush1.msra.mxu0 %v504
    %565 = vmatprep.subr.mxu0 %v508
    %566 = vmatpush1.msra.mxu0 %v507
    %567 = vmatprep.subr.mxu0 %v511
    %568 = vmatpush1.msra.mxu0 %v510
    %569 = vmatprep.subr.mxu0 %v514
    %570 = vmatpush1.msra.mxu0 %v513
    %571 = vmatprep.subr.mxu0 %v517
    %572 = vmatpush1.msra.mxu0 %v516
    %573 = vmatprep.subr.mxu0 %v520
    %574 = vmatpush1.msra.mxu0 %v519
    %575 = vmatprep.subr.mxu0 %v523
    %576 = vmatpush1.msra.mxu0 %v522
    %577 = vmatprep.subr.mxu0 %v526
    %578 = vmatpush1.msra.mxu0 %v525
    %579 = vmatprep.subr.mxu0 %v529
    %580 = vmatpush1.msra.mxu0 %v528
    %581 = vmatprep.subr.mxu0 %v532
    %582 = vmatpush1.msra.mxu0 %v531
    %583 = vmatprep.subr.mxu0 0.0
    %584 = vmatpush1.msra.mxu0 0.0
    %585 = vmatprep.subr.mxu0 0.0
    %586 = vmatpush1.msra.mxu0 0.0
    %587 = vmatprep.subr.mxu0 0.0
    %588 = vmatpush1.msra.mxu0 0.0
    %589 = vmatprep.subr.mxu0 0.0
    %590 = vmatpush1.msra.mxu0 0.0
    %591 = vmatprep.subr.mxu0 0.0
    %592 = vmatpush1.msra.mxu0 0.0
    %593 = vmatprep.subr.mxu0 0.0
    %594 = vmatpush1.msra.mxu0 0.0
    %595 = vmatprep.subr.mxu0 0.0
    %596 = vmatpush1.msra.mxu0 0.0
    %597 = vmatprep.subr.mxu0 0.0
    %598 = vmatpush1.msra.mxu0 0.0
    %599 = vmatprep.subr.mxu0 0.0
    %600 = vmatpush1.msra.mxu0 0.0
    %601 = vmatprep.subr.mxu0 0.0
    %602 = vmatpush1.msra.mxu0 0.0
    %603 = vmatprep.subr.mxu0 0.0
    %604 = vmatpush1.msra.mxu0 0.0
    %605 = vmatprep.subr.mxu0 0.0
    %606 = vmatpush1.msra.mxu0 0.0
    %607 = vmatprep.subr.mxu0 0.0
    %608 = vmatpush1.msra.mxu0 0.0
    %609 = vmatprep.subr.mxu0 0.0
    %610 = vmatpush1.msra.mxu0 0.0
    %611 = vmatprep.subr.mxu0 0.0
    %612 = vmatpush1.msra.mxu0 0.0
    %613 = vmatprep.subr.mxu0 0.0
    %614 = vmatpush1.msra.mxu0 0.0
    %615 = vmatprep.mubr.f32.mxu0 0.0
    %616 = vmatmul.mubr.f32.gmra.mrb[0].mxu0 %v478
    %v617 = vpop.f32.mrb[0].mxu0
    %v618 = vadd.f32 %v539, %v617
    %v619 = vpop.f32.mrb[0].mxu0
    %v620 = vadd.f32 %v543, %v619
    %621 = vmatprep.mubr.f32.mxu0 0.0
    %622 = vmatmul.mubr.f32.gmra.mrb[0].mxu0 %v479
    %v623 = vpop.f32.mrb[0].mxu0
    %v624 = vadd.f32 %v539, %v623
    %v625 = vpop.f32.mrb[0].mxu0
    %v626 = vadd.f32 %v543, %v625
    %627 = vmatprep.mubr.f32.mxu0 0.0
    %628 = vmatmul.mubr.f32.gmra.mrb[0].mxu0 %v480
    %v629 = vpop.f32.mrb[0].mxu0
    %v630 = vadd.f32 %v539, %v629
    %v631 = vpop.f32.mrb[0].mxu0
    %v632 = vadd.f32 %v543, %v631
    %633 = vmatprep.mubr.f32.mxu0 0.0
    %634 = vmatmul.mubr.f32.gmra.mrb[0].mxu0 %v481
    %v635 = vpop.f32.mrb[0].mxu0
    %v636 = vadd.f32 %v539, %v635
    %v637 = vpop.f32.mrb[0].mxu0
    %v638 = vadd.f32 %v543, %v637
    %639 = vmatprep.mubr.f32.mxu0 0.0
    %640 = vmatmul.mubr.f32.gmra.mrb[0].mxu0 %v482
    %v641 = vpop.f32.mrb[0].mxu0
    %v642 = vadd.f32 %v539, %v641
    %v643 = vpop.f32.mrb[0].mxu0
    %v644 = vadd.f32 %v543, %v643
    %645 = vmatprep.mubr.f32.mxu0 0.0
    %646 = vmatmul.mubr.f32.gmra.mrb[0].mxu0 %v483
    %v647 = vpop.f32.mrb[0].mxu0
    %v648 = vadd.f32 %v539, %v647
    %v649 = vpop.f32.mrb[0].mxu0
    %v650 = vadd.f32 %v543, %v649
    %651 = vmatprep.mubr.f32.mxu0 0.0
    %652 = vmatmul.mubr.f32.gmra.mrb[0].mxu0 %v484
    %v653 = vpop.f32.mrb[0].mxu0
    %v654 = vadd.f32 %v539, %v653
    %v655 = vpop.f32.mrb[0].mxu0
    %v656 = vadd.f32 %v543, %v655
    %657 = vmatprep.mubr.f32.mxu0 0.0
    %658 = vmatmul.mubr.f32.gmra.mrb[0].mxu0 %v485
    %v659 = vpop.f32.mrb[0].mxu0
    %v660 = vadd.f32 %v539, %v659
    %v661 = vpop.f32.mrb[0].mxu0
    %v662 = vadd.f32 %v543, %v661
    %663 = vdwg.mxu0
    %664 = vmatprep.subr.mxu0 0.0
    %665 = vmatpush1.msra.mxu0 %v488
    %666 = vmatprep.subr.mxu0 0.0
    %667 = vmatpush1.msra.mxu0 %v491
    %668 = vmatprep.subr.mxu0 0.0
    %669 = vmatpush1.msra.mxu0 %v494
    %670 = vmatprep.subr.mxu0 0.0
    %671 = vmatpush1.msra.mxu0 %v497
    %672 = vmatprep.subr.mxu0 0.0
    %673 = vmatpush1.msra.mxu0 %v500
    %674 = vmatprep.subr.mxu0 0.0
    %675 = vmatpush1.msra.mxu0 %v503
    %676 = vmatprep.subr.mxu0 0.0
    %677 = vmatpush1.msra.mxu0 %v506
    %678 = vmatprep.subr.mxu0 0.0
    %679 = vmatpush1.msra.mxu0 %v509
    %680 = vmatprep.subr.mxu0 0.0
    %681 = vmatpush1.msra.mxu0 %v512
    %682 = vmatprep.subr.mxu0 0.0
    %683 = vmatpush1.msra.mxu0 %v515
    %684 = vmatprep.subr.mxu0 0.0
    %685 = vmatpush1.msra.mxu0 %v518
    %686 = vmatprep.subr.mxu0 0.0
    %687 = vmatpush1.msra.mxu0 %v521
    %688 = vmatprep.subr.mxu0 0.0
    %689 = vmatpush1.msra.mxu0 %v524
    %690 = vmatprep.subr.mxu0 0.0
    %691 = vmatpush1.msra.mxu0 %v527
    %692 = vmatprep.subr.mxu0 0.0
    %693 = vmatpush1.msra.mxu0 %v530
    %694 = vmatprep.subr.mxu0 0.0
    %695 = vmatpush1.msra.mxu0 %v533
    %696 = vmatprep.subr.mxu0 0.0
    %697 = vmatpush1.msra.mxu0 0.0
    %698 = vmatprep.subr.mxu0 0.0
    %699 = vmatpush1.msra.mxu0 0.0
    %700 = vmatprep.subr.mxu0 0.0
    %701 = vmatpush1.msra.mxu0 0.0
    %702 = vmatprep.subr.mxu0 0.0
    %703 = vmatpush1.msra.mxu0 0.0
    %704 = vmatprep.subr.mxu0 0.0
    %705 = vmatpush1.msra.mxu0 0.0
    %706 = vmatprep.subr.mxu0 0.0
    %707 = vmatpush1.msra.mxu0 0.0
    %708 = vmatprep.subr.mxu0 0.0
    %709 = vmatpush1.msra.mxu0 0.0
    %710 = vmatprep.subr.mxu0 0.0
    %711 = vmatpush1.msra.mxu0 0.0
    %712 = vmatprep.subr.mxu0 0.0
    %713 = vmatpush1.msra.mxu0 0.0
    %714 = vmatprep.subr.mxu0 0.0
    %715 = vmatpush1.msra.mxu0 0.0
    %716 = vmatprep.subr.mxu0 0.0
    %717 = vmatpush1.msra.mxu0 0.0
    %718 = vmatprep.subr.mxu0 0.0
    %719 = vmatpush1.msra.mxu0 0.0
    %720 = vmatprep.subr.mxu0 0.0
    %721 = vmatpush1.msra.mxu0 0.0
    %722 = vmatprep.subr.mxu0 0.0
    %723 = vmatpush1.msra.mxu0 0.0
    %724 = vmatprep.subr.mxu0 0.0
    %725 = vmatpush1.msra.mxu0 0.0
    %726 = vmatprep.subr.mxu0 0.0
    %727 = vmatpush1.msra.mxu0 0.0
    %728 = vmatprep.mubr.f32.mxu0 0.0
    %729 = vmatmul.mubr.f32.gmra.mrb[0].mxu0 %v478
    %v730 = vpop.f32.mrb[0].mxu0
    %v731 = vadd.f32 %v547, %v730
    %v732 = vpop.f32.mrb[0].mxu0
    %733 = vmatprep.mubr.f32.mxu0 0.0
    %734 = vmatmul.mubr.f32.gmra.mrb[0].mxu0 %v479
    %v735 = vpop.f32.mrb[0].mxu0
    %v736 = vadd.f32 %v547, %v735
    %v737 = vpop.f32.mrb[0].mxu0
    %738 = vmatprep.mubr.f32.mxu0 0.0
    %739 = vmatmul.mubr.f32.gmra.mrb[0].mxu0 %v480
    %v740 = vpop.f32.mrb[0].mxu0
    %v741 = vadd.f32 %v547, %v740
    %v742 = vpop.f32.mrb[0].mxu0
    %743 = vmatprep.mubr.f32.mxu0 0.0
    %744 = vmatmul.mubr.f32.gmra.mrb[0].mxu0 %v481
    %v745 = vpop.f32.mrb[0].mxu0
    %v746 = vadd.f32 %v547, %v745
    %v747 = vpop.f32.mrb[0].mxu0
    %748 = vmatprep.mubr.f32.mxu0 0.0
    %749 = vmatmul.mubr.f32.gmra.mrb[0].mxu0 %v482
    %v750 = vpop.f32.mrb[0].mxu0
    %v751 = vadd.f32 %v547, %v750
    %v752 = vpop.f32.mrb[0].mxu0
    %753 = vmatprep.mubr.f32.mxu0 0.0
    %754 = vmatmul.mubr.f32.gmra.mrb[0].mxu0 %v483
    %v755 = vpop.f32.mrb[0].mxu0
    %v756 = vadd.f32 %v547, %v755
    %v757 = vpop.f32.mrb[0].mxu0
    %758 = vmatprep.mubr.f32.mxu0 0.0
    %759 = vmatmul.mubr.f32.gmra.mrb[0].mxu0 %v484
    %v760 = vpop.f32.mrb[0].mxu0
    %v761 = vadd.f32 %v547, %v760
    %v762 = vpop.f32.mrb[0].mxu0
    %763 = vmatprep.mubr.f32.mxu0 0.0
    %764 = vmatmul.mubr.f32.gmra.mrb[0].mxu0 %v485
    %v765 = vpop.f32.mrb[0].mxu0
    %v766 = vadd.f32 %v547, %v765
    %v767 = vpop.f32.mrb[0].mxu0
    %768 = vdwg.mxu0
    %769 = vst [vmem:[#allocation3] sm:$0xff] %v618
    %770 = vst [vmem:[#allocation3 + $0x8] sm:$0xff] %v620
    %771 = vst [vmem:[#allocation3 + $0x10] sm:$0xff] %v731
    %772 = vst [vmem:[#allocation3 + $0x18] sm:$0xff] %v624
    %773 = vst [vmem:[#allocation3 + $0x20] sm:$0xff] %v626
    %774 = vst [vmem:[#allocation3 + $0x28] sm:$0xff] %v736
    %775 = vst [vmem:[#allocation3 + $0x30] sm:$0xff] %v630
    %776 = vst [vmem:[#allocation3 + $0x38] sm:$0xff] %v632
    %777 = vst [vmem:[#allocation3 + $0x40] sm:$0xff] %v741
    %778 = vst [vmem:[#allocation3 + $0x48] sm:$0xff] %v636
    %779 = vst [vmem:[#allocation3 + $0x50] sm:$0xff] %v638
    %780 = vst [vmem:[#allocation3 + $0x58] sm:$0xff] %v746
    %781 = vst [vmem:[#allocation3 + $0x60] sm:$0xff] %v642
    %782 = vst [vmem:[#allocation3 + $0x68] sm:$0xff] %v644
    %783 = vst [vmem:[#allocation3 + $0x70] sm:$0xff] %v751
    %784 = vst [vmem:[#allocation3 + $0x78] sm:$0xff] %v648
    %785 = vst [vmem:[#allocation3 + $0x80] sm:$0xff] %v650
    %786 = vst [vmem:[#allocation3 + $0x88] sm:$0xff] %v756
    %787 = vst [vmem:[#allocation3 + $0x90] sm:$0xff] %v654
    %788 = vst [vmem:[#allocation3 + $0x98] sm:$0xff] %v656
    %789 = vst [vmem:[#allocation3 + $0xa0] sm:$0xff] %v761
    %790 = vst [vmem:[#allocation3 + $0xa8] sm:$0xff] %v660
    %791 = vst [vmem:[#allocation3 + $0xb0] sm:$0xff] %v662
    %792 = vst [vmem:[#allocation3 + $0xb8] sm:$0xff] %v766
    %s793 = smul.u32 0, 3
    %s794 = smul.addr %s793, 8
    %s795 = scalar_lea.vmem [#allocation2], %s794
    %v796 = vld [vmem:[%s795] sm:$0xff]
    %v797 = vld [vmem:[%s795 + $0x8] sm:$0xff]
    %v798 = vld [vmem:[%s795 + $0x10] sm:$0xff]
    %v799 = vld [vmem:[#allocation11] sm:$0xff]
    %v800 = vld [vmem:[#allocation11 + $0x8] sm:$0xff]
    %v801 = vld [vmem:[#allocation11 + $0x10] sm:$0xff]
    %v802 = vld [vmem:[#allocation11 + $0x18] sm:$0xff]
    %v803 = vld [vmem:[#allocation11 + $0x20] sm:$0xff]
    %v804 = vld [vmem:[#allocation11 + $0x28] sm:$0xff]
    %v805 = vld [vmem:[#allocation11 + $0x30] sm:$0xff]
    %v806 = vld [vmem:[#allocation11 + $0x38] sm:$0xff]
    %v807 = vld [vmem:[#allocation11 + $0x40] sm:$0xff]
    %v808 = vld [vmem:[#allocation11 + $0x48] sm:$0xff]
    %v809 = vld [vmem:[#allocation11 + $0x50] sm:$0xff]
    %v810 = vld [vmem:[#allocation11 + $0x58] sm:$0xff]
    %v811 = vld [vmem:[#allocation11 + $0x60] sm:$0xff]
    %v812 = vld [vmem:[#allocation11 + $0x68] sm:$0xff]
    %v813 = vld [vmem:[#allocation11 + $0x70] sm:$0xff]
    %v814 = vld [vmem:[#allocation11 + $0x78] sm:$0xff]
    %v815 = vld [vmem:[#allocation11 + $0x80] sm:$0xff]
    %v816 = vld [vmem:[#allocation11 + $0x88] sm:$0xff]
    %v817 = vld [vmem:[#allocation11 + $0x90] sm:$0xff]
    %v818 = vld [vmem:[#allocation11 + $0x98] sm:$0xff]
    %v819 = vld [vmem:[#allocation11 + $0xa0] sm:$0xff]
    %v820 = vld [vmem:[#allocation11 + $0xa8] sm:$0xff]
    %v821 = vld [vmem:[#allocation11 + $0xb0] sm:$0xff]
    %v822 = vld [vmem:[#allocation11 + $0xb8] sm:$0xff]
    %v823 = vld [vmem:[#allocation11 + $0xc0] sm:$0xff]
    %v824 = vld [vmem:[#allocation11 + $0xc8] sm:$0xff]
    %v825 = vld [vmem:[#allocation11 + $0xd0] sm:$0xff]
    %v826 = vld [vmem:[#allocation11 + $0xd8] sm:$0xff]
    %v827 = vld [vmem:[#allocation11 + $0xe0] sm:$0xff]
    %v828 = vld [vmem:[#allocation11 + $0xe8] sm:$0xff]
    %v829 = vld [vmem:[#allocation11 + $0xf0] sm:$0xff]
    %v830 = vld [vmem:[#allocation11 + $0xf8] sm:$0xff]
    %v831 = vld [vmem:[#allocation11 + $0x100] sm:$0xff]
    %v832 = vld [vmem:[#allocation11 + $0x108] sm:$0xff]
    %v833 = vld [vmem:[#allocation11 + $0x110] sm:$0xff]
    %v834 = vld [vmem:[#allocation11 + $0x118] sm:$0xff]
    %v835 = vld [vmem:[#allocation11 + $0x120] sm:$0xff]
    %v836 = vld [vmem:[#allocation11 + $0x128] sm:$0xff]
    %v837 = vld [vmem:[#allocation11 + $0x130] sm:$0xff]
    %v838 = vld [vmem:[#allocation11 + $0x138] sm:$0xff]
    %v839 = vld [vmem:[#allocation11 + $0x140] sm:$0xff]
    %v840 = vld [vmem:[#allocation11 + $0x148] sm:$0xff]
    %v841 = vld [vmem:[#allocation11 + $0x150] sm:$0xff]
    %v842 = vld [vmem:[#allocation11 + $0x158] sm:$0xff]
    %v843 = vld [vmem:[#allocation11 + $0x160] sm:$0xff]
    %v844 = vld [vmem:[#allocation11 + $0x168] sm:$0xff]
    %v845 = vld [vmem:[#allocation11 + $0x170] sm:$0xff]
    %v846 = vld [vmem:[#allocation11 + $0x178] sm:$0xff]
    %v847 = vld [vmem:[%s7] sm:$0x7]
    %v849 = vlaneseq
    %v850 = vshrl.u32 %v849, 7
    %v851 = vsub.s32 0, %v850
    %v852 = vrot.slane %v847, %v851
    %v853 = vlaneseq
    %v854 = vshrl.u32 %v853, 7
    %v855 = vsub.s32 1, %v854
    %v856 = vrot.slane %v847, %v855
    %v857 = vlaneseq
    %v858 = vshrl.u32 %v857, 7
    %v859 = vsub.s32 2, %v858
    %v860 = vrot.slane %v847, %v859
    %864 = vmatprep.subr.mxu0 %v800
    %865 = vmatpush1.msra.mxu0 %v799
    %866 = vmatprep.subr.mxu0 %v803
    %867 = vmatpush1.msra.mxu0 %v802
    %868 = vmatprep.subr.mxu0 %v806
    %869 = vmatpush1.msra.mxu0 %v805
    %870 = vmatprep.subr.mxu0 %v809
    %871 = vmatpush1.msra.mxu0 %v808
    %872 = vmatprep.subr.mxu0 %v812
    %873 = vmatpush1.msra.mxu0 %v811
    %874 = vmatprep.subr.mxu0 %v815
    %875 = vmatpush1.msra.mxu0 %v814
    %876 = vmatprep.subr.mxu0 %v818
    %877 = vmatpush1.msra.mxu0 %v817
    %878 = vmatprep.subr.mxu0 %v821
    %879 = vmatpush1.msra.mxu0 %v820
    %880 = vmatprep.subr.mxu0 %v824
    %881 = vmatpush1.msra.mxu0 %v823
    %882 = vmatprep.subr.mxu0 %v827
    %883 = vmatpush1.msra.mxu0 %v826
    %884 = vmatprep.subr.mxu0 %v830
    %885 = vmatpush1.msra.mxu0 %v829
    %886 = vmatprep.subr.mxu0 %v833
    %887 = vmatpush1.msra.mxu0 %v832
    %888 = vmatprep.subr.mxu0 %v836
    %889 = vmatpush1.msra.mxu0 %v835
    %890 = vmatprep.subr.mxu0 %v839
    %891 = vmatpush1.msra.mxu0 %v838
    %892 = vmatprep.subr.mxu0 %v842
    %893 = vmatpush1.msra.mxu0 %v841
    %894 = vmatprep.subr.mxu0 %v845
    %895 = vmatpush1.msra.mxu0 %v844
    %896 = vmatprep.subr.mxu0 0.0
    %897 = vmatpush1.msra.mxu0 0.0
    %898 = vmatprep.subr.mxu0 0.0
    %899 = vmatpush1.msra.mxu0 0.0
    %900 = vmatprep.subr.mxu0 0.0
    %901 = vmatpush1.msra.mxu0 0.0
    %902 = vmatprep.subr.mxu0 0.0
    %903 = vmatpush1.msra.mxu0 0.0
    %904 = vmatprep.subr.mxu0 0.0
    %905 = vmatpush1.msra.mxu0 0.0
    %906 = vmatprep.subr.mxu0 0.0
    %907 = vmatpush1.msra.mxu0 0.0
    %908 = vmatprep.subr.mxu0 0.0
    %909 = vmatpush1.msra.mxu0 0.0
    %910 = vmatprep.subr.mxu0 0.0
    %911 = vmatpush1.msra.mxu0 0.0
    %912 = vmatprep.subr.mxu0 0.0
    %913 = vmatpush1.msra.mxu0 0.0
    %914 = vmatprep.subr.mxu0 0.0
    %915 = vmatpush1.msra.mxu0 0.0
    %916 = vmatprep.subr.mxu0 0.0
    %917 = vmatpush1.msra.mxu0 0.0
    %918 = vmatprep.subr.mxu0 0.0
    %919 = vmatpush1.msra.mxu0 0.0
    %920 = vmatprep.subr.mxu0 0.0
    %921 = vmatpush1.msra.mxu0 0.0
    %922 = vmatprep.subr.mxu0 0.0
    %923 = vmatpush1.msra.mxu0 0.0
    %924 = vmatprep.subr.mxu0 0.0
    %925 = vmatpush1.msra.mxu0 0.0
    %926 = vmatprep.subr.mxu0 0.0
    %927 = vmatpush1.msra.mxu0 0.0
    %928 = vmatprep.mubr.f32.mxu0 0.0
    %929 = vmatmul.mubr.f32.gmra.mrb[0].mxu0 0.0
    %v930 = vpop.f32.mrb[0].mxu0
    %v931 = vadd.f32 %v852, %v930
    %v932 = vpop.f32.mrb[0].mxu0
    %v933 = vadd.f32 %v856, %v932
    %934 = vdwg.mxu0
    %935 = vmatprep.subr.mxu0 0.0
    %936 = vmatpush1.msra.mxu0 %v801
    %937 = vmatprep.subr.mxu0 0.0
    %938 = vmatpush1.msra.mxu0 %v804
    %939 = vmatprep.subr.mxu0 0.0
    %940 = vmatpush1.msra.mxu0 %v807
    %941 = vmatprep.subr.mxu0 0.0
    %942 = vmatpush1.msra.mxu0 %v810
    %943 = vmatprep.subr.mxu0 0.0
    %944 = vmatpush1.msra.mxu0 %v813
    %945 = vmatprep.subr.mxu0 0.0
    %946 = vmatpush1.msra.mxu0 %v816
    %947 = vmatprep.subr.mxu0 0.0
    %948 = vmatpush1.msra.mxu0 %v819
    %949 = vmatprep.subr.mxu0 0.0
    %950 = vmatpush1.msra.mxu0 %v822
    %951 = vmatprep.subr.mxu0 0.0
    %952 = vmatpush1.msra.mxu0 %v825
    %953 = vmatprep.subr.mxu0 0.0
    %954 = vmatpush1.msra.mxu0 %v828
    %955 = vmatprep.subr.mxu0 0.0
    %956 = vmatpush1.msra.mxu0 %v831
    %957 = vmatprep.subr.mxu0 0.0
    %958 = vmatpush1.msra.mxu0 %v834
    %959 = vmatprep.subr.mxu0 0.0
    %960 = vmatpush1.msra.mxu0 %v837
    %961 = vmatprep.subr.mxu0 0.0
    %962 = vmatpush1.msra.mxu0 %v840
    %963 = vmatprep.subr.mxu0 0.0
    %964 = vmatpush1.msra.mxu0 %v843
    %965 = vmatprep.subr.mxu0 0.0
    %966 = vmatpush1.msra.mxu0 %v846
    %967 = vmatprep.subr.mxu0 0.0
    %968 = vmatpush1.msra.mxu0 0.0
    %969 = vmatprep.subr.mxu0 0.0
    %970 = vmatpush1.msra.mxu0 0.0
    %971 = vmatprep.subr.mxu0 0.0
    %972 = vmatpush1.msra.mxu0 0.0
    %973 = vmatprep.subr.mxu0 0.0
    %974 = vmatpush1.msra.mxu0 0.0
    %975 = vmatprep.subr.mxu0 0.0
    %976 = vmatpush1.msra.mxu0 0.0
    %977 = vmatprep.subr.mxu0 0.0
    %978 = vmatpush1.msra.mxu0 0.0
    %979 = vmatprep.subr.mxu0 0.0
    %980 = vmatpush1.msra.mxu0 0.0
    %981 = vmatprep.subr.mxu0 0.0
    %982 = vmatpush1.msra.mxu0 0.0
    %983 = vmatprep.subr.mxu0 0.0
    %984 = vmatpush1.msra.mxu0 0.0
    %985 = vmatprep.subr.mxu0 0.0
    %986 = vmatpush1.msra.mxu0 0.0
    %987 = vmatprep.subr.mxu0 0.0
    %988 = vmatpush1.msra.mxu0 0.0
    %989 = vmatprep.subr.mxu0 0.0
    %990 = vmatpush1.msra.mxu0 0.0
    %991 = vmatprep.subr.mxu0 0.0
    %992 = vmatpush1.msra.mxu0 0.0
    %993 = vmatprep.subr.mxu0 0.0
    %994 = vmatpush1.msra.mxu0 0.0
    %995 = vmatprep.subr.mxu0 0.0
    %996 = vmatpush1.msra.mxu0 0.0
    %997 = vmatprep.subr.mxu0 0.0
    %998 = vmatpush1.msra.mxu0 0.0
    %999 = vmatprep.mubr.f32.mxu0 0.0
    %1000 = vmatmul.mubr.f32.gmra.mrb[0].mxu0 0.0
    %v1001 = vpop.f32.mrb[0].mxu0
    %v1002 = vadd.f32 %v860, %v1001
    %v1003 = vpop.f32.mrb[0].mxu0
    %1004 = vdwg.mxu0
    %v1005 = vadd.f32 %v796, %v931
    %v1006 = vxor.u32 %v1005, 2147483648
    %v1007 = vmul.f32 %v1006, 1.442695
    %v1008 = vpow.pop %v1007
    %v1009 = vadd.f32 %v1008, 1.0
    %v1010 = vrcp.pop %v1009
    %v1011 = vmul.f32 1.0, %v1010
    %v1012 = vadd.f32 %v797, %v933
    %v1013 = vxor.u32 %v1012, 2147483648
    %v1014 = vmul.f32 %v1013, 1.442695
    %v1015 = vpow.pop %v1014
    %v1016 = vadd.f32 %v1015, 1.0
    %v1017 = vrcp.pop %v1016
    %v1018 = vmul.f32 1.0, %v1017
    %v1019 = vmul.f32 %v1011, %v1002
    %v1020 = vadd.f32 %v798, %v1019
    %v1021 = vtanh.pop %v1020
    %v1022 = vsub.f32 1.0, %v1018
    %v1023 = vmul.f32 %v1022, %v1021
    %v1024 = vmul.f32 %v1018, 0.0
    %v1025 = vadd.f32 %v1023, %v1024
    %v1026 = vld [vmem:[%s2] sm:$0xff]
    %vm1027 = vcmp.eq.s32.totalorder %v1026, 0
    %v1028 = vsel %vm1027, 1, 0
    %1029 = vset.pattern.permute.xlu0 0
    %1030 = vperm.xlu0 %1029, %v1028
    %v1031 = vpop.permute.xlu0 %1030
    %vm1032 = vcmp.eq.s32.totalorder %v1031, 1
    %v1033 = vsel %vm1032, %v1025, 0.0
    %s1034 = smul.u32 1, 3
    %s1035 = smul.addr %s1034, 8
    %s1036 = scalar_lea.vmem [#allocation2], %s1035
    %v1037 = vld [vmem:[%s1036] sm:$0xff]
    %v1038 = vld [vmem:[%s1036 + $0x8] sm:$0xff]
    %v1039 = vld [vmem:[%s1036 + $0x10] sm:$0xff]
    %1040 = vmatprep.subr.mxu0 %v800
    %1041 = vmatpush1.msra.mxu0 %v799
    %1042 = vmatprep.subr.mxu0 %v803
    %1043 = vmatpush1.msra.mxu0 %v802
    %1044 = vmatprep.subr.mxu0 %v806
    %1045 = vmatpush1.msra.mxu0 %v805
    %1046 = vmatprep.subr.mxu0 %v809
    %1047 = vmatpush1.msra.mxu0 %v808
    %1048 = vmatprep.subr.mxu0 %v812
    %1049 = vmatpush1.msra.mxu0 %v811
    %1050 = vmatprep.subr.mxu0 %v815
    %1051 = vmatpush1.msra.mxu0 %v814
    %1052 = vmatprep.subr.mxu0 %v818
    %1053 = vmatpush1.msra.mxu0 %v817
    %1054 = vmatprep.subr.mxu0 %v821
    %1055 = vmatpush1.msra.mxu0 %v820
    %1056 = vmatprep.subr.mxu0 %v824
    %1057 = vmatpush1.msra.mxu0 %v823
    %1058 = vmatprep.subr.mxu0 %v827
    %1059 = vmatpush1.msra.mxu0 %v826
    %1060 = vmatprep.subr.mxu0 %v830
    %1061 = vmatpush1.msra.mxu0 %v829
    %1062 = vmatprep.subr.mxu0 %v833
    %1063 = vmatpush1.msra.mxu0 %v832
    %1064 = vmatprep.subr.mxu0 %v836
    %1065 = vmatpush1.msra.mxu0 %v835
    %1066 = vmatprep.subr.mxu0 %v839
    %1067 = vmatpush1.msra.mxu0 %v838
    %1068 = vmatprep.subr.mxu0 %v842
    %1069 = vmatpush1.msra.mxu0 %v841
    %1070 = vmatprep.subr.mxu0 %v845
    %1071 = vmatpush1.msra.mxu0 %v844
    %1072 = vmatprep.subr.mxu0 0.0
    %1073 = vmatpush1.msra.mxu0 0.0
    %1074 = vmatprep.subr.mxu0 0.0
    %1075 = vmatpush1.msra.mxu0 0.0
    %1076 = vmatprep.subr.mxu0 0.0
    %1077 = vmatpush1.msra.mxu0 0.0
    %1078 = vmatprep.subr.mxu0 0.0
    %1079 = vmatpush1.msra.mxu0 0.0
    %1080 = vmatprep.subr.mxu0 0.0
    %1081 = vmatpush1.msra.mxu0 0.0
    %1082 = vmatprep.subr.mxu0 0.0
    %1083 = vmatpush1.msra.mxu0 0.0
    %1084 = vmatprep.subr.mxu0 0.0
    %1085 = vmatpush1.msra.mxu0 0.0
    %1086 = vmatprep.subr.mxu0 0.0
    %1087 = vmatpush1.msra.mxu0 0.0
    %1088 = vmatprep.subr.mxu0 0.0
    %1089 = vmatpush1.msra.mxu0 0.0
    %1090 = vmatprep.subr.mxu0 0.0
    %1091 = vmatpush1.msra.mxu0 0.0
    %1092 = vmatprep.subr.mxu0 0.0
    %1093 = vmatpush1.msra.mxu0 0.0
    %1094 = vmatprep.subr.mxu0 0.0
    %1095 = vmatpush1.msra.mxu0 0.0
    %1096 = vmatprep.subr.mxu0 0.0
    %1097 = vmatpush1.msra.mxu0 0.0
    %1098 = vmatprep.subr.mxu0 0.0
    %1099 = vmatpush1.msra.mxu0 0.0
    %1100 = vmatprep.subr.mxu0 0.0
    %1101 = vmatpush1.msra.mxu0 0.0
    %1102 = vmatprep.subr.mxu0 0.0
    %1103 = vmatpush1.msra.mxu0 0.0
    %1104 = vmatprep.mubr.f32.mxu0 0.0
    %1105 = vmatmul.mubr.f32.gmra.mrb[0].mxu0 %v1025
    %v1106 = vpop.f32.mrb[0].mxu0
    %v1107 = vadd.f32 %v852, %v1106
    %v1108 = vpop.f32.mrb[0].mxu0
    %v1109 = vadd.f32 %v856, %v1108
    %1110 = vdwg.mxu0
    %1111 = vmatprep.subr.mxu0 0.0
    %1112 = vmatpush1.msra.mxu0 %v801
    %1113 = vmatprep.subr.mxu0 0.0
    %1114 = vmatpush1.msra.mxu0 %v804
    %1115 = vmatprep.subr.mxu0 0.0
    %1116 = vmatpush1.msra.mxu0 %v807
    %1117 = vmatprep.subr.mxu0 0.0
    %1118 = vmatpush1.msra.mxu0 %v810
    %1119 = vmatprep.subr.mxu0 0.0
    %1120 = vmatpush1.msra.mxu0 %v813
    %1121 = vmatprep.subr.mxu0 0.0
    %1122 = vmatpush1.msra.mxu0 %v816
    %1123 = vmatprep.subr.mxu0 0.0
    %1124 = vmatpush1.msra.mxu0 %v819
    %1125 = vmatprep.subr.mxu0 0.0
    %1126 = vmatpush1.msra.mxu0 %v822
    %1127 = vmatprep.subr.mxu0 0.0
    %1128 = vmatpush1.msra.mxu0 %v825
    %1129 = vmatprep.subr.mxu0 0.0
    %1130 = vmatpush1.msra.mxu0 %v828
    %1131 = vmatprep.subr.mxu0 0.0
    %1132 = vmatpush1.msra.mxu0 %v831
    %1133 = vmatprep.subr.mxu0 0.0
    %1134 = vmatpush1.msra.mxu0 %v834
    %1135 = vmatprep.subr.mxu0 0.0
    %1136 = vmatpush1.msra.mxu0 %v837
    %1137 = vmatprep.subr.mxu0 0.0
    %1138 = vmatpush1.msra.mxu0 %v840
    %1139 = vmatprep.subr.mxu0 0.0
    %1140 = vmatpush1.msra.mxu0 %v843
    %1141 = vmatprep.subr.mxu0 0.0
    %1142 = vmatpush1.msra.mxu0 %v846
    %1143 = vmatprep.subr.mxu0 0.0
    %1144 = vmatpush1.msra.mxu0 0.0
    %1145 = vmatprep.subr.mxu0 0.0
    %1146 = vmatpush1.msra.mxu0 0.0
    %1147 = vmatprep.subr.mxu0 0.0
    %1148 = vmatpush1.msra.mxu0 0.0
    %1149 = vmatprep.subr.mxu0 0.0
    %1150 = vmatpush1.msra.mxu0 0.0
    %1151 = vmatprep.subr.mxu0 0.0
    %1152 = vmatpush1.msra.mxu0 0.0
    %1153 = vmatprep.subr.mxu0 0.0
    %1154 = vmatpush1.msra.mxu0 0.0
    %1155 = vmatprep.subr.mxu0 0.0
    %1156 = vmatpush1.msra.mxu0 0.0
    %1157 = vmatprep.subr.mxu0 0.0
    %1158 = vmatpush1.msra.mxu0 0.0
    %1159 = vmatprep.subr.mxu0 0.0
    %1160 = vmatpush1.msra.mxu0 0.0
    %1161 = vmatprep.subr.mxu0 0.0
    %1162 = vmatpush1.msra.mxu0 0.0
    %1163 = vmatprep.subr.mxu0 0.0
    %1164 = vmatpush1.msra.mxu0 0.0
    %1165 = vmatprep.subr.mxu0 0.0
    %1166 = vmatpush1.msra.mxu0 0.0
    %1167 = vmatprep.subr.mxu0 0.0
    %1168 = vmatpush1.msra.mxu0 0.0
    %1169 = vmatprep.subr.mxu0 0.0
    %1170 = vmatpush1.msra.mxu0 0.0
    %1171 = vmatprep.subr.mxu0 0.0
    %1172 = vmatpush1.msra.mxu0 0.0
    %1173 = vmatprep.subr.mxu0 0.0
    %1174 = vmatpush1.msra.mxu0 0.0
    %1175 = vmatprep.mubr.f32.mxu0 0.0
    %1176 = vmatmul.mubr.f32.gmra.mrb[0].mxu0 %v1025
    %v1177 = vpop.f32.mrb[0].mxu0
    %v1178 = vadd.f32 %v860, %v1177
    %v1179 = vpop.f32.mrb[0].mxu0
    %1180 = vdwg.mxu0
    %v1181 = vadd.f32 %v1037, %v1107
    %v1182 = vxor.u32 %v1181, 2147483648
    %v1183 = vmul.f32 %v1182, 1.442695
    %v1184 = vpow.pop %v1183
    %v1185 = vadd.f32 %v1184, 1.0
    %v1186 = vrcp.pop %v1185
    %v1187 = vmul.f32 1.0, %v1186
    %v1188 = vadd.f32 %v1038, %v1109
    %v1189 = vxor.u32 %v1188, 2147483648
    %v1190 = vmul.f32 %v1189, 1.442695
    %v1191 = vpow.pop %v1190
    %v1192 = vadd.f32 %v1191, 1.0
    %v1193 = vrcp.pop %v1192
    %v1194 = vmul.f32 1.0, %v1193
    %v1195 = vmul.f32 %v1187, %v1178
    %v1196 = vadd.f32 %v1039, %v1195
    %v1197 = vtanh.pop %v1196
    %v1198 = vsub.f32 1.0, %v1194
    %v1199 = vmul.f32 %v1198, %v1197
    %v1200 = vmul.f32 %v1194, %v1025
    %v1201 = vadd.f32 %v1199, %v1200
    %vm1202 = vcmp.eq.s32.totalorder %v1026, 1
    %v1203 = vsel %vm1202, 1, 0
    %1204 = vset.pattern.permute.xlu0 0
    %1205 = vperm.xlu0 %1204, %v1203
    %v1206 = vpop.permute.xlu0 %1205
    %vm1207 = vcmp.eq.s32.totalorder %v1206, 1
    %v1208 = vsel %vm1207, %v1201, %v1033
    %s1209 = smul.u32 2, 3
    %s1210 = smul.addr %s1209, 8
    %s1211 = scalar_lea.vmem [#allocation2], %s1210
    %v1212 = vld [vmem:[%s1211] sm:$0xff]
    %v1213 = vld [vmem:[%s1211 + $0x8] sm:$0xff]
    %v1214 = vld [vmem:[%s1211 + $0x10] sm:$0xff]
    %1215 = vmatprep.subr.mxu0 %v800
    %1216 = vmatpush1.msra.mxu0 %v799
    %1217 = vmatprep.subr.mxu0 %v803
    %1218 = vmatpush1.msra.mxu0 %v802
    %1219 = vmatprep.subr.mxu0 %v806
    %1220 = vmatpush1.msra.mxu0 %v805
    %1221 = vmatprep.subr.mxu0 %v809
    %1222 = vmatpush1.msra.mxu0 %v808
    %1223 = vmatprep.subr.mxu0 %v812
    %1224 = vmatpush1.msra.mxu0 %v811
    %1225 = vmatprep.subr.mxu0 %v815
    %1226 = vmatpush1.msra.mxu0 %v814
    %1227 = vmatprep.subr.mxu0 %v818
    %1228 = vmatpush1.msra.mxu0 %v817
    %1229 = vmatprep.subr.mxu0 %v821
    %1230 = vmatpush1.msra.mxu0 %v820
    %1231 = vmatprep.subr.mxu0 %v824
    %1232 = vmatpush1.msra.mxu0 %v823
    %1233 = vmatprep.subr.mxu0 %v827
    %1234 = vmatpush1.msra.mxu0 %v826
    %1235 = vmatprep.subr.mxu0 %v830
    %1236 = vmatpush1.msra.mxu0 %v829
    %1237 = vmatprep.subr.mxu0 %v833
    %1238 = vmatpush1.msra.mxu0 %v832
    %1239 = vmatprep.subr.mxu0 %v836
    %1240 = vmatpush1.msra.mxu0 %v835
    %1241 = vmatprep.subr.mxu0 %v839
    %1242 = vmatpush1.msra.mxu0 %v838
    %1243 = vmatprep.subr.mxu0 %v842
    %1244 = vmatpush1.msra.mxu0 %v841
    %1245 = vmatprep.subr.mxu0 %v845
    %1246 = vmatpush1.msra.mxu0 %v844
    %1247 = vmatprep.subr.mxu0 0.0
    %1248 = vmatpush1.msra.mxu0 0.0
    %1249 = vmatprep.subr.mxu0 0.0
    %1250 = vmatpush1.msra.mxu0 0.0
    %1251 = vmatprep.subr.mxu0 0.0
    %1252 = vmatpush1.msra.mxu0 0.0
    %1253 = vmatprep.subr.mxu0 0.0
    %1254 = vmatpush1.msra.mxu0 0.0
    %1255 = vmatprep.subr.mxu0 0.0
    %1256 = vmatpush1.msra.mxu0 0.0
    %1257 = vmatprep.subr.mxu0 0.0
    %1258 = vmatpush1.msra.mxu0 0.0
    %1259 = vmatprep.subr.mxu0 0.0
    %1260 = vmatpush1.msra.mxu0 0.0
    %1261 = vmatprep.subr.mxu0 0.0
    %1262 = vmatpush1.msra.mxu0 0.0
    %1263 = vmatprep.subr.mxu0 0.0
    %1264 = vmatpush1.msra.mxu0 0.0
    %1265 = vmatprep.subr.mxu0 0.0
    %1266 = vmatpush1.msra.mxu0 0.0
    %1267 = vmatprep.subr.mxu0 0.0
    %1268 = vmatpush1.msra.mxu0 0.0
    %1269 = vmatprep.subr.mxu0 0.0
    %1270 = vmatpush1.msra.mxu0 0.0
    %1271 = vmatprep.subr.mxu0 0.0
    %1272 = vmatpush1.msra.mxu0 0.0
    %1273 = vmatprep.subr.mxu0 0.0
    %1274 = vmatpush1.msra.mxu0 0.0
    %1275 = vmatprep.subr.mxu0 0.0
    %1276 = vmatpush1.msra.mxu0 0.0
    %1277 = vmatprep.subr.mxu0 0.0
    %1278 = vmatpush1.msra.mxu0 0.0
    %1279 = vmatprep.mubr.f32.mxu0 0.0
    %1280 = vmatmul.mubr.f32.gmra.mrb[0].mxu0 %v1201
    %v1281 = vpop.f32.mrb[0].mxu0
    %v1282 = vadd.f32 %v852, %v1281
    %v1283 = vpop.f32.mrb[0].mxu0
    %v1284 = vadd.f32 %v856, %v1283
    %1285 = vdwg.mxu0
    %1286 = vmatprep.subr.mxu0 0.0
    %1287 = vmatpush1.msra.mxu0 %v801
    %1288 = vmatprep.subr.mxu0 0.0
    %1289 = vmatpush1.msra.mxu0 %v804
    %1290 = vmatprep.subr.mxu0 0.0
    %1291 = vmatpush1.msra.mxu0 %v807
    %1292 = vmatprep.subr.mxu0 0.0
    %1293 = vmatpush1.msra.mxu0 %v810
    %1294 = vmatprep.subr.mxu0 0.0
    %1295 = vmatpush1.msra.mxu0 %v813
    %1296 = vmatprep.subr.mxu0 0.0
    %1297 = vmatpush1.msra.mxu0 %v816
    %1298 = vmatprep.subr.mxu0 0.0
    %1299 = vmatpush1.msra.mxu0 %v819
    %1300 = vmatprep.subr.mxu0 0.0
    %1301 = vmatpush1.msra.mxu0 %v822
    %1302 = vmatprep.subr.mxu0 0.0
    %1303 = vmatpush1.msra.mxu0 %v825
    %1304 = vmatprep.subr.mxu0 0.0
    %1305 = vmatpush1.msra.mxu0 %v828
    %1306 = vmatprep.subr.mxu0 0.0
    %1307 = vmatpush1.msra.mxu0 %v831
    %1308 = vmatprep.subr.mxu0 0.0
    %1309 = vmatpush1.msra.mxu0 %v834
    %1310 = vmatprep.subr.mxu0 0.0
    %1311 = vmatpush1.msra.mxu0 %v837
    %1312 = vmatprep.subr.mxu0 0.0
    %1313 = vmatpush1.msra.mxu0 %v840
    %1314 = vmatprep.subr.mxu0 0.0
    %1315 = vmatpush1.msra.mxu0 %v843
    %1316 = vmatprep.subr.mxu0 0.0
    %1317 = vmatpush1.msra.mxu0 %v846
    %1318 = vmatprep.subr.mxu0 0.0
    %1319 = vmatpush1.msra.mxu0 0.0
    %1320 = vmatprep.subr.mxu0 0.0
    %1321 = vmatpush1.msra.mxu0 0.0
    %1322 = vmatprep.subr.mxu0 0.0
    %1323 = vmatpush1.msra.mxu0 0.0
    %1324 = vmatprep.subr.mxu0 0.0
    %1325 = vmatpush1.msra.mxu0 0.0
    %1326 = vmatprep.subr.mxu0 0.0
    %1327 = vmatpush1.msra.mxu0 0.0
    %1328 = vmatprep.subr.mxu0 0.0
    %1329 = vmatpush1.msra.mxu0 0.0
    %1330 = vmatprep.subr.mxu0 0.0
    %1331 = vmatpush1.msra.mxu0 0.0
    %1332 = vmatprep.subr.mxu0 0.0
    %1333 = vmatpush1.msra.mxu0 0.0
    %1334 = vmatprep.subr.mxu0 0.0
    %1335 = vmatpush1.msra.mxu0 0.0
    %1336 = vmatprep.subr.mxu0 0.0
    %1337 = vmatpush1.msra.mxu0 0.0
    %1338 = vmatprep.subr.mxu0 0.0
    %1339 = vmatpush1.msra.mxu0 0.0
    %1340 = vmatprep.subr.mxu0 0.0
    %1341 = vmatpush1.msra.mxu0 0.0
    %1342 = vmatprep.subr.mxu0 0.0
    %1343 = vmatpush1.msra.mxu0 0.0
    %1344 = vmatprep.subr.mxu0 0.0
    %1345 = vmatpush1.msra.mxu0 0.0
    %1346 = vmatprep.subr.mxu0 0.0
    %1347 = vmatpush1.msra.mxu0 0.0
    %1348 = vmatprep.subr.mxu0 0.0
    %1349 = vmatpush1.msra.mxu0 0.0
    %1350 = vmatprep.mubr.f32.mxu0 0.0
    %1351 = vmatmul.mubr.f32.gmra.mrb[0].mxu0 %v1201
    %v1352 = vpop.f32.mrb[0].mxu0
    %v1353 = vadd.f32 %v860, %v1352
    %v1354 = vpop.f32.mrb[0].mxu0
    %1355 = vdwg.mxu0
    %v1356 = vadd.f32 %v1212, %v1282
    %v1357 = vxor.u32 %v1356, 2147483648
    %v1358 = vmul.f32 %v1357, 1.442695
    %v1359 = vpow.pop %v1358
    %v1360 = vadd.f32 %v1359, 1.0
    %v1361 = vrcp.pop %v1360
    %v1362 = vmul.f32 1.0, %v1361
    %v1363 = vadd.f32 %v1213, %v1284
    %v1364 = vxor.u32 %v1363, 2147483648
    %v1365 = vmul.f32 %v1364, 1.442695
    %v1366 = vpow.pop %v1365
    %v1367 = vadd.f32 %v1366, 1.0
    %v1368 = vrcp.pop %v1367
    %v1369 = vmul.f32 1.0, %v1368
    %v1370 = vmul.f32 %v1362, %v1353
    %v1371 = vadd.f32 %v1214, %v1370
    %v1372 = vtanh.pop %v1371
    %v1373 = vsub.f32 1.0, %v1369
    %v1374 = vmul.f32 %v1373, %v1372
    %v1375 = vmul.f32 %v1369, %v1201
    %v1376 = vadd.f32 %v1374, %v1375
    %vm1377 = vcmp.eq.s32.totalorder %v1026, 2
    %v1378 = vsel %vm1377, 1, 0
    %1379 = vset.pattern.permute.xlu0 0
    %1380 = vperm.xlu0 %1379, %v1378
    %v1381 = vpop.permute.xlu0 %1380
    %vm1382 = vcmp.eq.s32.totalorder %v1381, 1
    %v1383 = vsel %vm1382, %v1376, %v1208
    %s1384 = smul.u32 3, 3
    %s1385 = smul.addr %s1384, 8
    %s1386 = scalar_lea.vmem [#allocation2], %s1385
    %v1387 = vld [vmem:[%s1386] sm:$0xff]
    %v1388 = vld [vmem:[%s1386 + $0x8] sm:$0xff]
    %v1389 = vld [vmem:[%s1386 + $0x10] sm:$0xff]
    %1390 = vmatprep.subr.mxu0 %v800
    %1391 = vmatpush1.msra.mxu0 %v799
    %1392 = vmatprep.subr.mxu0 %v803
    %1393 = vmatpush1.msra.mxu0 %v802
    %1394 = vmatprep.subr.mxu0 %v806
    %1395 = vmatpush1.msra.mxu0 %v805
    %1396 = vmatprep.subr.mxu0 %v809
    %1397 = vmatpush1.msra.mxu0 %v808
    %1398 = vmatprep.subr.mxu0 %v812
    %1399 = vmatpush1.msra.mxu0 %v811
    %1400 = vmatprep.subr.mxu0 %v815
    %1401 = vmatpush1.msra.mxu0 %v814
    %1402 = vmatprep.subr.mxu0 %v818
    %1403 = vmatpush1.msra.mxu0 %v817
    %1404 = vmatprep.subr.mxu0 %v821
    %1405 = vmatpush1.msra.mxu0 %v820
    %1406 = vmatprep.subr.mxu0 %v824
    %1407 = vmatpush1.msra.mxu0 %v823
    %1408 = vmatprep.subr.mxu0 %v827
    %1409 = vmatpush1.msra.mxu0 %v826
    %1410 = vmatprep.subr.mxu0 %v830
    %1411 = vmatpush1.msra.mxu0 %v829
    %1412 = vmatprep.subr.mxu0 %v833
    %1413 = vmatpush1.msra.mxu0 %v832
    %1414 = vmatprep.subr.mxu0 %v836
    %1415 = vmatpush1.msra.mxu0 %v835
    %1416 = vmatprep.subr.mxu0 %v839
    %1417 = vmatpush1.msra.mxu0 %v838
    %1418 = vmatprep.subr.mxu0 %v842
    %1419 = vmatpush1.msra.mxu0 %v841
    %1420 = vmatprep.subr.mxu0 %v845
    %1421 = vmatpush1.msra.mxu0 %v844
    %1422 = vmatprep.subr.mxu0 0.0
    %1423 = vmatpush1.msra.mxu0 0.0
    %1424 = vmatprep.subr.mxu0 0.0
    %1425 = vmatpush1.msra.mxu0 0.0
    %1426 = vmatprep.subr.mxu0 0.0
    %1427 = vmatpush1.msra.mxu0 0.0
    %1428 = vmatprep.subr.mxu0 0.0
    %1429 = vmatpush1.msra.mxu0 0.0
    %1430 = vmatprep.subr.mxu0 0.0
    %1431 = vmatpush1.msra.mxu0 0.0
    %1432 = vmatprep.subr.mxu0 0.0
    %1433 = vmatpush1.msra.mxu0 0.0
    %1434 = vmatprep.subr.mxu0 0.0
    %1435 = vmatpush1.msra.mxu0 0.0
    %1436 = vmatprep.subr.mxu0 0.0
    %1437 = vmatpush1.msra.mxu0 0.0
    %1438 = vmatprep.subr.mxu0 0.0
    %1439 = vmatpush1.msra.mxu0 0.0
    %1440 = vmatprep.subr.mxu0 0.0
    %1441 = vmatpush1.msra.mxu0 0.0
    %1442 = vmatprep.subr.mxu0 0.0
    %1443 = vmatpush1.msra.mxu0 0.0
    %1444 = vmatprep.subr.mxu0 0.0
    %1445 = vmatpush1.msra.mxu0 0.0
    %1446 = vmatprep.subr.mxu0 0.0
    %1447 = vmatpush1.msra.mxu0 0.0
    %1448 = vmatprep.subr.mxu0 0.0
    %1449 = vmatpush1.msra.mxu0 0.0
    %1450 = vmatprep.subr.mxu0 0.0
    %1451 = vmatpush1.msra.mxu0 0.0
    %1452 = vmatprep.subr.mxu0 0.0
    %1453 = vmatpush1.msra.mxu0 0.0
    %1454 = vmatprep.mubr.f32.mxu0 0.0
    %1455 = vmatmul.mubr.f32.gmra.mrb[0].mxu0 %v1376
    %v1456 = vpop.f32.mrb[0].mxu0
    %v1457 = vadd.f32 %v852, %v1456
    %v1458 = vpop.f32.mrb[0].mxu0
    %v1459 = vadd.f32 %v856, %v1458
    %1460 = vdwg.mxu0
    %1461 = vmatprep.subr.mxu0 0.0
    %1462 = vmatpush1.msra.mxu0 %v801
    %1463 = vmatprep.subr.mxu0 0.0
    %1464 = vmatpush1.msra.mxu0 %v804
    %1465 = vmatprep.subr.mxu0 0.0
    %1466 = vmatpush1.msra.mxu0 %v807
    %1467 = vmatprep.subr.mxu0 0.0
    %1468 = vmatpush1.msra.mxu0 %v810
    %1469 = vmatprep.subr.mxu0 0.0
    %1470 = vmatpush1.msra.mxu0 %v813
    %1471 = vmatprep.subr.mxu0 0.0
    %1472 = vmatpush1.msra.mxu0 %v816
    %1473 = vmatprep.subr.mxu0 0.0
    %1474 = vmatpush1.msra.mxu0 %v819
    %1475 = vmatprep.subr.mxu0 0.0
    %1476 = vmatpush1.msra.mxu0 %v822
    %1477 = vmatprep.subr.mxu0 0.0
    %1478 = vmatpush1.msra.mxu0 %v825
    %1479 = vmatprep.subr.mxu0 0.0
    %1480 = vmatpush1.msra.mxu0 %v828
    %1481 = vmatprep.subr.mxu0 0.0
    %1482 = vmatpush1.msra.mxu0 %v831
    %1483 = vmatprep.subr.mxu0 0.0
    %1484 = vmatpush1.msra.mxu0 %v834
    %1485 = vmatprep.subr.mxu0 0.0
    %1486 = vmatpush1.msra.mxu0 %v837
    %1487 = vmatprep.subr.mxu0 0.0
    %1488 = vmatpush1.msra.mxu0 %v840
    %1489 = vmatprep.subr.mxu0 0.0
    %1490 = vmatpush1.msra.mxu0 %v843
    %1491 = vmatprep.subr.mxu0 0.0
    %1492 = vmatpush1.msra.mxu0 %v846
    %1493 = vmatprep.subr.mxu0 0.0
    %1494 = vmatpush1.msra.mxu0 0.0
    %1495 = vmatprep.subr.mxu0 0.0
    %1496 = vmatpush1.msra.mxu0 0.0
    %1497 = vmatprep.subr.mxu0 0.0
    %1498 = vmatpush1.msra.mxu0 0.0
    %1499 = vmatprep.subr.mxu0 0.0
    %1500 = vmatpush1.msra.mxu0 0.0
    %1501 = vmatprep.subr.mxu0 0.0
    %1502 = vmatpush1.msra.mxu0 0.0
    %1503 = vmatprep.subr.mxu0 0.0
    %1504 = vmatpush1.msra.mxu0 0.0
    %1505 = vmatprep.subr.mxu0 0.0
    %1506 = vmatpush1.msra.mxu0 0.0
    %1507 = vmatprep.subr.mxu0 0.0
    %1508 = vmatpush1.msra.mxu0 0.0
    %1509 = vmatprep.subr.mxu0 0.0
    %1510 = vmatpush1.msra.mxu0 0.0
    %1511 = vmatprep.subr.mxu0 0.0
    %1512 = vmatpush1.msra.mxu0 0.0
    %1513 = vmatprep.subr.mxu0 0.0
    %1514 = vmatpush1.msra.mxu0 0.0
    %1515 = vmatprep.subr.mxu0 0.0
    %1516 = vmatpush1.msra.mxu0 0.0
    %1517 = vmatprep.subr.mxu0 0.0
    %1518 = vmatpush1.msra.mxu0 0.0
    %1519 = vmatprep.subr.mxu0 0.0
    %1520 = vmatpush1.msra.mxu0 0.0
    %1521 = vmatprep.subr.mxu0 0.0
    %1522 = vmatpush1.msra.mxu0 0.0
    %1523 = vmatprep.subr.mxu0 0.0
    %1524 = vmatpush1.msra.mxu0 0.0
    %1525 = vmatprep.mubr.f32.mxu0 0.0
    %1526 = vmatmul.mubr.f32.gmra.mrb[0].mxu0 %v1376
    %v1527 = vpop.f32.mrb[0].mxu0
    %v1528 = vadd.f32 %v860, %v1527
    %v1529 = vpop.f32.mrb[0].mxu0
    %1530 = vdwg.mxu0
    %v1531 = vadd.f32 %v1387, %v1457
    %v1532 = vxor.u32 %v1531, 2147483648
    %v1533 = vmul.f32 %v1532, 1.442695
    %v1534 = vpow.pop %v1533
    %v1535 = vadd.f32 %v1534, 1.0
    %v1536 = vrcp.pop %v1535
    %v1537 = vmul.f32 1.0, %v1536
    %v1538 = vadd.f32 %v1388, %v1459
    %v1539 = vxor.u32 %v1538, 2147483648
    %v1540 = vmul.f32 %v1539, 1.442695
    %v1541 = vpow.pop %v1540
    %v1542 = vadd.f32 %v1541, 1.0
    %v1543 = vrcp.pop %v1542
    %v1544 = vmul.f32 1.0, %v1543
    %v1545 = vmul.f32 %v1537, %v1528
    %v1546 = vadd.f32 %v1389, %v1545
    %v1547 = vtanh.pop %v1546
    %v1548 = vsub.f32 1.0, %v1544
    %v1549 = vmul.f32 %v1548, %v1547
    %v1550 = vmul.f32 %v1544, %v1376
    %v1551 = vadd.f32 %v1549, %v1550
    %vm1552 = vcmp.eq.s32.totalorder %v1026, 3
    %v1553 = vsel %vm1552, 1, 0
    %1554 = vset.pattern.permute.xlu0 0
    %1555 = vperm.xlu0 %1554, %v1553
    %v1556 = vpop.permute.xlu0 %1555
    %vm1557 = vcmp.eq.s32.totalorder %v1556, 1
    %v1558 = vsel %vm1557, %v1551, %v1383
    %s1559 = smul.u32 4, 3
    %s1560 = smul.addr %s1559, 8
    %s1561 = scalar_lea.vmem [#allocation2], %s1560
    %v1562 = vld [vmem:[%s1561] sm:$0xff]
    %v1563 = vld [vmem:[%s1561 + $0x8] sm:$0xff]
    %v1564 = vld [vmem:[%s1561 + $0x10] sm:$0xff]
    %1565 = vmatprep.subr.mxu0 %v800
    %1566 = vmatpush1.msra.mxu0 %v799
    %1567 = vmatprep.subr.mxu0 %v803
    %1568 = vmatpush1.msra.mxu0 %v802
    %1569 = vmatprep.subr.mxu0 %v806
    %1570 = vmatpush1.msra.mxu0 %v805
    %1571 = vmatprep.subr.mxu0 %v809
    %1572 = vmatpush1.msra.mxu0 %v808
    %1573 = vmatprep.subr.mxu0 %v812
    %1574 = vmatpush1.msra.mxu0 %v811
    %1575 = vmatprep.subr.mxu0 %v815
    %1576 = vmatpush1.msra.mxu0 %v814
    %1577 = vmatprep.subr.mxu0 %v818
    %1578 = vmatpush1.msra.mxu0 %v817
    %1579 = vmatprep.subr.mxu0 %v821
    %1580 = vmatpush1.msra.mxu0 %v820
    %1581 = vmatprep.subr.mxu0 %v824
    %1582 = vmatpush1.msra.mxu0 %v823
    %1583 = vmatprep.subr.mxu0 %v827
    %1584 = vmatpush1.msra.mxu0 %v826
    %1585 = vmatprep.subr.mxu0 %v830
    %1586 = vmatpush1.msra.mxu0 %v829
    %1587 = vmatprep.subr.mxu0 %v833
    %1588 = vmatpush1.msra.mxu0 %v832
    %1589 = vmatprep.subr.mxu0 %v836
    %1590 = vmatpush1.msra.mxu0 %v835
    %1591 = vmatprep.subr.mxu0 %v839
    %1592 = vmatpush1.msra.mxu0 %v838
    %1593 = vmatprep.subr.mxu0 %v842
    %1594 = vmatpush1.msra.mxu0 %v841
    %1595 = vmatprep.subr.mxu0 %v845
    %1596 = vmatpush1.msra.mxu0 %v844
    %1597 = vmatprep.subr.mxu0 0.0
    %1598 = vmatpush1.msra.mxu0 0.0
    %1599 = vmatprep.subr.mxu0 0.0
    %1600 = vmatpush1.msra.mxu0 0.0
    %1601 = vmatprep.subr.mxu0 0.0
    %1602 = vmatpush1.msra.mxu0 0.0
    %1603 = vmatprep.subr.mxu0 0.0
    %1604 = vmatpush1.msra.mxu0 0.0
    %1605 = vmatprep.subr.mxu0 0.0
    %1606 = vmatpush1.msra.mxu0 0.0
    %1607 = vmatprep.subr.mxu0 0.0
    %1608 = vmatpush1.msra.mxu0 0.0
    %1609 = vmatprep.subr.mxu0 0.0
    %1610 = vmatpush1.msra.mxu0 0.0
    %1611 = vmatprep.subr.mxu0 0.0
    %1612 = vmatpush1.msra.mxu0 0.0
    %1613 = vmatprep.subr.mxu0 0.0
    %1614 = vmatpush1.msra.mxu0 0.0
    %1615 = vmatprep.subr.mxu0 0.0
    %1616 = vmatpush1.msra.mxu0 0.0
    %1617 = vmatprep.subr.mxu0 0.0
    %1618 = vmatpush1.msra.mxu0 0.0
    %1619 = vmatprep.subr.mxu0 0.0
    %1620 = vmatpush1.msra.mxu0 0.0
    %1621 = vmatprep.subr.mxu0 0.0
    %1622 = vmatpush1.msra.mxu0 0.0
    %1623 = vmatprep.subr.mxu0 0.0
    %1624 = vmatpush1.msra.mxu0 0.0
    %1625 = vmatprep.subr.mxu0 0.0
    %1626 = vmatpush1.msra.mxu0 0.0
    %1627 = vmatprep.subr.mxu0 0.0
    %1628 = vmatpush1.msra.mxu0 0.0
    %1629 = vmatprep.mubr.f32.mxu0 0.0
    %1630 = vmatmul.mubr.f32.gmra.mrb[0].mxu0 %v1551
    %v1631 = vpop.f32.mrb[0].mxu0
    %v1632 = vadd.f32 %v852, %v1631
    %v1633 = vpop.f32.mrb[0].mxu0
    %v1634 = vadd.f32 %v856, %v1633
    %1635 = vdwg.mxu0
    %1636 = vmatprep.subr.mxu0 0.0
    %1637 = vmatpush1.msra.mxu0 %v801
    %1638 = vmatprep.subr.mxu0 0.0
    %1639 = vmatpush1.msra.mxu0 %v804
    %1640 = vmatprep.subr.mxu0 0.0
    %1641 = vmatpush1.msra.mxu0 %v807
    %1642 = vmatprep.subr.mxu0 0.0
    %1643 = vmatpush1.msra.mxu0 %v810
    %1644 = vmatprep.subr.mxu0 0.0
    %1645 = vmatpush1.msra.mxu0 %v813
    %1646 = vmatprep.subr.mxu0 0.0
    %1647 = vmatpush1.msra.mxu0 %v816
    %1648 = vmatprep.subr.mxu0 0.0
    %1649 = vmatpush1.msra.mxu0 %v819
    %1650 = vmatprep.subr.mxu0 0.0
    %1651 = vmatpush1.msra.mxu0 %v822
    %1652 = vmatprep.subr.mxu0 0.0
    %1653 = vmatpush1.msra.mxu0 %v825
    %1654 = vmatprep.subr.mxu0 0.0
    %1655 = vmatpush1.msra.mxu0 %v828
    %1656 = vmatprep.subr.mxu0 0.0
    %1657 = vmatpush1.msra.mxu0 %v831
    %1658 = vmatprep.subr.mxu0 0.0
    %1659 = vmatpush1.msra.mxu0 %v834
    %1660 = vmatprep.subr.mxu0 0.0
    %1661 = vmatpush1.msra.mxu0 %v837
    %1662 = vmatprep.subr.mxu0 0.0
    %1663 = vmatpush1.msra.mxu0 %v840
    %1664 = vmatprep.subr.mxu0 0.0
    %1665 = vmatpush1.msra.mxu0 %v843
    %1666 = vmatprep.subr.mxu0 0.0
    %1667 = vmatpush1.msra.mxu0 %v846
    %1668 = vmatprep.subr.mxu0 0.0
    %1669 = vmatpush1.msra.mxu0 0.0
    %1670 = vmatprep.subr.mxu0 0.0
    %1671 = vmatpush1.msra.mxu0 0.0
    %1672 = vmatprep.subr.mxu0 0.0
    %1673 = vmatpush1.msra.mxu0 0.0
    %1674 = vmatprep.subr.mxu0 0.0
    %1675 = vmatpush1.msra.mxu0 0.0
    %1676 = vmatprep.subr.mxu0 0.0
    %1677 = vmatpush1.msra.mxu0 0.0
    %1678 = vmatprep.subr.mxu0 0.0
    %1679 = vmatpush1.msra.mxu0 0.0
    %1680 = vmatprep.subr.mxu0 0.0
    %1681 = vmatpush1.msra.mxu0 0.0
    %1682 = vmatprep.subr.mxu0 0.0
    %1683 = vmatpush1.msra.mxu0 0.0
    %1684 = vmatprep.subr.mxu0 0.0
    %1685 = vmatpush1.msra.mxu0 0.0
    %1686 = vmatprep.subr.mxu0 0.0
    %1687 = vmatpush1.msra.mxu0 0.0
    %1688 = vmatprep.subr.mxu0 0.0
    %1689 = vmatpush1.msra.mxu0 0.0
    %1690 = vmatprep.subr.mxu0 0.0
    %1691 = vmatpush1.msra.mxu0 0.0
    %1692 = vmatprep.subr.mxu0 0.0
    %1693 = vmatpush1.msra.mxu0 0.0
    %1694 = vmatprep.subr.mxu0 0.0
    %1695 = vmatpush1.msra.mxu0 0.0
    %1696 = vmatprep.subr.mxu0 0.0
    %1697 = vmatpush1.msra.mxu0 0.0
    %1698 = vmatprep.subr.mxu0 0.0
    %1699 = vmatpush1.msra.mxu0 0.0
    %1700 = vmatprep.mubr.f32.mxu0 0.0
    %1701 = vmatmul.mubr.f32.gmra.mrb[0].mxu0 %v1551
    %v1702 = vpop.f32.mrb[0].mxu0
    %v1703 = vadd.f32 %v860, %v1702
    %v1704 = vpop.f32.mrb[0].mxu0
    %1705 = vdwg.mxu0
    %v1706 = vadd.f32 %v1562, %v1632
    %v1707 = vxor.u32 %v1706, 2147483648
    %v1708 = vmul.f32 %v1707, 1.442695
    %v1709 = vpow.pop %v1708
    %v1710 = vadd.f32 %v1709, 1.0
    %v1711 = vrcp.pop %v1710
    %v1712 = vmul.f32 1.0, %v1711
    %v1713 = vadd.f32 %v1563, %v1634
    %v1714 = vxor.u32 %v1713, 2147483648
    %v1715 = vmul.f32 %v1714, 1.442695
    %v1716 = vpow.pop %v1715
    %v1717 = vadd.f32 %v1716, 1.0
    %v1718 = vrcp.pop %v1717
    %v1719 = vmul.f32 1.0, %v1718
    %v1720 = vmul.f32 %v1712, %v1703
    %v1721 = vadd.f32 %v1564, %v1720
    %v1722 = vtanh.pop %v1721
    %v1723 = vsub.f32 1.0, %v1719
    %v1724 = vmul.f32 %v1723, %v1722
    %v1725 = vmul.f32 %v1719, %v1551
    %v1726 = vadd.f32 %v1724, %v1725
    %vm1727 = vcmp.eq.s32.totalorder %v1026, 4
    %v1728 = vsel %vm1727, 1, 0
    %1729 = vset.pattern.permute.xlu0 0
    %1730 = vperm.xlu0 %1729, %v1728
    %v1731 = vpop.permute.xlu0 %1730
    %vm1732 = vcmp.eq.s32.totalorder %v1731, 1
    %v1733 = vsel %vm1732, %v1726, %v1558
    %s1734 = smul.u32 5, 3
    %s1735 = smul.addr %s1734, 8
    %s1736 = scalar_lea.vmem [#allocation2], %s1735
    %v1737 = vld [vmem:[%s1736] sm:$0xff]
    %v1738 = vld [vmem:[%s1736 + $0x8] sm:$0xff]
    %v1739 = vld [vmem:[%s1736 + $0x10] sm:$0xff]
    %1740 = vmatprep.subr.mxu0 %v800
    %1741 = vmatpush1.msra.mxu0 %v799
    %1742 = vmatprep.subr.mxu0 %v803
    %1743 = vmatpush1.msra.mxu0 %v802
    %1744 = vmatprep.subr.mxu0 %v806
    %1745 = vmatpush1.msra.mxu0 %v805
    %1746 = vmatprep.subr.mxu0 %v809
    %1747 = vmatpush1.msra.mxu0 %v808
    %1748 = vmatprep.subr.mxu0 %v812
    %1749 = vmatpush1.msra.mxu0 %v811
    %1750 = vmatprep.subr.mxu0 %v815
    %1751 = vmatpush1.msra.mxu0 %v814
    %1752 = vmatprep.subr.mxu0 %v818
    %1753 = vmatpush1.msra.mxu0 %v817
    %1754 = vmatprep.subr.mxu0 %v821
    %1755 = vmatpush1.msra.mxu0 %v820
    %1756 = vmatprep.subr.mxu0 %v824
    %1757 = vmatpush1.msra.mxu0 %v823
    %1758 = vmatprep.subr.mxu0 %v827
    %1759 = vmatpush1.msra.mxu0 %v826
    %1760 = vmatprep.subr.mxu0 %v830
    %1761 = vmatpush1.msra.mxu0 %v829
    %1762 = vmatprep.subr.mxu0 %v833
    %1763 = vmatpush1.msra.mxu0 %v832
    %1764 = vmatprep.subr.mxu0 %v836
    %1765 = vmatpush1.msra.mxu0 %v835
    %1766 = vmatprep.subr.mxu0 %v839
    %1767 = vmatpush1.msra.mxu0 %v838
    %1768 = vmatprep.subr.mxu0 %v842
    %1769 = vmatpush1.msra.mxu0 %v841
    %1770 = vmatprep.subr.mxu0 %v845
    %1771 = vmatpush1.msra.mxu0 %v844
    %1772 = vmatprep.subr.mxu0 0.0
    %1773 = vmatpush1.msra.mxu0 0.0
    %1774 = vmatprep.subr.mxu0 0.0
    %1775 = vmatpush1.msra.mxu0 0.0
    %1776 = vmatprep.subr.mxu0 0.0
    %1777 = vmatpush1.msra.mxu0 0.0
    %1778 = vmatprep.subr.mxu0 0.0
    %1779 = vmatpush1.msra.mxu0 0.0
    %1780 = vmatprep.subr.mxu0 0.0
    %1781 = vmatpush1.msra.mxu0 0.0
    %1782 = vmatprep.subr.mxu0 0.0
    %1783 = vmatpush1.msra.mxu0 0.0
    %1784 = vmatprep.subr.mxu0 0.0
    %1785 = vmatpush1.msra.mxu0 0.0
    %1786 = vmatprep.subr.mxu0 0.0
    %1787 = vmatpush1.msra.mxu0 0.0
    %1788 = vmatprep.subr.mxu0 0.0
    %1789 = vmatpush1.msra.mxu0 0.0
    %1790 = vmatprep.subr.mxu0 0.0
    %1791 = vmatpush1.msra.mxu0 0.0
    %1792 = vmatprep.subr.mxu0 0.0
    %1793 = vmatpush1.msra.mxu0 0.0
    %1794 = vmatprep.subr.mxu0 0.0
    %1795 = vmatpush1.msra.mxu0 0.0
    %1796 = vmatprep.subr.mxu0 0.0
    %1797 = vmatpush1.msra.mxu0 0.0
    %1798 = vmatprep.subr.mxu0 0.0
    %1799 = vmatpush1.msra.mxu0 0.0
    %1800 = vmatprep.subr.mxu0 0.0
    %1801 = vmatpush1.msra.mxu0 0.0
    %1802 = vmatprep.subr.mxu0 0.0
    %1803 = vmatpush1.msra.mxu0 0.0
    %1804 = vmatprep.mubr.f32.mxu0 0.0
    %1805 = vmatmul.mubr.f32.gmra.mrb[0].mxu0 %v1726
    %v1806 = vpop.f32.mrb[0].mxu0
    %v1807 = vadd.f32 %v852, %v1806
    %v1808 = vpop.f32.mrb[0].mxu0
    %v1809 = vadd.f32 %v856, %v1808
    %1810 = vdwg.mxu0
    %1811 = vmatprep.subr.mxu0 0.0
    %1812 = vmatpush1.msra.mxu0 %v801
    %1813 = vmatprep.subr.mxu0 0.0
    %1814 = vmatpush1.msra.mxu0 %v804
    %1815 = vmatprep.subr.mxu0 0.0
    %1816 = vmatpush1.msra.mxu0 %v807
    %1817 = vmatprep.subr.mxu0 0.0
    %1818 = vmatpush1.msra.mxu0 %v810
    %1819 = vmatprep.subr.mxu0 0.0
    %1820 = vmatpush1.msra.mxu0 %v813
    %1821 = vmatprep.subr.mxu0 0.0
    %1822 = vmatpush1.msra.mxu0 %v816
    %1823 = vmatprep.subr.mxu0 0.0
    %1824 = vmatpush1.msra.mxu0 %v819
    %1825 = vmatprep.subr.mxu0 0.0
    %1826 = vmatpush1.msra.mxu0 %v822
    %1827 = vmatprep.subr.mxu0 0.0
    %1828 = vmatpush1.msra.mxu0 %v825
    %1829 = vmatprep.subr.mxu0 0.0
    %1830 = vmatpush1.msra.mxu0 %v828
    %1831 = vmatprep.subr.mxu0 0.0
    %1832 = vmatpush1.msra.mxu0 %v831
    %1833 = vmatprep.subr.mxu0 0.0
    %1834 = vmatpush1.msra.mxu0 %v834
    %1835 = vmatprep.subr.mxu0 0.0
    %1836 = vmatpush1.msra.mxu0 %v837
    %1837 = vmatprep.subr.mxu0 0.0
    %1838 = vmatpush1.msra.mxu0 %v840
    %1839 = vmatprep.subr.mxu0 0.0
    %1840 = vmatpush1.msra.mxu0 %v843
    %1841 = vmatprep.subr.mxu0 0.0
    %1842 = vmatpush1.msra.mxu0 %v846
    %1843 = vmatprep.subr.mxu0 0.0
    %1844 = vmatpush1.msra.mxu0 0.0
    %1845 = vmatprep.subr.mxu0 0.0
    %1846 = vmatpush1.msra.mxu0 0.0
    %1847 = vmatprep.subr.mxu0 0.0
    %1848 = vmatpush1.msra.mxu0 0.0
    %1849 = vmatprep.subr.mxu0 0.0
    %1850 = vmatpush1.msra.mxu0 0.0
    %1851 = vmatprep.subr.mxu0 0.0
    %1852 = vmatpush1.msra.mxu0 0.0
    %1853 = vmatprep.subr.mxu0 0.0
    %1854 = vmatpush1.msra.mxu0 0.0
    %1855 = vmatprep.subr.mxu0 0.0
    %1856 = vmatpush1.msra.mxu0 0.0
    %1857 = vmatprep.subr.mxu0 0.0
    %1858 = vmatpush1.msra.mxu0 0.0
    %1859 = vmatprep.subr.mxu0 0.0
    %1860 = vmatpush1.msra.mxu0 0.0
    %1861 = vmatprep.subr.mxu0 0.0
    %1862 = vmatpush1.msra.mxu0 0.0
    %1863 = vmatprep.subr.mxu0 0.0
    %1864 = vmatpush1.msra.mxu0 0.0
    %1865 = vmatprep.subr.mxu0 0.0
    %1866 = vmatpush1.msra.mxu0 0.0
    %1867 = vmatprep.subr.mxu0 0.0
    %1868 = vmatpush1.msra.mxu0 0.0
    %1869 = vmatprep.subr.mxu0 0.0
    %1870 = vmatpush1.msra.mxu0 0.0
    %1871 = vmatprep.subr.mxu0 0.0
    %1872 = vmatpush1.msra.mxu0 0.0
    %1873 = vmatprep.subr.mxu0 0.0
    %1874 = vmatpush1.msra.mxu0 0.0
    %1875 = vmatprep.mubr.f32.mxu0 0.0
    %1876 = vmatmul.mubr.f32.gmra.mrb[0].mxu0 %v1726
    %v1877 = vpop.f32.mrb[0].mxu0
    %v1878 = vadd.f32 %v860, %v1877
    %v1879 = vpop.f32.mrb[0].mxu0
    %1880 = vdwg.mxu0
    %v1881 = vadd.f32 %v1737, %v1807
    %v1882 = vxor.u32 %v1881, 2147483648
    %v1883 = vmul.f32 %v1882, 1.442695
    %v1884 = vpow.pop %v1883
    %v1885 = vadd.f32 %v1884, 1.0
    %v1886 = vrcp.pop %v1885
    %v1887 = vmul.f32 1.0, %v1886
    %v1888 = vadd.f32 %v1738, %v1809
    %v1889 = vxor.u32 %v1888, 2147483648
    %v1890 = vmul.f32 %v1889, 1.442695
    %v1891 = vpow.pop %v1890
    %v1892 = vadd.f32 %v1891, 1.0
    %v1893 = vrcp.pop %v1892
    %v1894 = vmul.f32 1.0, %v1893
    %v1895 = vmul.f32 %v1887, %v1878
    %v1896 = vadd.f32 %v1739, %v1895
    %v1897 = vtanh.pop %v1896
    %v1898 = vsub.f32 1.0, %v1894
    %v1899 = vmul.f32 %v1898, %v1897
    %v1900 = vmul.f32 %v1894, %v1726
    %v1901 = vadd.f32 %v1899, %v1900
    %vm1902 = vcmp.eq.s32.totalorder %v1026, 5
    %v1903 = vsel %vm1902, 1, 0
    %1904 = vset.pattern.permute.xlu0 0
    %1905 = vperm.xlu0 %1904, %v1903
    %v1906 = vpop.permute.xlu0 %1905
    %vm1907 = vcmp.eq.s32.totalorder %v1906, 1
    %v1908 = vsel %vm1907, %v1901, %v1733
    %s1909 = smul.u32 6, 3
    %s1910 = smul.addr %s1909, 8
    %s1911 = scalar_lea.vmem [#allocation2], %s1910
    %v1912 = vld [vmem:[%s1911] sm:$0xff]
    %v1913 = vld [vmem:[%s1911 + $0x8] sm:$0xff]
    %v1914 = vld [vmem:[%s1911 + $0x10] sm:$0xff]
    %1915 = vmatprep.subr.mxu0 %v800
    %1916 = vmatpush1.msra.mxu0 %v799
    %1917 = vmatprep.subr.mxu0 %v803
    %1918 = vmatpush1.msra.mxu0 %v802
    %1919 = vmatprep.subr.mxu0 %v806
    %1920 = vmatpush1.msra.mxu0 %v805
    %1921 = vmatprep.subr.mxu0 %v809
    %1922 = vmatpush1.msra.mxu0 %v808
    %1923 = vmatprep.subr.mxu0 %v812
    %1924 = vmatpush1.msra.mxu0 %v811
    %1925 = vmatprep.subr.mxu0 %v815
    %1926 = vmatpush1.msra.mxu0 %v814
    %1927 = vmatprep.subr.mxu0 %v818
    %1928 = vmatpush1.msra.mxu0 %v817
    %1929 = vmatprep.subr.mxu0 %v821
    %1930 = vmatpush1.msra.mxu0 %v820
    %1931 = vmatprep.subr.mxu0 %v824
    %1932 = vmatpush1.msra.mxu0 %v823
    %1933 = vmatprep.subr.mxu0 %v827
    %1934 = vmatpush1.msra.mxu0 %v826
    %1935 = vmatprep.subr.mxu0 %v830
    %1936 = vmatpush1.msra.mxu0 %v829
    %1937 = vmatprep.subr.mxu0 %v833
    %1938 = vmatpush1.msra.mxu0 %v832
    %1939 = vmatprep.subr.mxu0 %v836
    %1940 = vmatpush1.msra.mxu0 %v835
    %1941 = vmatprep.subr.mxu0 %v839
    %1942 = vmatpush1.msra.mxu0 %v838
    %1943 = vmatprep.subr.mxu0 %v842
    %1944 = vmatpush1.msra.mxu0 %v841
    %1945 = vmatprep.subr.mxu0 %v845
    %1946 = vmatpush1.msra.mxu0 %v844
    %1947 = vmatprep.subr.mxu0 0.0
    %1948 = vmatpush1.msra.mxu0 0.0
    %1949 = vmatprep.subr.mxu0 0.0
    %1950 = vmatpush1.msra.mxu0 0.0
    %1951 = vmatprep.subr.mxu0 0.0
    %1952 = vmatpush1.msra.mxu0 0.0
    %1953 = vmatprep.subr.mxu0 0.0
    %1954 = vmatpush1.msra.mxu0 0.0
    %1955 = vmatprep.subr.mxu0 0.0
    %1956 = vmatpush1.msra.mxu0 0.0
    %1957 = vmatprep.subr.mxu0 0.0
    %1958 = vmatpush1.msra.mxu0 0.0
    %1959 = vmatprep.subr.mxu0 0.0
    %1960 = vmatpush1.msra.mxu0 0.0
    %1961 = vmatprep.subr.mxu0 0.0
    %1962 = vmatpush1.msra.mxu0 0.0
    %1963 = vmatprep.subr.mxu0 0.0
    %1964 = vmatpush1.msra.mxu0 0.0
    %1965 = vmatprep.subr.mxu0 0.0
    %1966 = vmatpush1.msra.mxu0 0.0
    %1967 = vmatprep.subr.mxu0 0.0
    %1968 = vmatpush1.msra.mxu0 0.0
    %1969 = vmatprep.subr.mxu0 0.0
    %1970 = vmatpush1.msra.mxu0 0.0
    %1971 = vmatprep.subr.mxu0 0.0
    %1972 = vmatpush1.msra.mxu0 0.0
    %1973 = vmatprep.subr.mxu0 0.0
    %1974 = vmatpush1.msra.mxu0 0.0
    %1975 = vmatprep.subr.mxu0 0.0
    %1976 = vmatpush1.msra.mxu0 0.0
    %1977 = vmatprep.subr.mxu0 0.0
    %1978 = vmatpush1.msra.mxu0 0.0
    %1979 = vmatprep.mubr.f32.mxu0 0.0
    %1980 = vmatmul.mubr.f32.gmra.mrb[0].mxu0 %v1901
    %v1981 = vpop.f32.mrb[0].mxu0
    %v1982 = vadd.f32 %v852, %v1981
    %v1983 = vpop.f32.mrb[0].mxu0
    %v1984 = vadd.f32 %v856, %v1983
    %1985 = vdwg.mxu0
    %1986 = vmatprep.subr.mxu0 0.0
    %1987 = vmatpush1.msra.mxu0 %v801
    %1988 = vmatprep.subr.mxu0 0.0
    %1989 = vmatpush1.msra.mxu0 %v804
    %1990 = vmatprep.subr.mxu0 0.0
    %1991 = vmatpush1.msra.mxu0 %v807
    %1992 = vmatprep.subr.mxu0 0.0
    %1993 = vmatpush1.msra.mxu0 %v810
    %1994 = vmatprep.subr.mxu0 0.0
    %1995 = vmatpush1.msra.mxu0 %v813
    %1996 = vmatprep.subr.mxu0 0.0
    %1997 = vmatpush1.msra.mxu0 %v816
    %1998 = vmatprep.subr.mxu0 0.0
    %1999 = vmatpush1.msra.mxu0 %v819
    %2000 = vmatprep.subr.mxu0 0.0
    %2001 = vmatpush1.msra.mxu0 %v822
    %2002 = vmatprep.subr.mxu0 0.0
    %2003 = vmatpush1.msra.mxu0 %v825
    %2004 = vmatprep.subr.mxu0 0.0
    %2005 = vmatpush1.msra.mxu0 %v828
    %2006 = vmatprep.subr.mxu0 0.0
    %2007 = vmatpush1.msra.mxu0 %v831
    %2008 = vmatprep.subr.mxu0 0.0
    %2009 = vmatpush1.msra.mxu0 %v834
    %2010 = vmatprep.subr.mxu0 0.0
    %2011 = vmatpush1.msra.mxu0 %v837
    %2012 = vmatprep.subr.mxu0 0.0
    %2013 = vmatpush1.msra.mxu0 %v840
    %2014 = vmatprep.subr.mxu0 0.0
    %2015 = vmatpush1.msra.mxu0 %v843
    %2016 = vmatprep.subr.mxu0 0.0
    %2017 = vmatpush1.msra.mxu0 %v846
    %2018 = vmatprep.subr.mxu0 0.0
    %2019 = vmatpush1.msra.mxu0 0.0
    %2020 = vmatprep.subr.mxu0 0.0
    %2021 = vmatpush1.msra.mxu0 0.0
    %2022 = vmatprep.subr.mxu0 0.0
    %2023 = vmatpush1.msra.mxu0 0.0
    %2024 = vmatprep.subr.mxu0 0.0
    %2025 = vmatpush1.msra.mxu0 0.0
    %2026 = vmatprep.subr.mxu0 0.0
    %2027 = vmatpush1.msra.mxu0 0.0
    %2028 = vmatprep.subr.mxu0 0.0
    %2029 = vmatpush1.msra.mxu0 0.0
    %2030 = vmatprep.subr.mxu0 0.0
    %2031 = vmatpush1.msra.mxu0 0.0
    %2032 = vmatprep.subr.mxu0 0.0
    %2033 = vmatpush1.msra.mxu0 0.0
    %2034 = vmatprep.subr.mxu0 0.0
    %2035 = vmatpush1.msra.mxu0 0.0
    %2036 = vmatprep.subr.mxu0 0.0
    %2037 = vmatpush1.msra.mxu0 0.0
    %2038 = vmatprep.subr.mxu0 0.0
    %2039 = vmatpush1.msra.mxu0 0.0
    %2040 = vmatprep.subr.mxu0 0.0
    %2041 = vmatpush1.msra.mxu0 0.0
    %2042 = vmatprep.subr.mxu0 0.0
    %2043 = vmatpush1.msra.mxu0 0.0
    %2044 = vmatprep.subr.mxu0 0.0
    %2045 = vmatpush1.msra.mxu0 0.0
    %2046 = vmatprep.subr.mxu0 0.0
    %2047 = vmatpush1.msra.mxu0 0.0
    %2048 = vmatprep.subr.mxu0 0.0
    %2049 = vmatpush1.msra.mxu0 0.0
    %2050 = vmatprep.mubr.f32.mxu0 0.0
    %2051 = vmatmul.mubr.f32.gmra.mrb[0].mxu0 %v1901
    %v2052 = vpop.f32.mrb[0].mxu0
    %v2053 = vadd.f32 %v860, %v2052
    %v2054 = vpop.f32.mrb[0].mxu0
    %2055 = vdwg.mxu0
    %v2056 = vadd.f32 %v1912, %v1982
    %v2057 = vxor.u32 %v2056, 2147483648
    %v2058 = vmul.f32 %v2057, 1.442695
    %v2059 = vpow.pop %v2058
    %v2060 = vadd.f32 %v2059, 1.0
    %v2061 = vrcp.pop %v2060
    %v2062 = vmul.f32 1.0, %v2061
    %v2063 = vadd.f32 %v1913, %v1984
    %v2064 = vxor.u32 %v2063, 2147483648
    %v2065 = vmul.f32 %v2064, 1.442695
    %v2066 = vpow.pop %v2065
    %v2067 = vadd.f32 %v2066, 1.0
    %v2068 = vrcp.pop %v2067
    %v2069 = vmul.f32 1.0, %v2068
    %v2070 = vmul.f32 %v2062, %v2053
    %v2071 = vadd.f32 %v1914, %v2070
    %v2072 = vtanh.pop %v2071
    %v2073 = vsub.f32 1.0, %v2069
    %v2074 = vmul.f32 %v2073, %v2072
    %v2075 = vmul.f32 %v2069, %v1901
    %v2076 = vadd.f32 %v2074, %v2075
    %vm2077 = vcmp.eq.s32.totalorder %v1026, 6
    %v2078 = vsel %vm2077, 1, 0
    %2079 = vset.pattern.permute.xlu0 0
    %2080 = vperm.xlu0 %2079, %v2078
    %v2081 = vpop.permute.xlu0 %2080
    %vm2082 = vcmp.eq.s32.totalorder %v2081, 1
    %v2083 = vsel %vm2082, %v2076, %v1908
    %s2084 = smul.u32 7, 3
    %s2085 = smul.addr %s2084, 8
    %s2086 = scalar_lea.vmem [#allocation2], %s2085
    %v2087 = vld [vmem:[%s2086] sm:$0xff]
    %v2088 = vld [vmem:[%s2086 + $0x8] sm:$0xff]
    %v2089 = vld [vmem:[%s2086 + $0x10] sm:$0xff]
    %2090 = vmatprep.subr.mxu0 %v800
    %2091 = vmatpush1.msra.mxu0 %v799
    %2092 = vmatprep.subr.mxu0 %v803
    %2093 = vmatpush1.msra.mxu0 %v802
    %2094 = vmatprep.subr.mxu0 %v806
    %2095 = vmatpush1.msra.mxu0 %v805
    %2096 = vmatprep.subr.mxu0 %v809
    %2097 = vmatpush1.msra.mxu0 %v808
    %2098 = vmatprep.subr.mxu0 %v812
    %2099 = vmatpush1.msra.mxu0 %v811
    %2100 = vmatprep.subr.mxu0 %v815
    %2101 = vmatpush1.msra.mxu0 %v814
    %2102 = vmatprep.subr.mxu0 %v818
    %2103 = vmatpush1.msra.mxu0 %v817
    %2104 = vmatprep.subr.mxu0 %v821
    %2105 = vmatpush1.msra.mxu0 %v820
    %2106 = vmatprep.subr.mxu0 %v824
    %2107 = vmatpush1.msra.mxu0 %v823
    %2108 = vmatprep.subr.mxu0 %v827
    %2109 = vmatpush1.msra.mxu0 %v826
    %2110 = vmatprep.subr.mxu0 %v830
    %2111 = vmatpush1.msra.mxu0 %v829
    %2112 = vmatprep.subr.mxu0 %v833
    %2113 = vmatpush1.msra.mxu0 %v832
    %2114 = vmatprep.subr.mxu0 %v836
    %2115 = vmatpush1.msra.mxu0 %v835
    %2116 = vmatprep.subr.mxu0 %v839
    %2117 = vmatpush1.msra.mxu0 %v838
    %2118 = vmatprep.subr.mxu0 %v842
    %2119 = vmatpush1.msra.mxu0 %v841
    %2120 = vmatprep.subr.mxu0 %v845
    %2121 = vmatpush1.msra.mxu0 %v844
    %2122 = vmatprep.subr.mxu0 0.0
    %2123 = vmatpush1.msra.mxu0 0.0
    %2124 = vmatprep.subr.mxu0 0.0
    %2125 = vmatpush1.msra.mxu0 0.0
    %2126 = vmatprep.subr.mxu0 0.0
    %2127 = vmatpush1.msra.mxu0 0.0
    %2128 = vmatprep.subr.mxu0 0.0
    %2129 = vmatpush1.msra.mxu0 0.0
    %2130 = vmatprep.subr.mxu0 0.0
    %2131 = vmatpush1.msra.mxu0 0.0
    %2132 = vmatprep.subr.mxu0 0.0
    %2133 = vmatpush1.msra.mxu0 0.0
    %2134 = vmatprep.subr.mxu0 0.0
    %2135 = vmatpush1.msra.mxu0 0.0
    %2136 = vmatprep.subr.mxu0 0.0
    %2137 = vmatpush1.msra.mxu0 0.0
    %2138 = vmatprep.subr.mxu0 0.0
    %2139 = vmatpush1.msra.mxu0 0.0
    %2140 = vmatprep.subr.mxu0 0.0
    %2141 = vmatpush1.msra.mxu0 0.0
    %2142 = vmatprep.subr.mxu0 0.0
    %2143 = vmatpush1.msra.mxu0 0.0
    %2144 = vmatprep.subr.mxu0 0.0
    %2145 = vmatpush1.msra.mxu0 0.0
    %2146 = vmatprep.subr.mxu0 0.0
    %2147 = vmatpush1.msra.mxu0 0.0
    %2148 = vmatprep.subr.mxu0 0.0
    %2149 = vmatpush1.msra.mxu0 0.0
    %2150 = vmatprep.subr.mxu0 0.0
    %2151 = vmatpush1.msra.mxu0 0.0
    %2152 = vmatprep.subr.mxu0 0.0
    %2153 = vmatpush1.msra.mxu0 0.0
    %2154 = vmatprep.mubr.f32.mxu0 0.0
    %2155 = vmatmul.mubr.f32.gmra.mrb[0].mxu0 %v2076
    %v2156 = vpop.f32.mrb[0].mxu0
    %v2157 = vadd.f32 %v852, %v2156
    %v2158 = vpop.f32.mrb[0].mxu0
    %v2159 = vadd.f32 %v856, %v2158
    %2160 = vdwg.mxu0
    %2161 = vmatprep.subr.mxu0 0.0
    %2162 = vmatpush1.msra.mxu0 %v801
    %2163 = vmatprep.subr.mxu0 0.0
    %2164 = vmatpush1.msra.mxu0 %v804
    %2165 = vmatprep.subr.mxu0 0.0
    %2166 = vmatpush1.msra.mxu0 %v807
    %2167 = vmatprep.subr.mxu0 0.0
    %2168 = vmatpush1.msra.mxu0 %v810
    %2169 = vmatprep.subr.mxu0 0.0
    %2170 = vmatpush1.msra.mxu0 %v813
    %2171 = vmatprep.subr.mxu0 0.0
    %2172 = vmatpush1.msra.mxu0 %v816
    %2173 = vmatprep.subr.mxu0 0.0
    %2174 = vmatpush1.msra.mxu0 %v819
    %2175 = vmatprep.subr.mxu0 0.0
    %2176 = vmatpush1.msra.mxu0 %v822
    %2177 = vmatprep.subr.mxu0 0.0
    %2178 = vmatpush1.msra.mxu0 %v825
    %2179 = vmatprep.subr.mxu0 0.0
    %2180 = vmatpush1.msra.mxu0 %v828
    %2181 = vmatprep.subr.mxu0 0.0
    %2182 = vmatpush1.msra.mxu0 %v831
    %2183 = vmatprep.subr.mxu0 0.0
    %2184 = vmatpush1.msra.mxu0 %v834
    %2185 = vmatprep.subr.mxu0 0.0
    %2186 = vmatpush1.msra.mxu0 %v837
    %2187 = vmatprep.subr.mxu0 0.0
    %2188 = vmatpush1.msra.mxu0 %v840
    %2189 = vmatprep.subr.mxu0 0.0
    %2190 = vmatpush1.msra.mxu0 %v843
    %2191 = vmatprep.subr.mxu0 0.0
    %2192 = vmatpush1.msra.mxu0 %v846
    %2193 = vmatprep.subr.mxu0 0.0
    %2194 = vmatpush1.msra.mxu0 0.0
    %2195 = vmatprep.subr.mxu0 0.0
    %2196 = vmatpush1.msra.mxu0 0.0
    %2197 = vmatprep.subr.mxu0 0.0
    %2198 = vmatpush1.msra.mxu0 0.0
    %2199 = vmatprep.subr.mxu0 0.0
    %2200 = vmatpush1.msra.mxu0 0.0
    %2201 = vmatprep.subr.mxu0 0.0
    %2202 = vmatpush1.msra.mxu0 0.0
    %2203 = vmatprep.subr.mxu0 0.0
    %2204 = vmatpush1.msra.mxu0 0.0
    %2205 = vmatprep.subr.mxu0 0.0
    %2206 = vmatpush1.msra.mxu0 0.0
    %2207 = vmatprep.subr.mxu0 0.0
    %2208 = vmatpush1.msra.mxu0 0.0
    %2209 = vmatprep.subr.mxu0 0.0
    %2210 = vmatpush1.msra.mxu0 0.0
    %2211 = vmatprep.subr.mxu0 0.0
    %2212 = vmatpush1.msra.mxu0 0.0
    %2213 = vmatprep.subr.mxu0 0.0
    %2214 = vmatpush1.msra.mxu0 0.0
    %2215 = vmatprep.subr.mxu0 0.0
    %2216 = vmatpush1.msra.mxu0 0.0
    %2217 = vmatprep.subr.mxu0 0.0
    %2218 = vmatpush1.msra.mxu0 0.0
    %2219 = vmatprep.subr.mxu0 0.0
    %2220 = vmatpush1.msra.mxu0 0.0
    %2221 = vmatprep.subr.mxu0 0.0
    %2222 = vmatpush1.msra.mxu0 0.0
    %2223 = vmatprep.subr.mxu0 0.0
    %2224 = vmatpush1.msra.mxu0 0.0
    %2225 = vmatprep.mubr.f32.mxu0 0.0
    %2226 = vmatmul.mubr.f32.gmra.mrb[0].mxu0 %v2076
    %v2227 = vpop.f32.mrb[0].mxu0
    %v2228 = vadd.f32 %v860, %v2227
    %v2229 = vpop.f32.mrb[0].mxu0
    %2230 = vdwg.mxu0
    %v2231 = vadd.f32 %v2087, %v2157
    %v2232 = vxor.u32 %v2231, 2147483648
    %v2233 = vmul.f32 %v2232, 1.442695
    %v2234 = vpow.pop %v2233
    %v2235 = vadd.f32 %v2234, 1.0
    %v2236 = vrcp.pop %v2235
    %v2237 = vmul.f32 1.0, %v2236
    %v2238 = vadd.f32 %v2088, %v2159
    %v2239 = vxor.u32 %v2238, 2147483648
    %v2240 = vmul.f32 %v2239, 1.442695
    %v2241 = vpow.pop %v2240
    %v2242 = vadd.f32 %v2241, 1.0
    %v2243 = vrcp.pop %v2242
    %v2244 = vmul.f32 1.0, %v2243
    %v2245 = vmul.f32 %v2237, %v2228
    %v2246 = vadd.f32 %v2089, %v2245
    %v2247 = vtanh.pop %v2246
    %v2248 = vsub.f32 1.0, %v2244
    %v2249 = vmul.f32 %v2248, %v2247
    %v2250 = vmul.f32 %v2244, %v2076
    %v2251 = vadd.f32 %v2249, %v2250
    %vm2252 = vcmp.eq.s32.totalorder %v1026, 7
    %v2253 = vsel %vm2252, 1, 0
    %2254 = vset.pattern.permute.xlu0 0
    %2255 = vperm.xlu0 %2254, %v2253
    %v2256 = vpop.permute.xlu0 %2255
    %vm2257 = vcmp.eq.s32.totalorder %v2256, 1
    %v2258 = vsel %vm2257, %v2251, %v2083
    %v2259 = vld [vmem:[#allocation13] sm:$0xff]
    %v2260 = vld [vmem:[#allocation13 + $0x8] sm:$0xff]
    %v2261 = vld [vmem:[#allocation13 + $0x10] sm:$0xff]
    %v2262 = vld [vmem:[#allocation13 + $0x18] sm:$0xff]
    %v2263 = vld [vmem:[#allocation13 + $0x20] sm:$0xff]
    %v2264 = vld [vmem:[#allocation13 + $0x28] sm:$0xff]
    %v2265 = vld [vmem:[#allocation13 + $0x30] sm:$0xff]
    %v2266 = vld [vmem:[#allocation13 + $0x38] sm:$0xff]
    %v2267 = vld [vmem:[#allocation13 + $0x40] sm:$0xff]
    %v2268 = vld [vmem:[#allocation13 + $0x48] sm:$0xff]
    %v2269 = vld [vmem:[#allocation13 + $0x50] sm:$0xff]
    %v2270 = vld [vmem:[#allocation13 + $0x58] sm:$0xff]
    %v2271 = vld [vmem:[#allocation13 + $0x60] sm:$0xff]
    %v2272 = vld [vmem:[#allocation13 + $0x68] sm:$0xff]
    %v2273 = vld [vmem:[#allocation13 + $0x70] sm:$0xff]
    %v2274 = vld [vmem:[#allocation13 + $0x78] sm:$0xff]
    %v2275 = vld [vmem:[%s9] sm:$0x1]
    %v2277 = vlaneseq
    %v2278 = vshrl.u32 %v2277, 7
    %v2279 = vsub.s32 0, %v2278
    %v2280 = vrot.slane %v2275, %v2279
    %2282 = vmatprep.subr.mxu0 0.0
    %2283 = vmatpush1.msra.mxu0 %v2259
    %2284 = vmatprep.subr.mxu0 0.0
    %2285 = vmatpush1.msra.mxu0 %v2260
    %2286 = vmatprep.subr.mxu0 0.0
    %2287 = vmatpush1.msra.mxu0 %v2261
    %2288 = vmatprep.subr.mxu0 0.0
    %2289 = vmatpush1.msra.mxu0 %v2262
    %2290 = vmatprep.subr.mxu0 0.0
    %2291 = vmatpush1.msra.mxu0 %v2263
    %2292 = vmatprep.subr.mxu0 0.0
    %2293 = vmatpush1.msra.mxu0 %v2264
    %2294 = vmatprep.subr.mxu0 0.0
    %2295 = vmatpush1.msra.mxu0 %v2265
    %2296 = vmatprep.subr.mxu0 0.0
    %2297 = vmatpush1.msra.mxu0 %v2266
    %2298 = vmatprep.subr.mxu0 0.0
    %2299 = vmatpush1.msra.mxu0 %v2267
    %2300 = vmatprep.subr.mxu0 0.0
    %2301 = vmatpush1.msra.mxu0 %v2268
    %2302 = vmatprep.subr.mxu0 0.0
    %2303 = vmatpush1.msra.mxu0 %v2269
    %2304 = vmatprep.subr.mxu0 0.0
    %2305 = vmatpush1.msra.mxu0 %v2270
    %2306 = vmatprep.subr.mxu0 0.0
    %2307 = vmatpush1.msra.mxu0 %v2271
    %2308 = vmatprep.subr.mxu0 0.0
    %2309 = vmatpush1.msra.mxu0 %v2272
    %2310 = vmatprep.subr.mxu0 0.0
    %2311 = vmatpush1.msra.mxu0 %v2273
    %2312 = vmatprep.subr.mxu0 0.0
    %2313 = vmatpush1.msra.mxu0 %v2274
    %2314 = vmatprep.subr.mxu0 0.0
    %2315 = vmatpush1.msra.mxu0 0.0
    %2316 = vmatprep.subr.mxu0 0.0
    %2317 = vmatpush1.msra.mxu0 0.0
    %2318 = vmatprep.subr.mxu0 0.0
    %2319 = vmatpush1.msra.mxu0 0.0
    %2320 = vmatprep.subr.mxu0 0.0
    %2321 = vmatpush1.msra.mxu0 0.0
    %2322 = vmatprep.subr.mxu0 0.0
    %2323 = vmatpush1.msra.mxu0 0.0
    %2324 = vmatprep.subr.mxu0 0.0
    %2325 = vmatpush1.msra.mxu0 0.0
    %2326 = vmatprep.subr.mxu0 0.0
    %2327 = vmatpush1.msra.mxu0 0.0
    %2328 = vmatprep.subr.mxu0 0.0
    %2329 = vmatpush1.msra.mxu0 0.0
    %2330 = vmatprep.subr.mxu0 0.0
    %2331 = vmatpush1.msra.mxu0 0.0
    %2332 = vmatprep.subr.mxu0 0.0
    %2333 = vmatpush1.msra.mxu0 0.0
    %2334 = vmatprep.subr.mxu0 0.0
    %2335 = vmatpush1.msra.mxu0 0.0
    %2336 = vmatprep.subr.mxu0 0.0
    %2337 = vmatpush1.msra.mxu0 0.0
    %2338 = vmatprep.subr.mxu0 0.0
    %2339 = vmatpush1.msra.mxu0 0.0
    %2340 = vmatprep.subr.mxu0 0.0
    %2341 = vmatpush1.msra.mxu0 0.0
    %2342 = vmatprep.subr.mxu0 0.0
    %2343 = vmatpush1.msra.mxu0 0.0
    %2344 = vmatprep.subr.mxu0 0.0
    %2345 = vmatpush1.msra.mxu0 0.0
    %2346 = vmatprep.mubr.f32.mxu0 0.0
    %2347 = vmatmul.mubr.f32.gmra.mrb[0].mxu0 %v2258
    %v2348 = vpop.f32.mrb[0].mxu0
    %v2349 = vadd.f32 %v2280, %v2348
    %v2350 = vpop.f32.mrb[0].mxu0
    %2351 = vdwg.mxu0
    %v2352 = vld [vmem:[%s3] sm:$0xff]
    %vm2353 = vcmask 64512
    %v2355 = vsel %vm2353, %v2352, 0
    %2357 = vmatprep.subr.mxu0 0.0
    %2358 = vmatpush1.msra.mxu0 %v2349
    %2359 = vmatprep.subr.mxu0 0.0
    %2360 = vmatpush1.msra.mxu0 0.0
    %2361 = vmatprep.subr.mxu0 0.0
    %2362 = vmatpush1.msra.mxu0 0.0
    %2363 = vmatprep.subr.mxu0 0.0
    %2364 = vmatpush1.msra.mxu0 0.0
    %2365 = vmatprep.subr.mxu0 0.0
    %2366 = vmatpush1.msra.mxu0 0.0
    %2367 = vmatprep.subr.mxu0 0.0
    %2368 = vmatpush1.msra.mxu0 0.0
    %2369 = vmatprep.subr.mxu0 0.0
    %2370 = vmatpush1.msra.mxu0 0.0
    %2371 = vmatprep.subr.mxu0 0.0
    %2372 = vmatpush1.msra.mxu0 0.0
    %2373 = vmatprep.subr.mxu0 0.0
    %2374 = vmatpush1.msra.mxu0 0.0
    %2375 = vmatprep.subr.mxu0 0.0
    %2376 = vmatpush1.msra.mxu0 0.0
    %2377 = vmatprep.subr.mxu0 0.0
    %2378 = vmatpush1.msra.mxu0 0.0
    %2379 = vmatprep.subr.mxu0 0.0
    %2380 = vmatpush1.msra.mxu0 0.0
    %2381 = vmatprep.subr.mxu0 0.0
    %2382 = vmatpush1.msra.mxu0 0.0
    %2383 = vmatprep.subr.mxu0 0.0
    %2384 = vmatpush1.msra.mxu0 0.0
    %2385 = vmatprep.subr.mxu0 0.0
    %2386 = vmatpush1.msra.mxu0 0.0
    %2387 = vmatprep.subr.mxu0 0.0
    %2388 = vmatpush1.msra.mxu0 0.0
    %2389 = vmatprep.subr.mxu0 0.0
    %2390 = vmatpush1.msra.mxu0 0.0
    %2391 = vmatprep.subr.mxu0 0.0
    %2392 = vmatpush1.msra.mxu0 0.0
    %2393 = vmatprep.subr.mxu0 0.0
    %2394 = vmatpush1.msra.mxu0 0.0
    %2395 = vmatprep.subr.mxu0 0.0
    %2396 = vmatpush1.msra.mxu0 0.0
    %2397 = vmatprep.subr.mxu0 0.0
    %2398 = vmatpush1.msra.mxu0 0.0
    %2399 = vmatprep.subr.mxu0 0.0
    %2400 = vmatpush1.msra.mxu0 0.0
    %2401 = vmatprep.subr.mxu0 0.0
    %2402 = vmatpush1.msra.mxu0 0.0
    %2403 = vmatprep.subr.mxu0 0.0
    %2404 = vmatpush1.msra.mxu0 0.0
    %2405 = vmatprep.subr.mxu0 0.0
    %2406 = vmatpush1.msra.mxu0 0.0
    %2407 = vmatprep.subr.mxu0 0.0
    %2408 = vmatpush1.msra.mxu0 0.0
    %2409 = vmatprep.subr.mxu0 0.0
    %2410 = vmatpush1.msra.mxu0 0.0
    %2411 = vmatprep.subr.mxu0 0.0
    %2412 = vmatpush1.msra.mxu0 0.0
    %2413 = vmatprep.subr.mxu0 0.0
    %2414 = vmatpush1.msra.mxu0 0.0
    %2415 = vmatprep.subr.mxu0 0.0
    %2416 = vmatpush1.msra.mxu0 0.0
    %2417 = vmatprep.subr.mxu0 0.0
    %2418 = vmatpush1.msra.mxu0 0.0
    %2419 = vmatprep.subr.mxu0 0.0
    %2420 = vmatpush1.msra.mxu0 0.0
    %2421 = vmatprep.mubr.f32.mxu0 0.0
    %2422 = vmatmul.mubr.f32.gmra.mrb[0].mxu0 %v2355
    %v2423 = vpop.f32.mrb[0].mxu0
    %v2424 = vadd.f32 0.0, %v2423
    %v2425 = vpop.f32.mrb[0].mxu0
    %2426 = vdwg.mxu0
    %s2427 = smul.addr %s793, 8
    %s2428 = scalar_lea.vmem [#allocation3], %s2427
    %v2429 = vld [vmem:[%s2428] sm:$0xff]
    %v2430 = vld [vmem:[%s2428 + $0x8] sm:$0xff]
    %v2431 = vld [vmem:[%s2428 + $0x10] sm:$0xff]
    %v2432 = vld [vmem:[#allocation16] sm:$0xff]
    %v2433 = vld [vmem:[#allocation16 + $0x8] sm:$0xff]
    %v2434 = vld [vmem:[#allocation16 + $0x10] sm:$0xff]
    %v2435 = vld [vmem:[#allocation16 + $0x18] sm:$0xff]
    %v2436 = vld [vmem:[#allocation16 + $0x20] sm:$0xff]
    %v2437 = vld [vmem:[#allocation16 + $0x28] sm:$0xff]
    %v2438 = vld [vmem:[#allocation16 + $0x30] sm:$0xff]
    %v2439 = vld [vmem:[#allocation16 + $0x38] sm:$0xff]
    %v2440 = vld [vmem:[#allocation16 + $0x40] sm:$0xff]
    %v2441 = vld [vmem:[#allocation16 + $0x48] sm:$0xff]
    %v2442 = vld [vmem:[#allocation16 + $0x50] sm:$0xff]
    %v2443 = vld [vmem:[#allocation16 + $0x58] sm:$0xff]
    %v2444 = vld [vmem:[#allocation16 + $0x60] sm:$0xff]
    %v2445 = vld [vmem:[#allocation16 + $0x68] sm:$0xff]
    %v2446 = vld [vmem:[#allocation16 + $0x70] sm:$0xff]
    %v2447 = vld [vmem:[#allocation16 + $0x78] sm:$0xff]
    %v2448 = vld [vmem:[#allocation16 + $0x80] sm:$0xff]
    %v2449 = vld [vmem:[#allocation16 + $0x88] sm:$0xff]
    %v2450 = vld [vmem:[#allocation16 + $0x90] sm:$0xff]
    %v2451 = vld [vmem:[#allocation16 + $0x98] sm:$0xff]
    %v2452 = vld [vmem:[#allocation16 + $0xa0] sm:$0xff]
    %v2453 = vld [vmem:[#allocation16 + $0xa8] sm:$0xff]
    %v2454 = vld [vmem:[#allocation16 + $0xb0] sm:$0xff]
    %v2455 = vld [vmem:[#allocation16 + $0xb8] sm:$0xff]
    %v2456 = vld [vmem:[#allocation16 + $0xc0] sm:$0xff]
    %v2457 = vld [vmem:[#allocation16 + $0xc8] sm:$0xff]
    %v2458 = vld [vmem:[#allocation16 + $0xd0] sm:$0xff]
    %v2459 = vld [vmem:[#allocation16 + $0xd8] sm:$0xff]
    %v2460 = vld [vmem:[#allocation16 + $0xe0] sm:$0xff]
    %v2461 = vld [vmem:[#allocation16 + $0xe8] sm:$0xff]
    %v2462 = vld [vmem:[#allocation16 + $0xf0] sm:$0xff]
    %v2463 = vld [vmem:[#allocation16 + $0xf8] sm:$0xff]
    %v2464 = vld [vmem:[#allocation16 + $0x100] sm:$0xff]
    %v2465 = vld [vmem:[#allocation16 + $0x108] sm:$0xff]
    %v2466 = vld [vmem:[#allocation16 + $0x110] sm:$0xff]
    %v2467 = vld [vmem:[#allocation16 + $0x118] sm:$0xff]
    %v2468 = vld [vmem:[#allocation16 + $0x120] sm:$0xff]
    %v2469 = vld [vmem:[#allocation16 + $0x128] sm:$0xff]
    %v2470 = vld [vmem:[#allocation16 + $0x130] sm:$0xff]
    %v2471 = vld [vmem:[#allocation16 + $0x138] sm:$0xff]
    %v2472 = vld [vmem:[#allocation16 + $0x140] sm:$0xff]
    %v2473 = vld [vmem:[#allocation16 + $0x148] sm:$0xff]
    %v2474 = vld [vmem:[#allocation16 + $0x150] sm:$0xff]
    %v2475 = vld [vmem:[#allocation16 + $0x158] sm:$0xff]
    %v2476 = vld [vmem:[#allocation16 + $0x160] sm:$0xff]
    %v2477 = vld [vmem:[#allocation16 + $0x168] sm:$0xff]
    %v2478 = vld [vmem:[#allocation16 + $0x170] sm:$0xff]
    %v2479 = vld [vmem:[#allocation16 + $0x178] sm:$0xff]
    %v2480 = vld [vmem:[%s13] sm:$0x7]
    %v2482 = vlaneseq
    %v2483 = vshrl.u32 %v2482, 7
    %v2484 = vsub.s32 0, %v2483
    %v2485 = vrot.slane %v2480, %v2484
    %v2486 = vlaneseq
    %v2487 = vshrl.u32 %v2486, 7
    %v2488 = vsub.s32 1, %v2487
    %v2489 = vrot.slane %v2480, %v2488
    %v2490 = vlaneseq
    %v2491 = vshrl.u32 %v2490, 7
    %v2492 = vsub.s32 2, %v2491
    %v2493 = vrot.slane %v2480, %v2492
    %2497 = vmatprep.subr.mxu0 %v2433
    %2498 = vmatpush1.msra.mxu0 %v2432
    %2499 = vmatprep.subr.mxu0 %v2436
    %2500 = vmatpush1.msra.mxu0 %v2435
    %2501 = vmatprep.subr.mxu0 %v2439
    %2502 = vmatpush1.msra.mxu0 %v2438
    %2503 = vmatprep.subr.mxu0 %v2442
    %2504 = vmatpush1.msra.mxu0 %v2441
    %2505 = vmatprep.subr.mxu0 %v2445
    %2506 = vmatpush1.msra.mxu0 %v2444
    %2507 = vmatprep.subr.mxu0 %v2448
    %2508 = vmatpush1.msra.mxu0 %v2447
    %2509 = vmatprep.subr.mxu0 %v2451
    %2510 = vmatpush1.msra.mxu0 %v2450
    %2511 = vmatprep.subr.mxu0 %v2454
    %2512 = vmatpush1.msra.mxu0 %v2453
    %2513 = vmatprep.subr.mxu0 %v2457
    %2514 = vmatpush1.msra.mxu0 %v2456
    %2515 = vmatprep.subr.mxu0 %v2460
    %2516 = vmatpush1.msra.mxu0 %v2459
    %2517 = vmatprep.subr.mxu0 %v2463
    %2518 = vmatpush1.msra.mxu0 %v2462
    %2519 = vmatprep.subr.mxu0 %v2466
    %2520 = vmatpush1.msra.mxu0 %v2465
    %2521 = vmatprep.subr.mxu0 %v2469
    %2522 = vmatpush1.msra.mxu0 %v2468
    %2523 = vmatprep.subr.mxu0 %v2472
    %2524 = vmatpush1.msra.mxu0 %v2471
    %2525 = vmatprep.subr.mxu0 %v2475
    %2526 = vmatpush1.msra.mxu0 %v2474
    %2527 = vmatprep.subr.mxu0 %v2478
    %2528 = vmatpush1.msra.mxu0 %v2477
    %2529 = vmatprep.subr.mxu0 0.0
    %2530 = vmatpush1.msra.mxu0 0.0
    %2531 = vmatprep.subr.mxu0 0.0
    %2532 = vmatpush1.msra.mxu0 0.0
    %2533 = vmatprep.subr.mxu0 0.0
    %2534 = vmatpush1.msra.mxu0 0.0
    %2535 = vmatprep.subr.mxu0 0.0
    %2536 = vmatpush1.msra.mxu0 0.0
    %2537 = vmatprep.subr.mxu0 0.0
    %2538 = vmatpush1.msra.mxu0 0.0
    %2539 = vmatprep.subr.mxu0 0.0
    %2540 = vmatpush1.msra.mxu0 0.0
    %2541 = vmatprep.subr.mxu0 0.0
    %2542 = vmatpush1.msra.mxu0 0.0
    %2543 = vmatprep.subr.mxu0 0.0
    %2544 = vmatpush1.msra.mxu0 0.0
    %2545 = vmatprep.subr.mxu0 0.0
    %2546 = vmatpush1.msra.mxu0 0.0
    %2547 = vmatprep.subr.mxu0 0.0
    %2548 = vmatpush1.msra.mxu0 0.0
    %2549 = vmatprep.subr.mxu0 0.0
    %2550 = vmatpush1.msra.mxu0 0.0
    %2551 = vmatprep.subr.mxu0 0.0
    %2552 = vmatpush1.msra.mxu0 0.0
    %2553 = vmatprep.subr.mxu0 0.0
    %2554 = vmatpush1.msra.mxu0 0.0
    %2555 = vmatprep.subr.mxu0 0.0
    %2556 = vmatpush1.msra.mxu0 0.0
    %2557 = vmatprep.subr.mxu0 0.0
    %2558 = vmatpush1.msra.mxu0 0.0
    %2559 = vmatprep.subr.mxu0 0.0
    %2560 = vmatpush1.msra.mxu0 0.0
    %2561 = vmatprep.mubr.f32.mxu0 0.0
    %2562 = vmatmul.mubr.f32.gmra.mrb[0].mxu0 %v2424
    %v2563 = vpop.f32.mrb[0].mxu0
    %v2564 = vadd.f32 %v2485, %v2563
    %v2565 = vpop.f32.mrb[0].mxu0
    %v2566 = vadd.f32 %v2489, %v2565
    %2567 = vdwg.mxu0
    %2568 = vmatprep.subr.mxu0 0.0
    %2569 = vmatpush1.msra.mxu0 %v2434
    %2570 = vmatprep.subr.mxu0 0.0
    %2571 = vmatpush1.msra.mxu0 %v2437
    %2572 = vmatprep.subr.mxu0 0.0
    %2573 = vmatpush1.msra.mxu0 %v2440
    %2574 = vmatprep.subr.mxu0 0.0
    %2575 = vmatpush1.msra.mxu0 %v2443
    %2576 = vmatprep.subr.mxu0 0.0
    %2577 = vmatpush1.msra.mxu0 %v2446
    %2578 = vmatprep.subr.mxu0 0.0
    %2579 = vmatpush1.msra.mxu0 %v2449
    %2580 = vmatprep.subr.mxu0 0.0
    %2581 = vmatpush1.msra.mxu0 %v2452
    %2582 = vmatprep.subr.mxu0 0.0
    %2583 = vmatpush1.msra.mxu0 %v2455
    %2584 = vmatprep.subr.mxu0 0.0
    %2585 = vmatpush1.msra.mxu0 %v2458
    %2586 = vmatprep.subr.mxu0 0.0
    %2587 = vmatpush1.msra.mxu0 %v2461
    %2588 = vmatprep.subr.mxu0 0.0
    %2589 = vmatpush1.msra.mxu0 %v2464
    %2590 = vmatprep.subr.mxu0 0.0
    %2591 = vmatpush1.msra.mxu0 %v2467
    %2592 = vmatprep.subr.mxu0 0.0
    %2593 = vmatpush1.msra.mxu0 %v2470
    %2594 = vmatprep.subr.mxu0 0.0
    %2595 = vmatpush1.msra.mxu0 %v2473
    %2596 = vmatprep.subr.mxu0 0.0
    %2597 = vmatpush1.msra.mxu0 %v2476
    %2598 = vmatprep.subr.mxu0 0.0
    %2599 = vmatpush1.msra.mxu0 %v2479
    %2600 = vmatprep.subr.mxu0 0.0
    %2601 = vmatpush1.msra.mxu0 0.0
    %2602 = vmatprep.subr.mxu0 0.0
    %2603 = vmatpush1.msra.mxu0 0.0
    %2604 = vmatprep.subr.mxu0 0.0
    %2605 = vmatpush1.msra.mxu0 0.0
    %2606 = vmatprep.subr.mxu0 0.0
    %2607 = vmatpush1.msra.mxu0 0.0
    %2608 = vmatprep.subr.mxu0 0.0
    %2609 = vmatpush1.msra.mxu0 0.0
    %2610 = vmatprep.subr.mxu0 0.0
    %2611 = vmatpush1.msra.mxu0 0.0
    %2612 = vmatprep.subr.mxu0 0.0
    %2613 = vmatpush1.msra.mxu0 0.0
    %2614 = vmatprep.subr.mxu0 0.0
    %2615 = vmatpush1.msra.mxu0 0.0
    %2616 = vmatprep.subr.mxu0 0.0
    %2617 = vmatpush1.msra.mxu0 0.0
    %2618 = vmatprep.subr.mxu0 0.0
    %2619 = vmatpush1.msra.mxu0 0.0
    %2620 = vmatprep.subr.mxu0 0.0
    %2621 = vmatpush1.msra.mxu0 0.0
    %2622 = vmatprep.subr.mxu0 0.0
    %2623 = vmatpush1.msra.mxu0 0.0
    %2624 = vmatprep.subr.mxu0 0.0
    %2625 = vmatpush1.msra.mxu0 0.0
    %2626 = vmatprep.subr.mxu0 0.0
    %2627 = vmatpush1.msra.mxu0 0.0
    %2628 = vmatprep.subr.mxu0 0.0
    %2629 = vmatpush1.msra.mxu0 0.0
    %2630 = vmatprep.subr.mxu0 0.0
    %2631 = vmatpush1.msra.mxu0 0.0
    %2632 = vmatprep.mubr.f32.mxu0 0.0
    %2633 = vmatmul.mubr.f32.gmra.mrb[0].mxu0 %v2424
    %v2634 = vpop.f32.mrb[0].mxu0
    %v2635 = vadd.f32 %v2493, %v2634
    %v2636 = vpop.f32.mrb[0].mxu0
    %2637 = vdwg.mxu0
    %v2638 = vadd.f32 %v2429, %v2564
    %v2639 = vxor.u32 %v2638, 2147483648
    %v2640 = vmul.f32 %v2639, 1.442695
    %v2641 = vpow.pop %v2640
    %v2642 = vadd.f32 %v2641, 1.0
    %v2643 = vrcp.pop %v2642
    %v2644 = vmul.f32 1.0, %v2643
    %v2645 = vadd.f32 %v2430, %v2566
    %v2646 = vxor.u32 %v2645, 2147483648
    %v2647 = vmul.f32 %v2646, 1.442695
    %v2648 = vpow.pop %v2647
    %v2649 = vadd.f32 %v2648, 1.0
    %v2650 = vrcp.pop %v2649
    %v2651 = vmul.f32 1.0, %v2650
    %v2652 = vmul.f32 %v2644, %v2635
    %v2653 = vadd.f32 %v2431, %v2652
    %v2654 = vtanh.pop %v2653
    %v2655 = vsub.f32 1.0, %v2651
    %v2656 = vmul.f32 %v2655, %v2654
    %v2657 = vmul.f32 %v2651, %v2424
    %v2658 = vadd.f32 %v2656, %v2657
    %2659 = vst [vmem:[#allocation4] sm:$0xff] %v2658
    %s2660 = smul.addr %s1034, 8
    %s2661 = scalar_lea.vmem [#allocation3], %s2660
    %v2662 = vld [vmem:[%s2661] sm:$0xff]
    %v2663 = vld [vmem:[%s2661 + $0x8] sm:$0xff]
    %v2664 = vld [vmem:[%s2661 + $0x10] sm:$0xff]
    %v2665 = vld [vmem:[#allocation16] sm:$0xff]
    %v2666 = vld [vmem:[#allocation16 + $0x8] sm:$0xff]
    %v2667 = vld [vmem:[#allocation16 + $0x10] sm:$0xff]
    %v2668 = vld [vmem:[#allocation16 + $0x18] sm:$0xff]
    %v2669 = vld [vmem:[#allocation16 + $0x20] sm:$0xff]
    %v2670 = vld [vmem:[#allocation16 + $0x28] sm:$0xff]
    %v2671 = vld [vmem:[#allocation16 + $0x30] sm:$0xff]
    %v2672 = vld [vmem:[#allocation16 + $0x38] sm:$0xff]
    %v2673 = vld [vmem:[#allocation16 + $0x40] sm:$0xff]
    %v2674 = vld [vmem:[#allocation16 + $0x48] sm:$0xff]
    %v2675 = vld [vmem:[#allocation16 + $0x50] sm:$0xff]
    %v2676 = vld [vmem:[#allocation16 + $0x58] sm:$0xff]
    %v2677 = vld [vmem:[#allocation16 + $0x60] sm:$0xff]
    %v2678 = vld [vmem:[#allocation16 + $0x68] sm:$0xff]
    %v2679 = vld [vmem:[#allocation16 + $0x70] sm:$0xff]
    %v2680 = vld [vmem:[#allocation16 + $0x78] sm:$0xff]
    %v2681 = vld [vmem:[#allocation16 + $0x80] sm:$0xff]
    %v2682 = vld [vmem:[#allocation16 + $0x88] sm:$0xff]
    %v2683 = vld [vmem:[#allocation16 + $0x90] sm:$0xff]
    %v2684 = vld [vmem:[#allocation16 + $0x98] sm:$0xff]
    %v2685 = vld [vmem:[#allocation16 + $0xa0] sm:$0xff]
    %v2686 = vld [vmem:[#allocation16 + $0xa8] sm:$0xff]
    %v2687 = vld [vmem:[#allocation16 + $0xb0] sm:$0xff]
    %v2688 = vld [vmem:[#allocation16 + $0xb8] sm:$0xff]
    %v2689 = vld [vmem:[#allocation16 + $0xc0] sm:$0xff]
    %v2690 = vld [vmem:[#allocation16 + $0xc8] sm:$0xff]
    %v2691 = vld [vmem:[#allocation16 + $0xd0] sm:$0xff]
    %v2692 = vld [vmem:[#allocation16 + $0xd8] sm:$0xff]
    %v2693 = vld [vmem:[#allocation16 + $0xe0] sm:$0xff]
    %v2694 = vld [vmem:[#allocation16 + $0xe8] sm:$0xff]
    %v2695 = vld [vmem:[#allocation16 + $0xf0] sm:$0xff]
    %v2696 = vld [vmem:[#allocation16 + $0xf8] sm:$0xff]
    %v2697 = vld [vmem:[#allocation16 + $0x100] sm:$0xff]
    %v2698 = vld [vmem:[#allocation16 + $0x108] sm:$0xff]
    %v2699 = vld [vmem:[#allocation16 + $0x110] sm:$0xff]
    %v2700 = vld [vmem:[#allocation16 + $0x118] sm:$0xff]
    %v2701 = vld [vmem:[#allocation16 + $0x120] sm:$0xff]
    %v2702 = vld [vmem:[#allocation16 + $0x128] sm:$0xff]
    %v2703 = vld [vmem:[#allocation16 + $0x130] sm:$0xff]
    %v2704 = vld [vmem:[#allocation16 + $0x138] sm:$0xff]
    %v2705 = vld [vmem:[#allocation16 + $0x140] sm:$0xff]
    %v2706 = vld [vmem:[#allocation16 + $0x148] sm:$0xff]
    %v2707 = vld [vmem:[#allocation16 + $0x150] sm:$0xff]
    %v2708 = vld [vmem:[#allocation16 + $0x158] sm:$0xff]
    %v2709 = vld [vmem:[#allocation16 + $0x160] sm:$0xff]
    %v2710 = vld [vmem:[#allocation16 + $0x168] sm:$0xff]
    %v2711 = vld [vmem:[#allocation16 + $0x170] sm:$0xff]
    %v2712 = vld [vmem:[#allocation16 + $0x178] sm:$0xff]
    %v2713 = vld [vmem:[%s13] sm:$0x7]
    %v2715 = vlaneseq
    %v2716 = vshrl.u32 %v2715, 7
    %v2717 = vsub.s32 0, %v2716
    %v2718 = vrot.slane %v2713, %v2717
    %v2719 = vlaneseq
    %v2720 = vshrl.u32 %v2719, 7
    %v2721 = vsub.s32 1, %v2720
    %v2722 = vrot.slane %v2713, %v2721
    %v2723 = vlaneseq
    %v2724 = vshrl.u32 %v2723, 7
    %v2725 = vsub.s32 2, %v2724
    %v2726 = vrot.slane %v2713, %v2725
    %2730 = vmatprep.subr.mxu0 %v2666
    %2731 = vmatpush1.msra.mxu0 %v2665
    %2732 = vmatprep.subr.mxu0 %v2669
    %2733 = vmatpush1.msra.mxu0 %v2668
    %2734 = vmatprep.subr.mxu0 %v2672
    %2735 = vmatpush1.msra.mxu0 %v2671
    %2736 = vmatprep.subr.mxu0 %v2675
    %2737 = vmatpush1.msra.mxu0 %v2674
    %2738 = vmatprep.subr.mxu0 %v2678
    %2739 = vmatpush1.msra.mxu0 %v2677
    %2740 = vmatprep.subr.mxu0 %v2681
    %2741 = vmatpush1.msra.mxu0 %v2680
    %2742 = vmatprep.subr.mxu0 %v2684
    %2743 = vmatpush1.msra.mxu0 %v2683
    %2744 = vmatprep.subr.mxu0 %v2687
    %2745 = vmatpush1.msra.mxu0 %v2686
    %2746 = vmatprep.subr.mxu0 %v2690
    %2747 = vmatpush1.msra.mxu0 %v2689
    %2748 = vmatprep.subr.mxu0 %v2693
    %2749 = vmatpush1.msra.mxu0 %v2692
    %2750 = vmatprep.subr.mxu0 %v2696
    %2751 = vmatpush1.msra.mxu0 %v2695
    %2752 = vmatprep.subr.mxu0 %v2699
    %2753 = vmatpush1.msra.mxu0 %v2698
    %2754 = vmatprep.subr.mxu0 %v2702
    %2755 = vmatpush1.msra.mxu0 %v2701
    %2756 = vmatprep.subr.mxu0 %v2705
    %2757 = vmatpush1.msra.mxu0 %v2704
    %2758 = vmatprep.subr.mxu0 %v2708
    %2759 = vmatpush1.msra.mxu0 %v2707
    %2760 = vmatprep.subr.mxu0 %v2711
    %2761 = vmatpush1.msra.mxu0 %v2710
    %2762 = vmatprep.subr.mxu0 0.0
    %2763 = vmatpush1.msra.mxu0 0.0
    %2764 = vmatprep.subr.mxu0 0.0
    %2765 = vmatpush1.msra.mxu0 0.0
    %2766 = vmatprep.subr.mxu0 0.0
    %2767 = vmatpush1.msra.mxu0 0.0
    %2768 = vmatprep.subr.mxu0 0.0
    %2769 = vmatpush1.msra.mxu0 0.0
    %2770 = vmatprep.subr.mxu0 0.0
    %2771 = vmatpush1.msra.mxu0 0.0
    %2772 = vmatprep.subr.mxu0 0.0
    %2773 = vmatpush1.msra.mxu0 0.0
    %2774 = vmatprep.subr.mxu0 0.0
    %2775 = vmatpush1.msra.mxu0 0.0
    %2776 = vmatprep.subr.mxu0 0.0
    %2777 = vmatpush1.msra.mxu0 0.0
    %2778 = vmatprep.subr.mxu0 0.0
    %2779 = vmatpush1.msra.mxu0 0.0
    %2780 = vmatprep.subr.mxu0 0.0
    %2781 = vmatpush1.msra.mxu0 0.0
    %2782 = vmatprep.subr.mxu0 0.0
    %2783 = vmatpush1.msra.mxu0 0.0
    %2784 = vmatprep.subr.mxu0 0.0
    %2785 = vmatpush1.msra.mxu0 0.0
    %2786 = vmatprep.subr.mxu0 0.0
    %2787 = vmatpush1.msra.mxu0 0.0
    %2788 = vmatprep.subr.mxu0 0.0
    %2789 = vmatpush1.msra.mxu0 0.0
    %2790 = vmatprep.subr.mxu0 0.0
    %2791 = vmatpush1.msra.mxu0 0.0
    %2792 = vmatprep.subr.mxu0 0.0
    %2793 = vmatpush1.msra.mxu0 0.0
    %2794 = vmatprep.mubr.f32.mxu0 0.0
    %2795 = vmatmul.mubr.f32.gmra.mrb[0].mxu0 %v2658
    %v2796 = vpop.f32.mrb[0].mxu0
    %v2797 = vadd.f32 %v2718, %v2796
    %v2798 = vpop.f32.mrb[0].mxu0
    %v2799 = vadd.f32 %v2722, %v2798
    %2800 = vdwg.mxu0
    %2801 = vmatprep.subr.mxu0 0.0
    %2802 = vmatpush1.msra.mxu0 %v2667
    %2803 = vmatprep.subr.mxu0 0.0
    %2804 = vmatpush1.msra.mxu0 %v2670
    %2805 = vmatprep.subr.mxu0 0.0
    %2806 = vmatpush1.msra.mxu0 %v2673
    %2807 = vmatprep.subr.mxu0 0.0
    %2808 = vmatpush1.msra.mxu0 %v2676
    %2809 = vmatprep.subr.mxu0 0.0
    %2810 = vmatpush1.msra.mxu0 %v2679
    %2811 = vmatprep.subr.mxu0 0.0
    %2812 = vmatpush1.msra.mxu0 %v2682
    %2813 = vmatprep.subr.mxu0 0.0
    %2814 = vmatpush1.msra.mxu0 %v2685
    %2815 = vmatprep.subr.mxu0 0.0
    %2816 = vmatpush1.msra.mxu0 %v2688
    %2817 = vmatprep.subr.mxu0 0.0
    %2818 = vmatpush1.msra.mxu0 %v2691
    %2819 = vmatprep.subr.mxu0 0.0
    %2820 = vmatpush1.msra.mxu0 %v2694
    %2821 = vmatprep.subr.mxu0 0.0
    %2822 = vmatpush1.msra.mxu0 %v2697
    %2823 = vmatprep.subr.mxu0 0.0
    %2824 = vmatpush1.msra.mxu0 %v2700
    %2825 = vmatprep.subr.mxu0 0.0
    %2826 = vmatpush1.msra.mxu0 %v2703
    %2827 = vmatprep.subr.mxu0 0.0
    %2828 = vmatpush1.msra.mxu0 %v2706
    %2829 = vmatprep.subr.mxu0 0.0
    %2830 = vmatpush1.msra.mxu0 %v2709
    %2831 = vmatprep.subr.mxu0 0.0
    %2832 = vmatpush1.msra.mxu0 %v2712
    %2833 = vmatprep.subr.mxu0 0.0
    %2834 = vmatpush1.msra.mxu0 0.0
    %2835 = vmatprep.subr.mxu0 0.0
    %2836 = vmatpush1.msra.mxu0 0.0
    %2837 = vmatprep.subr.mxu0 0.0
    %2838 = vmatpush1.msra.mxu0 0.0
    %2839 = vmatprep.subr.mxu0 0.0
    %2840 = vmatpush1.msra.mxu0 0.0
    %2841 = vmatprep.subr.mxu0 0.0
    %2842 = vmatpush1.msra.mxu0 0.0
    %2843 = vmatprep.subr.mxu0 0.0
    %2844 = vmatpush1.msra.mxu0 0.0
    %2845 = vmatprep.subr.mxu0 0.0
    %2846 = vmatpush1.msra.mxu0 0.0
    %2847 = vmatprep.subr.mxu0 0.0
    %2848 = vmatpush1.msra.mxu0 0.0
    %2849 = vmatprep.subr.mxu0 0.0
    %2850 = vmatpush1.msra.mxu0 0.0
    %2851 = vmatprep.subr.mxu0 0.0
    %2852 = vmatpush1.msra.mxu0 0.0
    %2853 = vmatprep.subr.mxu0 0.0
    %2854 = vmatpush1.msra.mxu0 0.0
    %2855 = vmatprep.subr.mxu0 0.0
    %2856 = vmatpush1.msra.mxu0 0.0
    %2857 = vmatprep.subr.mxu0 0.0
    %2858 = vmatpush1.msra.mxu0 0.0
    %2859 = vmatprep.subr.mxu0 0.0
    %2860 = vmatpush1.msra.mxu0 0.0
    %2861 = vmatprep.subr.mxu0 0.0
    %2862 = vmatpush1.msra.mxu0 0.0
    %2863 = vmatprep.subr.mxu0 0.0
    %2864 = vmatpush1.msra.mxu0 0.0
    %2865 = vmatprep.mubr.f32.mxu0 0.0
    %2866 = vmatmul.mubr.f32.gmra.mrb[0].mxu0 %v2658
    %v2867 = vpop.f32.mrb[0].mxu0
    %v2868 = vadd.f32 %v2726, %v2867
    %v2869 = vpop.f32.mrb[0].mxu0
    %2870 = vdwg.mxu0
    %v2871 = vadd.f32 %v2662, %v2797
    %v2872 = vxor.u32 %v2871, 2147483648
    %v2873 = vmul.f32 %v2872, 1.442695
    %v2874 = vpow.pop %v2873
    %v2875 = vadd.f32 %v2874, 1.0
    %v2876 = vrcp.pop %v2875
    %v2877 = vmul.f32 1.0, %v2876
    %v2878 = vadd.f32 %v2663, %v2799
    %v2879 = vxor.u32 %v2878, 2147483648
    %v2880 = vmul.f32 %v2879, 1.442695
    %v2881 = vpow.pop %v2880
    %v2882 = vadd.f32 %v2881, 1.0
    %v2883 = vrcp.pop %v2882
    %v2884 = vmul.f32 1.0, %v2883
    %v2885 = vmul.f32 %v2877, %v2868
    %v2886 = vadd.f32 %v2664, %v2885
    %v2887 = vtanh.pop %v2886
    %v2888 = vsub.f32 1.0, %v2884
    %v2889 = vmul.f32 %v2888, %v2887
    %v2890 = vmul.f32 %v2884, %v2658
    %v2891 = vadd.f32 %v2889, %v2890
    %s2892 = scalar_lea.vmem [#allocation4], 8
    %2893 = vst [vmem:[%s2892] sm:$0xff] %v2891
    %s2894 = smul.addr %s1209, 8
    %s2895 = scalar_lea.vmem [#allocation3], %s2894
    %v2896 = vld [vmem:[%s2895] sm:$0xff]
    %v2897 = vld [vmem:[%s2895 + $0x8] sm:$0xff]
    %v2898 = vld [vmem:[%s2895 + $0x10] sm:$0xff]
    %v2899 = vld [vmem:[#allocation16] sm:$0xff]
    %v2900 = vld [vmem:[#allocation16 + $0x8] sm:$0xff]
    %v2901 = vld [vmem:[#allocation16 + $0x10] sm:$0xff]
    %v2902 = vld [vmem:[#allocation16 + $0x18] sm:$0xff]
    %v2903 = vld [vmem:[#allocation16 + $0x20] sm:$0xff]
    %v2904 = vld [vmem:[#allocation16 + $0x28] sm:$0xff]
    %v2905 = vld [vmem:[#allocation16 + $0x30] sm:$0xff]
    %v2906 = vld [vmem:[#allocation16 + $0x38] sm:$0xff]
    %v2907 = vld [vmem:[#allocation16 + $0x40] sm:$0xff]
    %v2908 = vld [vmem:[#allocation16 + $0x48] sm:$0xff]
    %v2909 = vld [vmem:[#allocation16 + $0x50] sm:$0xff]
    %v2910 = vld [vmem:[#allocation16 + $0x58] sm:$0xff]
    %v2911 = vld [vmem:[#allocation16 + $0x60] sm:$0xff]
    %v2912 = vld [vmem:[#allocation16 + $0x68] sm:$0xff]
    %v2913 = vld [vmem:[#allocation16 + $0x70] sm:$0xff]
    %v2914 = vld [vmem:[#allocation16 + $0x78] sm:$0xff]
    %v2915 = vld [vmem:[#allocation16 + $0x80] sm:$0xff]
    %v2916 = vld [vmem:[#allocation16 + $0x88] sm:$0xff]
    %v2917 = vld [vmem:[#allocation16 + $0x90] sm:$0xff]
    %v2918 = vld [vmem:[#allocation16 + $0x98] sm:$0xff]
    %v2919 = vld [vmem:[#allocation16 + $0xa0] sm:$0xff]
    %v2920 = vld [vmem:[#allocation16 + $0xa8] sm:$0xff]
    %v2921 = vld [vmem:[#allocation16 + $0xb0] sm:$0xff]
    %v2922 = vld [vmem:[#allocation16 + $0xb8] sm:$0xff]
    %v2923 = vld [vmem:[#allocation16 + $0xc0] sm:$0xff]
    %v2924 = vld [vmem:[#allocation16 + $0xc8] sm:$0xff]
    %v2925 = vld [vmem:[#allocation16 + $0xd0] sm:$0xff]
    %v2926 = vld [vmem:[#allocation16 + $0xd8] sm:$0xff]
    %v2927 = vld [vmem:[#allocation16 + $0xe0] sm:$0xff]
    %v2928 = vld [vmem:[#allocation16 + $0xe8] sm:$0xff]
    %v2929 = vld [vmem:[#allocation16 + $0xf0] sm:$0xff]
    %v2930 = vld [vmem:[#allocation16 + $0xf8] sm:$0xff]
    %v2931 = vld [vmem:[#allocation16 + $0x100] sm:$0xff]
    %v2932 = vld [vmem:[#allocation16 + $0x108] sm:$0xff]
    %v2933 = vld [vmem:[#allocation16 + $0x110] sm:$0xff]
    %v2934 = vld [vmem:[#allocation16 + $0x118] sm:$0xff]
    %v2935 = vld [vmem:[#allocation16 + $0x120] sm:$0xff]
    %v2936 = vld [vmem:[#allocation16 + $0x128] sm:$0xff]
    %v2937 = vld [vmem:[#allocation16 + $0x130] sm:$0xff]
    %v2938 = vld [vmem:[#allocation16 + $0x138] sm:$0xff]
    %v2939 = vld [vmem:[#allocation16 + $0x140] sm:$0xff]
    %v2940 = vld [vmem:[#allocation16 + $0x148] sm:$0xff]
    %v2941 = vld [vmem:[#allocation16 + $0x150] sm:$0xff]
    %v2942 = vld [vmem:[#allocation16 + $0x158] sm:$0xff]
    %v2943 = vld [vmem:[#allocation16 + $0x160] sm:$0xff]
    %v2944 = vld [vmem:[#allocation16 + $0x168] sm:$0xff]
    %v2945 = vld [vmem:[#allocation16 + $0x170] sm:$0xff]
    %v2946 = vld [vmem:[#allocation16 + $0x178] sm:$0xff]
    %v2947 = vld [vmem:[%s13] sm:$0x7]
    %v2949 = vlaneseq
    %v2950 = vshrl.u32 %v2949, 7
    %v2951 = vsub.s32 0, %v2950
    %v2952 = vrot.slane %v2947, %v2951
    %v2953 = vlaneseq
    %v2954 = vshrl.u32 %v2953, 7
    %v2955 = vsub.s32 1, %v2954
    %v2956 = vrot.slane %v2947, %v2955
    %v2957 = vlaneseq
    %v2958 = vshrl.u32 %v2957, 7
    %v2959 = vsub.s32 2, %v2958
    %v2960 = vrot.slane %v2947, %v2959
    %2964 = vmatprep.subr.mxu0 %v2900
    %2965 = vmatpush1.msra.mxu0 %v2899
    %2966 = vmatprep.subr.mxu0 %v2903
    %2967 = vmatpush1.msra.mxu0 %v2902
    %2968 = vmatprep.subr.mxu0 %v2906
    %2969 = vmatpush1.msra.mxu0 %v2905
    %2970 = vmatprep.subr.mxu0 %v2909
    %2971 = vmatpush1.msra.mxu0 %v2908
    %2972 = vmatprep.subr.mxu0 %v2912
    %2973 = vmatpush1.msra.mxu0 %v2911
    %2974 = vmatprep.subr.mxu0 %v2915
    %2975 = vmatpush1.msra.mxu0 %v2914
    %2976 = vmatprep.subr.mxu0 %v2918
    %2977 = vmatpush1.msra.mxu0 %v2917
    %2978 = vmatprep.subr.mxu0 %v2921
    %2979 = vmatpush1.msra.mxu0 %v2920
    %2980 = vmatprep.subr.mxu0 %v2924
    %2981 = vmatpush1.msra.mxu0 %v2923
    %2982 = vmatprep.subr.mxu0 %v2927
    %2983 = vmatpush1.msra.mxu0 %v2926
    %2984 = vmatprep.subr.mxu0 %v2930
    %2985 = vmatpush1.msra.mxu0 %v2929
    %2986 = vmatprep.subr.mxu0 %v2933
    %2987 = vmatpush1.msra.mxu0 %v2932
    %2988 = vmatprep.subr.mxu0 %v2936
    %2989 = vmatpush1.msra.mxu0 %v2935
    %2990 = vmatprep.subr.mxu0 %v2939
    %2991 = vmatpush1.msra.mxu0 %v2938
    %2992 = vmatprep.subr.mxu0 %v2942
    %2993 = vmatpush1.msra.mxu0 %v2941
    %2994 = vmatprep.subr.mxu0 %v2945
    %2995 = vmatpush1.msra.mxu0 %v2944
    %2996 = vmatprep.subr.mxu0 0.0
    %2997 = vmatpush1.msra.mxu0 0.0
    %2998 = vmatprep.subr.mxu0 0.0
    %2999 = vmatpush1.msra.mxu0 0.0
    %3000 = vmatprep.subr.mxu0 0.0
    %3001 = vmatpush1.msra.mxu0 0.0
    %3002 = vmatprep.subr.mxu0 0.0
    %3003 = vmatpush1.msra.mxu0 0.0
    %3004 = vmatprep.subr.mxu0 0.0
    %3005 = vmatpush1.msra.mxu0 0.0
    %3006 = vmatprep.subr.mxu0 0.0
    %3007 = vmatpush1.msra.mxu0 0.0
    %3008 = vmatprep.subr.mxu0 0.0
    %3009 = vmatpush1.msra.mxu0 0.0
    %3010 = vmatprep.subr.mxu0 0.0
    %3011 = vmatpush1.msra.mxu0 0.0
    %3012 = vmatprep.subr.mxu0 0.0
    %3013 = vmatpush1.msra.mxu0 0.0
    %3014 = vmatprep.subr.mxu0 0.0
    %3015 = vmatpush1.msra.mxu0 0.0
    %3016 = vmatprep.subr.mxu0 0.0
    %3017 = vmatpush1.msra.mxu0 0.0
    %3018 = vmatprep.subr.mxu0 0.0
    %3019 = vmatpush1.msra.mxu0 0.0
    %3020 = vmatprep.subr.mxu0 0.0
    %3021 = vmatpush1.msra.mxu0 0.0
    %3022 = vmatprep.subr.mxu0 0.0
    %3023 = vmatpush1.msra.mxu0 0.0
    %3024 = vmatprep.subr.mxu0 0.0
    %3025 = vmatpush1.msra.mxu0 0.0
    %3026 = vmatprep.subr.mxu0 0.0
    %3027 = vmatpush1.msra.mxu0 0.0
    %3028 = vmatprep.mubr.f32.mxu0 0.0
    %3029 = vmatmul.mubr.f32.gmra.mrb[0].mxu0 %v2891
    %v3030 = vpop.f32.mrb[0].mxu0
    %v3031 = vadd.f32 %v2952, %v3030
    %v3032 = vpop.f32.mrb[0].mxu0
    %v3033 = vadd.f32 %v2956, %v3032
    %3034 = vdwg.mxu0
    %3035 = vmatprep.subr.mxu0 0.0
    %3036 = vmatpush1.msra.mxu0 %v2901
    %3037 = vmatprep.subr.mxu0 0.0
    %3038 = vmatpush1.msra.mxu0 %v2904
    %3039 = vmatprep.subr.mxu0 0.0
    %3040 = vmatpush1.msra.mxu0 %v2907
    %3041 = vmatprep.subr.mxu0 0.0
    %3042 = vmatpush1.msra.mxu0 %v2910
    %3043 = vmatprep.subr.mxu0 0.0
    %3044 = vmatpush1.msra.mxu0 %v2913
    %3045 = vmatprep.subr.mxu0 0.0
    %3046 = vmatpush1.msra.mxu0 %v2916
    %3047 = vmatprep.subr.mxu0 0.0
    %3048 = vmatpush1.msra.mxu0 %v2919
    %3049 = vmatprep.subr.mxu0 0.0
    %3050 = vmatpush1.msra.mxu0 %v2922
    %3051 = vmatprep.subr.mxu0 0.0
    %3052 = vmatpush1.msra.mxu0 %v2925
    %3053 = vmatprep.subr.mxu0 0.0
    %3054 = vmatpush1.msra.mxu0 %v2928
    %3055 = vmatprep.subr.mxu0 0.0
    %3056 = vmatpush1.msra.mxu0 %v2931
    %3057 = vmatprep.subr.mxu0 0.0
    %3058 = vmatpush1.msra.mxu0 %v2934
    %3059 = vmatprep.subr.mxu0 0.0
    %3060 = vmatpush1.msra.mxu0 %v2937
    %3061 = vmatprep.subr.mxu0 0.0
    %3062 = vmatpush1.msra.mxu0 %v2940
    %3063 = vmatprep.subr.mxu0 0.0
    %3064 = vmatpush1.msra.mxu0 %v2943
    %3065 = vmatprep.subr.mxu0 0.0
    %3066 = vmatpush1.msra.mxu0 %v2946
    %3067 = vmatprep.subr.mxu0 0.0
    %3068 = vmatpush1.msra.mxu0 0.0
    %3069 = vmatprep.subr.mxu0 0.0
    %3070 = vmatpush1.msra.mxu0 0.0
    %3071 = vmatprep.subr.mxu0 0.0
    %3072 = vmatpush1.msra.mxu0 0.0
    %3073 = vmatprep.subr.mxu0 0.0
    %3074 = vmatpush1.msra.mxu0 0.0
    %3075 = vmatprep.subr.mxu0 0.0
    %3076 = vmatpush1.msra.mxu0 0.0
    %3077 = vmatprep.subr.mxu0 0.0
    %3078 = vmatpush1.msra.mxu0 0.0
    %3079 = vmatprep.subr.mxu0 0.0
    %3080 = vmatpush1.msra.mxu0 0.0
    %3081 = vmatprep.subr.mxu0 0.0
    %3082 = vmatpush1.msra.mxu0 0.0
    %3083 = vmatprep.subr.mxu0 0.0
    %3084 = vmatpush1.msra.mxu0 0.0
    %3085 = vmatprep.subr.mxu0 0.0
    %3086 = vmatpush1.msra.mxu0 0.0
    %3087 = vmatprep.subr.mxu0 0.0
    %3088 = vmatpush1.msra.mxu0 0.0
    %3089 = vmatprep.subr.mxu0 0.0
    %3090 = vmatpush1.msra.mxu0 0.0
    %3091 = vmatprep.subr.mxu0 0.0
    %3092 = vmatpush1.msra.mxu0 0.0
    %3093 = vmatprep.subr.mxu0 0.0
    %3094 = vmatpush1.msra.mxu0 0.0
    %3095 = vmatprep.subr.mxu0 0.0
    %3096 = vmatpush1.msra.mxu0 0.0
    %3097 = vmatprep.subr.mxu0 0.0
    %3098 = vmatpush1.msra.mxu0 0.0
    %3099 = vmatprep.mubr.f32.mxu0 0.0
    %3100 = vmatmul.mubr.f32.gmra.mrb[0].mxu0 %v2891
    %v3101 = vpop.f32.mrb[0].mxu0
    %v3102 = vadd.f32 %v2960, %v3101
    %v3103 = vpop.f32.mrb[0].mxu0
    %3104 = vdwg.mxu0
    %v3105 = vadd.f32 %v2896, %v3031
    %v3106 = vxor.u32 %v3105, 2147483648
    %v3107 = vmul.f32 %v3106, 1.442695
    %v3108 = vpow.pop %v3107
    %v3109 = vadd.f32 %v3108, 1.0
    %v3110 = vrcp.pop %v3109
    %v3111 = vmul.f32 1.0, %v3110
    %v3112 = vadd.f32 %v2897, %v3033
    %v3113 = vxor.u32 %v3112, 2147483648
    %v3114 = vmul.f32 %v3113, 1.442695
    %v3115 = vpow.pop %v3114
    %v3116 = vadd.f32 %v3115, 1.0
    %v3117 = vrcp.pop %v3116
    %v3118 = vmul.f32 1.0, %v3117
    %v3119 = vmul.f32 %v3111, %v3102
    %v3120 = vadd.f32 %v2898, %v3119
    %v3121 = vtanh.pop %v3120
    %v3122 = vsub.f32 1.0, %v3118
    %v3123 = vmul.f32 %v3122, %v3121
    %v3124 = vmul.f32 %v3118, %v2891
    %v3125 = vadd.f32 %v3123, %v3124
    %s3126 = scalar_lea.vmem [#allocation4], 16
    %3127 = vst [vmem:[%s3126] sm:$0xff] %v3125
    %s3128 = smul.addr %s1384, 8
    %s3129 = scalar_lea.vmem [#allocation3], %s3128
    %v3130 = vld [vmem:[%s3129] sm:$0xff]
    %v3131 = vld [vmem:[%s3129 + $0x8] sm:$0xff]
    %v3132 = vld [vmem:[%s3129 + $0x10] sm:$0xff]
    %v3133 = vld [vmem:[#allocation16] sm:$0xff]
    %v3134 = vld [vmem:[#allocation16 + $0x8] sm:$0xff]
    %v3135 = vld [vmem:[#allocation16 + $0x10] sm:$0xff]
    %v3136 = vld [vmem:[#allocation16 + $0x18] sm:$0xff]
    %v3137 = vld [vmem:[#allocation16 + $0x20] sm:$0xff]
    %v3138 = vld [vmem:[#allocation16 + $0x28] sm:$0xff]
    %v3139 = vld [vmem:[#allocation16 + $0x30] sm:$0xff]
    %v3140 = vld [vmem:[#allocation16 + $0x38] sm:$0xff]
    %v3141 = vld [vmem:[#allocation16 + $0x40] sm:$0xff]
    %v3142 = vld [vmem:[#allocation16 + $0x48] sm:$0xff]
    %v3143 = vld [vmem:[#allocation16 + $0x50] sm:$0xff]
    %v3144 = vld [vmem:[#allocation16 + $0x58] sm:$0xff]
    %v3145 = vld [vmem:[#allocation16 + $0x60] sm:$0xff]
    %v3146 = vld [vmem:[#allocation16 + $0x68] sm:$0xff]
    %v3147 = vld [vmem:[#allocation16 + $0x70] sm:$0xff]
    %v3148 = vld [vmem:[#allocation16 + $0x78] sm:$0xff]
    %v3149 = vld [vmem:[#allocation16 + $0x80] sm:$0xff]
    %v3150 = vld [vmem:[#allocation16 + $0x88] sm:$0xff]
    %v3151 = vld [vmem:[#allocation16 + $0x90] sm:$0xff]
    %v3152 = vld [vmem:[#allocation16 + $0x98] sm:$0xff]
    %v3153 = vld [vmem:[#allocation16 + $0xa0] sm:$0xff]
    %v3154 = vld [vmem:[#allocation16 + $0xa8] sm:$0xff]
    %v3155 = vld [vmem:[#allocation16 + $0xb0] sm:$0xff]
    %v3156 = vld [vmem:[#allocation16 + $0xb8] sm:$0xff]
    %v3157 = vld [vmem:[#allocation16 + $0xc0] sm:$0xff]
    %v3158 = vld [vmem:[#allocation16 + $0xc8] sm:$0xff]
    %v3159 = vld [vmem:[#allocation16 + $0xd0] sm:$0xff]
    %v3160 = vld [vmem:[#allocation16 + $0xd8] sm:$0xff]
    %v3161 = vld [vmem:[#allocation16 + $0xe0] sm:$0xff]
    %v3162 = vld [vmem:[#allocation16 + $0xe8] sm:$0xff]
    %v3163 = vld [vmem:[#allocation16 + $0xf0] sm:$0xff]
    %v3164 = vld [vmem:[#allocation16 + $0xf8] sm:$0xff]
    %v3165 = vld [vmem:[#allocation16 + $0x100] sm:$0xff]
    %v3166 = vld [vmem:[#allocation16 + $0x108] sm:$0xff]
    %v3167 = vld [vmem:[#allocation16 + $0x110] sm:$0xff]
    %v3168 = vld [vmem:[#allocation16 + $0x118] sm:$0xff]
    %v3169 = vld [vmem:[#allocation16 + $0x120] sm:$0xff]
    %v3170 = vld [vmem:[#allocation16 + $0x128] sm:$0xff]
    %v3171 = vld [vmem:[#allocation16 + $0x130] sm:$0xff]
    %v3172 = vld [vmem:[#allocation16 + $0x138] sm:$0xff]
    %v3173 = vld [vmem:[#allocation16 + $0x140] sm:$0xff]
    %v3174 = vld [vmem:[#allocation16 + $0x148] sm:$0xff]
    %v3175 = vld [vmem:[#allocation16 + $0x150] sm:$0xff]
    %v3176 = vld [vmem:[#allocation16 + $0x158] sm:$0xff]
    %v3177 = vld [vmem:[#allocation16 + $0x160] sm:$0xff]
    %v3178 = vld [vmem:[#allocation16 + $0x168] sm:$0xff]
    %v3179 = vld [vmem:[#allocation16 + $0x170] sm:$0xff]
    %v3180 = vld [vmem:[#allocation16 + $0x178] sm:$0xff]
    %v3181 = vld [vmem:[%s13] sm:$0x7]
    %v3183 = vlaneseq
    %v3184 = vshrl.u32 %v3183, 7
    %v3185 = vsub.s32 0, %v3184
    %v3186 = vrot.slane %v3181, %v3185
    %v3187 = vlaneseq
    %v3188 = vshrl.u32 %v3187, 7
    %v3189 = vsub.s32 1, %v3188
    %v3190 = vrot.slane %v3181, %v3189
    %v3191 = vlaneseq
    %v3192 = vshrl.u32 %v3191, 7
    %v3193 = vsub.s32 2, %v3192
    %v3194 = vrot.slane %v3181, %v3193
    %3198 = vmatprep.subr.mxu0 %v3134
    %3199 = vmatpush1.msra.mxu0 %v3133
    %3200 = vmatprep.subr.mxu0 %v3137
    %3201 = vmatpush1.msra.mxu0 %v3136
    %3202 = vmatprep.subr.mxu0 %v3140
    %3203 = vmatpush1.msra.mxu0 %v3139
    %3204 = vmatprep.subr.mxu0 %v3143
    %3205 = vmatpush1.msra.mxu0 %v3142
    %3206 = vmatprep.subr.mxu0 %v3146
    %3207 = vmatpush1.msra.mxu0 %v3145
    %3208 = vmatprep.subr.mxu0 %v3149
    %3209 = vmatpush1.msra.mxu0 %v3148
    %3210 = vmatprep.subr.mxu0 %v3152
    %3211 = vmatpush1.msra.mxu0 %v3151
    %3212 = vmatprep.subr.mxu0 %v3155
    %3213 = vmatpush1.msra.mxu0 %v3154
    %3214 = vmatprep.subr.mxu0 %v3158
    %3215 = vmatpush1.msra.mxu0 %v3157
    %3216 = vmatprep.subr.mxu0 %v3161
    %3217 = vmatpush1.msra.mxu0 %v3160
    %3218 = vmatprep.subr.mxu0 %v3164
    %3219 = vmatpush1.msra.mxu0 %v3163
    %3220 = vmatprep.subr.mxu0 %v3167
    %3221 = vmatpush1.msra.mxu0 %v3166
    %3222 = vmatprep.subr.mxu0 %v3170
    %3223 = vmatpush1.msra.mxu0 %v3169
    %3224 = vmatprep.subr.mxu0 %v3173
    %3225 = vmatpush1.msra.mxu0 %v3172
    %3226 = vmatprep.subr.mxu0 %v3176
    %3227 = vmatpush1.msra.mxu0 %v3175
    %3228 = vmatprep.subr.mxu0 %v3179
    %3229 = vmatpush1.msra.mxu0 %v3178
    %3230 = vmatprep.subr.mxu0 0.0
    %3231 = vmatpush1.msra.mxu0 0.0
    %3232 = vmatprep.subr.mxu0 0.0
    %3233 = vmatpush1.msra.mxu0 0.0
    %3234 = vmatprep.subr.mxu0 0.0
    %3235 = vmatpush1.msra.mxu0 0.0
    %3236 = vmatprep.subr.mxu0 0.0
    %3237 = vmatpush1.msra.mxu0 0.0
    %3238 = vmatprep.subr.mxu0 0.0
    %3239 = vmatpush1.msra.mxu0 0.0
    %3240 = vmatprep.subr.mxu0 0.0
    %3241 = vmatpush1.msra.mxu0 0.0
    %3242 = vmatprep.subr.mxu0 0.0
    %3243 = vmatpush1.msra.mxu0 0.0
    %3244 = vmatprep.subr.mxu0 0.0
    %3245 = vmatpush1.msra.mxu0 0.0
    %3246 = vmatprep.subr.mxu0 0.0
    %3247 = vmatpush1.msra.mxu0 0.0
    %3248 = vmatprep.subr.mxu0 0.0
    %3249 = vmatpush1.msra.mxu0 0.0
    %3250 = vmatprep.subr.mxu0 0.0
    %3251 = vmatpush1.msra.mxu0 0.0
    %3252 = vmatprep.subr.mxu0 0.0
    %3253 = vmatpush1.msra.mxu0 0.0
    %3254 = vmatprep.subr.mxu0 0.0
    %3255 = vmatpush1.msra.mxu0 0.0
    %3256 = vmatprep.subr.mxu0 0.0
    %3257 = vmatpush1.msra.mxu0 0.0
    %3258 = vmatprep.subr.mxu0 0.0
    %3259 = vmatpush1.msra.mxu0 0.0
    %3260 = vmatprep.subr.mxu0 0.0
    %3261 = vmatpush1.msra.mxu0 0.0
    %3262 = vmatprep.mubr.f32.mxu0 0.0
    %3263 = vmatmul.mubr.f32.gmra.mrb[0].mxu0 %v3125
    %v3264 = vpop.f32.mrb[0].mxu0
    %v3265 = vadd.f32 %v3186, %v3264
    %v3266 = vpop.f32.mrb[0].mxu0
    %v3267 = vadd.f32 %v3190, %v3266
    %3268 = vdwg.mxu0
    %3269 = vmatprep.subr.mxu0 0.0
    %3270 = vmatpush1.msra.mxu0 %v3135
    %3271 = vmatprep.subr.mxu0 0.0
    %3272 = vmatpush1.msra.mxu0 %v3138
    %3273 = vmatprep.subr.mxu0 0.0
    %3274 = vmatpush1.msra.mxu0 %v3141
    %3275 = vmatprep.subr.mxu0 0.0
    %3276 = vmatpush1.msra.mxu0 %v3144
    %3277 = vmatprep.subr.mxu0 0.0
    %3278 = vmatpush1.msra.mxu0 %v3147
    %3279 = vmatprep.subr.mxu0 0.0
    %3280 = vmatpush1.msra.mxu0 %v3150
    %3281 = vmatprep.subr.mxu0 0.0
    %3282 = vmatpush1.msra.mxu0 %v3153
    %3283 = vmatprep.subr.mxu0 0.0
    %3284 = vmatpush1.msra.mxu0 %v3156
    %3285 = vmatprep.subr.mxu0 0.0
    %3286 = vmatpush1.msra.mxu0 %v3159
    %3287 = vmatprep.subr.mxu0 0.0
    %3288 = vmatpush1.msra.mxu0 %v3162
    %3289 = vmatprep.subr.mxu0 0.0
    %3290 = vmatpush1.msra.mxu0 %v3165
    %3291 = vmatprep.subr.mxu0 0.0
    %3292 = vmatpush1.msra.mxu0 %v3168
    %3293 = vmatprep.subr.mxu0 0.0
    %3294 = vmatpush1.msra.mxu0 %v3171
    %3295 = vmatprep.subr.mxu0 0.0
    %3296 = vmatpush1.msra.mxu0 %v3174
    %3297 = vmatprep.subr.mxu0 0.0
    %3298 = vmatpush1.msra.mxu0 %v3177
    %3299 = vmatprep.subr.mxu0 0.0
    %3300 = vmatpush1.msra.mxu0 %v3180
    %3301 = vmatprep.subr.mxu0 0.0
    %3302 = vmatpush1.msra.mxu0 0.0
    %3303 = vmatprep.subr.mxu0 0.0
    %3304 = vmatpush1.msra.mxu0 0.0
    %3305 = vmatprep.subr.mxu0 0.0
    %3306 = vmatpush1.msra.mxu0 0.0
    %3307 = vmatprep.subr.mxu0 0.0
    %3308 = vmatpush1.msra.mxu0 0.0
    %3309 = vmatprep.subr.mxu0 0.0
    %3310 = vmatpush1.msra.mxu0 0.0
    %3311 = vmatprep.subr.mxu0 0.0
    %3312 = vmatpush1.msra.mxu0 0.0
    %3313 = vmatprep.subr.mxu0 0.0
    %3314 = vmatpush1.msra.mxu0 0.0
    %3315 = vmatprep.subr.mxu0 0.0
    %3316 = vmatpush1.msra.mxu0 0.0
    %3317 = vmatprep.subr.mxu0 0.0
    %3318 = vmatpush1.msra.mxu0 0.0
    %3319 = vmatprep.subr.mxu0 0.0
    %3320 = vmatpush1.msra.mxu0 0.0
    %3321 = vmatprep.subr.mxu0 0.0
    %3322 = vmatpush1.msra.mxu0 0.0
    %3323 = vmatprep.subr.mxu0 0.0
    %3324 = vmatpush1.msra.mxu0 0.0
    %3325 = vmatprep.subr.mxu0 0.0
    %3326 = vmatpush1.msra.mxu0 0.0
    %3327 = vmatprep.subr.mxu0 0.0
    %3328 = vmatpush1.msra.mxu0 0.0
    %3329 = vmatprep.subr.mxu0 0.0
    %3330 = vmatpush1.msra.mxu0 0.0
    %3331 = vmatprep.subr.mxu0 0.0
    %3332 = vmatpush1.msra.mxu0 0.0
    %3333 = vmatprep.mubr.f32.mxu0 0.0
    %3334 = vmatmul.mubr.f32.gmra.mrb[0].mxu0 %v3125
    %v3335 = vpop.f32.mrb[0].mxu0
    %v3336 = vadd.f32 %v3194, %v3335
    %v3337 = vpop.f32.mrb[0].mxu0
    %3338 = vdwg.mxu0
    %v3339 = vadd.f32 %v3130, %v3265
    %v3340 = vxor.u32 %v3339, 2147483648
    %v3341 = vmul.f32 %v3340, 1.442695
    %v3342 = vpow.pop %v3341
    %v3343 = vadd.f32 %v3342, 1.0
    %v3344 = vrcp.pop %v3343
    %v3345 = vmul.f32 1.0, %v3344
    %v3346 = vadd.f32 %v3131, %v3267
    %v3347 = vxor.u32 %v3346, 2147483648
    %v3348 = vmul.f32 %v3347, 1.442695
    %v3349 = vpow.pop %v3348
    %v3350 = vadd.f32 %v3349, 1.0
    %v3351 = vrcp.pop %v3350
    %v3352 = vmul.f32 1.0, %v3351
    %v3353 = vmul.f32 %v3345, %v3336
    %v3354 = vadd.f32 %v3132, %v3353
    %v3355 = vtanh.pop %v3354
    %v3356 = vsub.f32 1.0, %v3352
    %v3357 = vmul.f32 %v3356, %v3355
    %v3358 = vmul.f32 %v3352, %v3125
    %v3359 = vadd.f32 %v3357, %v3358
    %s3360 = scalar_lea.vmem [#allocation4], 24
    %3361 = vst [vmem:[%s3360] sm:$0xff] %v3359
    %s3362 = smul.addr %s1559, 8
    %s3363 = scalar_lea.vmem [#allocation3], %s3362
    %v3364 = vld [vmem:[%s3363] sm:$0xff]
    %v3365 = vld [vmem:[%s3363 + $0x8] sm:$0xff]
    %v3366 = vld [vmem:[%s3363 + $0x10] sm:$0xff]
    %v3367 = vld [vmem:[#allocation16] sm:$0xff]
    %v3368 = vld [vmem:[#allocation16 + $0x8] sm:$0xff]
    %v3369 = vld [vmem:[#allocation16 + $0x10] sm:$0xff]
    %v3370 = vld [vmem:[#allocation16 + $0x18] sm:$0xff]
    %v3371 = vld [vmem:[#allocation16 + $0x20] sm:$0xff]
    %v3372 = vld [vmem:[#allocation16 + $0x28] sm:$0xff]
    %v3373 = vld [vmem:[#allocation16 + $0x30] sm:$0xff]
    %v3374 = vld [vmem:[#allocation16 + $0x38] sm:$0xff]
    %v3375 = vld [vmem:[#allocation16 + $0x40] sm:$0xff]
    %v3376 = vld [vmem:[#allocation16 + $0x48] sm:$0xff]
    %v3377 = vld [vmem:[#allocation16 + $0x50] sm:$0xff]
    %v3378 = vld [vmem:[#allocation16 + $0x58] sm:$0xff]
    %v3379 = vld [vmem:[#allocation16 + $0x60] sm:$0xff]
    %v3380 = vld [vmem:[#allocation16 + $0x68] sm:$0xff]
    %v3381 = vld [vmem:[#allocation16 + $0x70] sm:$0xff]
    %v3382 = vld [vmem:[#allocation16 + $0x78] sm:$0xff]
    %v3383 = vld [vmem:[#allocation16 + $0x80] sm:$0xff]
    %v3384 = vld [vmem:[#allocation16 + $0x88] sm:$0xff]
    %v3385 = vld [vmem:[#allocation16 + $0x90] sm:$0xff]
    %v3386 = vld [vmem:[#allocation16 + $0x98] sm:$0xff]
    %v3387 = vld [vmem:[#allocation16 + $0xa0] sm:$0xff]
    %v3388 = vld [vmem:[#allocation16 + $0xa8] sm:$0xff]
    %v3389 = vld [vmem:[#allocation16 + $0xb0] sm:$0xff]
    %v3390 = vld [vmem:[#allocation16 + $0xb8] sm:$0xff]
    %v3391 = vld [vmem:[#allocation16 + $0xc0] sm:$0xff]
    %v3392 = vld [vmem:[#allocation16 + $0xc8] sm:$0xff]
    %v3393 = vld [vmem:[#allocation16 + $0xd0] sm:$0xff]
    %v3394 = vld [vmem:[#allocation16 + $0xd8] sm:$0xff]
    %v3395 = vld [vmem:[#allocation16 + $0xe0] sm:$0xff]
    %v3396 = vld [vmem:[#allocation16 + $0xe8] sm:$0xff]
    %v3397 = vld [vmem:[#allocation16 + $0xf0] sm:$0xff]
    %v3398 = vld [vmem:[#allocation16 + $0xf8] sm:$0xff]
    %v3399 = vld [vmem:[#allocation16 + $0x100] sm:$0xff]
    %v3400 = vld [vmem:[#allocation16 + $0x108] sm:$0xff]
    %v3401 = vld [vmem:[#allocation16 + $0x110] sm:$0xff]
    %v3402 = vld [vmem:[#allocation16 + $0x118] sm:$0xff]
    %v3403 = vld [vmem:[#allocation16 + $0x120] sm:$0xff]
    %v3404 = vld [vmem:[#allocation16 + $0x128] sm:$0xff]
    %v3405 = vld [vmem:[#allocation16 + $0x130] sm:$0xff]
    %v3406 = vld [vmem:[#allocation16 + $0x138] sm:$0xff]
    %v3407 = vld [vmem:[#allocation16 + $0x140] sm:$0xff]
    %v3408 = vld [vmem:[#allocation16 + $0x148] sm:$0xff]
    %v3409 = vld [vmem:[#allocation16 + $0x150] sm:$0xff]
    %v3410 = vld [vmem:[#allocation16 + $0x158] sm:$0xff]
    %v3411 = vld [vmem:[#allocation16 + $0x160] sm:$0xff]
    %v3412 = vld [vmem:[#allocation16 + $0x168] sm:$0xff]
    %v3413 = vld [vmem:[#allocation16 + $0x170] sm:$0xff]
    %v3414 = vld [vmem:[#allocation16 + $0x178] sm:$0xff]
    %v3415 = vld [vmem:[%s13] sm:$0x7]
    %v3417 = vlaneseq
    %v3418 = vshrl.u32 %v3417, 7
    %v3419 = vsub.s32 0, %v3418
    %v3420 = vrot.slane %v3415, %v3419
    %v3421 = vlaneseq
    %v3422 = vshrl.u32 %v3421, 7
    %v3423 = vsub.s32 1, %v3422
    %v3424 = vrot.slane %v3415, %v3423
    %v3425 = vlaneseq
    %v3426 = vshrl.u32 %v3425, 7
    %v3427 = vsub.s32 2, %v3426
    %v3428 = vrot.slane %v3415, %v3427
    %3432 = vmatprep.subr.mxu0 %v3368
    %3433 = vmatpush1.msra.mxu0 %v3367
    %3434 = vmatprep.subr.mxu0 %v3371
    %3435 = vmatpush1.msra.mxu0 %v3370
    %3436 = vmatprep.subr.mxu0 %v3374
    %3437 = vmatpush1.msra.mxu0 %v3373
    %3438 = vmatprep.subr.mxu0 %v3377
    %3439 = vmatpush1.msra.mxu0 %v3376
    %3440 = vmatprep.subr.mxu0 %v3380
    %3441 = vmatpush1.msra.mxu0 %v3379
    %3442 = vmatprep.subr.mxu0 %v3383
    %3443 = vmatpush1.msra.mxu0 %v3382
    %3444 = vmatprep.subr.mxu0 %v3386
    %3445 = vmatpush1.msra.mxu0 %v3385
    %3446 = vmatprep.subr.mxu0 %v3389
    %3447 = vmatpush1.msra.mxu0 %v3388
    %3448 = vmatprep.subr.mxu0 %v3392
    %3449 = vmatpush1.msra.mxu0 %v3391
    %3450 = vmatprep.subr.mxu0 %v3395
    %3451 = vmatpush1.msra.mxu0 %v3394
    %3452 = vmatprep.subr.mxu0 %v3398
    %3453 = vmatpush1.msra.mxu0 %v3397
    %3454 = vmatprep.subr.mxu0 %v3401
    %3455 = vmatpush1.msra.mxu0 %v3400
    %3456 = vmatprep.subr.mxu0 %v3404
    %3457 = vmatpush1.msra.mxu0 %v3403
    %3458 = vmatprep.subr.mxu0 %v3407
    %3459 = vmatpush1.msra.mxu0 %v3406
    %3460 = vmatprep.subr.mxu0 %v3410
    %3461 = vmatpush1.msra.mxu0 %v3409
    %3462 = vmatprep.subr.mxu0 %v3413
    %3463 = vmatpush1.msra.mxu0 %v3412
    %3464 = vmatprep.subr.mxu0 0.0
    %3465 = vmatpush1.msra.mxu0 0.0
    %3466 = vmatprep.subr.mxu0 0.0
    %3467 = vmatpush1.msra.mxu0 0.0
    %3468 = vmatprep.subr.mxu0 0.0
    %3469 = vmatpush1.msra.mxu0 0.0
    %3470 = vmatprep.subr.mxu0 0.0
    %3471 = vmatpush1.msra.mxu0 0.0
    %3472 = vmatprep.subr.mxu0 0.0
    %3473 = vmatpush1.msra.mxu0 0.0
    %3474 = vmatprep.subr.mxu0 0.0
    %3475 = vmatpush1.msra.mxu0 0.0
    %3476 = vmatprep.subr.mxu0 0.0
    %3477 = vmatpush1.msra.mxu0 0.0
    %3478 = vmatprep.subr.mxu0 0.0
    %3479 = vmatpush1.msra.mxu0 0.0
    %3480 = vmatprep.subr.mxu0 0.0
    %3481 = vmatpush1.msra.mxu0 0.0
    %3482 = vmatprep.subr.mxu0 0.0
    %3483 = vmatpush1.msra.mxu0 0.0
    %3484 = vmatprep.subr.mxu0 0.0
    %3485 = vmatpush1.msra.mxu0 0.0
    %3486 = vmatprep.subr.mxu0 0.0
    %3487 = vmatpush1.msra.mxu0 0.0
    %3488 = vmatprep.subr.mxu0 0.0
    %3489 = vmatpush1.msra.mxu0 0.0
    %3490 = vmatprep.subr.mxu0 0.0
    %3491 = vmatpush1.msra.mxu0 0.0
    %3492 = vmatprep.subr.mxu0 0.0
    %3493 = vmatpush1.msra.mxu0 0.0
    %3494 = vmatprep.subr.mxu0 0.0
    %3495 = vmatpush1.msra.mxu0 0.0
    %3496 = vmatprep.mubr.f32.mxu0 0.0
    %3497 = vmatmul.mubr.f32.gmra.mrb[0].mxu0 %v3359
    %v3498 = vpop.f32.mrb[0].mxu0
    %v3499 = vadd.f32 %v3420, %v3498
    %v3500 = vpop.f32.mrb[0].mxu0
    %v3501 = vadd.f32 %v3424, %v3500
    %3502 = vdwg.mxu0
    %3503 = vmatprep.subr.mxu0 0.0
    %3504 = vmatpush1.msra.mxu0 %v3369
    %3505 = vmatprep.subr.mxu0 0.0
    %3506 = vmatpush1.msra.mxu0 %v3372
    %3507 = vmatprep.subr.mxu0 0.0
    %3508 = vmatpush1.msra.mxu0 %v3375
    %3509 = vmatprep.subr.mxu0 0.0
    %3510 = vmatpush1.msra.mxu0 %v3378
    %3511 = vmatprep.subr.mxu0 0.0
    %3512 = vmatpush1.msra.mxu0 %v3381
    %3513 = vmatprep.subr.mxu0 0.0
    %3514 = vmatpush1.msra.mxu0 %v3384
    %3515 = vmatprep.subr.mxu0 0.0
    %3516 = vmatpush1.msra.mxu0 %v3387
    %3517 = vmatprep.subr.mxu0 0.0
    %3518 = vmatpush1.msra.mxu0 %v3390
    %3519 = vmatprep.subr.mxu0 0.0
    %3520 = vmatpush1.msra.mxu0 %v3393
    %3521 = vmatprep.subr.mxu0 0.0
    %3522 = vmatpush1.msra.mxu0 %v3396
    %3523 = vmatprep.subr.mxu0 0.0
    %3524 = vmatpush1.msra.mxu0 %v3399
    %3525 = vmatprep.subr.mxu0 0.0
    %3526 = vmatpush1.msra.mxu0 %v3402
    %3527 = vmatprep.subr.mxu0 0.0
    %3528 = vmatpush1.msra.mxu0 %v3405
    %3529 = vmatprep.subr.mxu0 0.0
    %3530 = vmatpush1.msra.mxu0 %v3408
    %3531 = vmatprep.subr.mxu0 0.0
    %3532 = vmatpush1.msra.mxu0 %v3411
    %3533 = vmatprep.subr.mxu0 0.0
    %3534 = vmatpush1.msra.mxu0 %v3414
    %3535 = vmatprep.subr.mxu0 0.0
    %3536 = vmatpush1.msra.mxu0 0.0
    %3537 = vmatprep.subr.mxu0 0.0
    %3538 = vmatpush1.msra.mxu0 0.0
    %3539 = vmatprep.subr.mxu0 0.0
    %3540 = vmatpush1.msra.mxu0 0.0
    %3541 = vmatprep.subr.mxu0 0.0
    %3542 = vmatpush1.msra.mxu0 0.0
    %3543 = vmatprep.subr.mxu0 0.0
    %3544 = vmatpush1.msra.mxu0 0.0
    %3545 = vmatprep.subr.mxu0 0.0
    %3546 = vmatpush1.msra.mxu0 0.0
    %3547 = vmatprep.subr.mxu0 0.0
    %3548 = vmatpush1.msra.mxu0 0.0
    %3549 = vmatprep.subr.mxu0 0.0
    %3550 = vmatpush1.msra.mxu0 0.0
    %3551 = vmatprep.subr.mxu0 0.0
    %3552 = vmatpush1.msra.mxu0 0.0
    %3553 = vmatprep.subr.mxu0 0.0
    %3554 = vmatpush1.msra.mxu0 0.0
    %3555 = vmatprep.subr.mxu0 0.0
    %3556 = vmatpush1.msra.mxu0 0.0
    %3557 = vmatprep.subr.mxu0 0.0
    %3558 = vmatpush1.msra.mxu0 0.0
    %3559 = vmatprep.subr.mxu0 0.0
    %3560 = vmatpush1.msra.mxu0 0.0
    %3561 = vmatprep.subr.mxu0 0.0
    %3562 = vmatpush1.msra.mxu0 0.0
    %3563 = vmatprep.subr.mxu0 0.0
    %3564 = vmatpush1.msra.mxu0 0.0
    %3565 = vmatprep.subr.mxu0 0.0
    %3566 = vmatpush1.msra.mxu0 0.0
    %3567 = vmatprep.mubr.f32.mxu0 0.0
    %3568 = vmatmul.mubr.f32.gmra.mrb[0].mxu0 %v3359
    %v3569 = vpop.f32.mrb[0].mxu0
    %v3570 = vadd.f32 %v3428, %v3569
    %v3571 = vpop.f32.mrb[0].mxu0
    %3572 = vdwg.mxu0
    %v3573 = vadd.f32 %v3364, %v3499
    %v3574 = vxor.u32 %v3573, 2147483648
    %v3575 = vmul.f32 %v3574, 1.442695
    %v3576 = vpow.pop %v3575
    %v3577 = vadd.f32 %v3576, 1.0
    %v3578 = vrcp.pop %v3577
    %v3579 = vmul.f32 1.0, %v3578
    %v3580 = vadd.f32 %v3365, %v3501
    %v3581 = vxor.u32 %v3580, 2147483648
    %v3582 = vmul.f32 %v3581, 1.442695
    %v3583 = vpow.pop %v3582
    %v3584 = vadd.f32 %v3583, 1.0
    %v3585 = vrcp.pop %v3584
    %v3586 = vmul.f32 1.0, %v3585
    %v3587 = vmul.f32 %v3579, %v3570
    %v3588 = vadd.f32 %v3366, %v3587
    %v3589 = vtanh.pop %v3588
    %v3590 = vsub.f32 1.0, %v3586
    %v3591 = vmul.f32 %v3590, %v3589
    %v3592 = vmul.f32 %v3586, %v3359
    %v3593 = vadd.f32 %v3591, %v3592
    %s3594 = scalar_lea.vmem [#allocation4], 32
    %3595 = vst [vmem:[%s3594] sm:$0xff] %v3593
    %s3596 = smul.addr %s1734, 8
    %s3597 = scalar_lea.vmem [#allocation3], %s3596
    %v3598 = vld [vmem:[%s3597] sm:$0xff]
    %v3599 = vld [vmem:[%s3597 + $0x8] sm:$0xff]
    %v3600 = vld [vmem:[%s3597 + $0x10] sm:$0xff]
    %v3601 = vld [vmem:[#allocation16] sm:$0xff]
    %v3602 = vld [vmem:[#allocation16 + $0x8] sm:$0xff]
    %v3603 = vld [vmem:[#allocation16 + $0x10] sm:$0xff]
    %v3604 = vld [vmem:[#allocation16 + $0x18] sm:$0xff]
    %v3605 = vld [vmem:[#allocation16 + $0x20] sm:$0xff]
    %v3606 = vld [vmem:[#allocation16 + $0x28] sm:$0xff]
    %v3607 = vld [vmem:[#allocation16 + $0x30] sm:$0xff]
    %v3608 = vld [vmem:[#allocation16 + $0x38] sm:$0xff]
    %v3609 = vld [vmem:[#allocation16 + $0x40] sm:$0xff]
    %v3610 = vld [vmem:[#allocation16 + $0x48] sm:$0xff]
    %v3611 = vld [vmem:[#allocation16 + $0x50] sm:$0xff]
    %v3612 = vld [vmem:[#allocation16 + $0x58] sm:$0xff]
    %v3613 = vld [vmem:[#allocation16 + $0x60] sm:$0xff]
    %v3614 = vld [vmem:[#allocation16 + $0x68] sm:$0xff]
    %v3615 = vld [vmem:[#allocation16 + $0x70] sm:$0xff]
    %v3616 = vld [vmem:[#allocation16 + $0x78] sm:$0xff]
    %v3617 = vld [vmem:[#allocation16 + $0x80] sm:$0xff]
    %v3618 = vld [vmem:[#allocation16 + $0x88] sm:$0xff]
    %v3619 = vld [vmem:[#allocation16 + $0x90] sm:$0xff]
    %v3620 = vld [vmem:[#allocation16 + $0x98] sm:$0xff]
    %v3621 = vld [vmem:[#allocation16 + $0xa0] sm:$0xff]
    %v3622 = vld [vmem:[#allocation16 + $0xa8] sm:$0xff]
    %v3623 = vld [vmem:[#allocation16 + $0xb0] sm:$0xff]
    %v3624 = vld [vmem:[#allocation16 + $0xb8] sm:$0xff]
    %v3625 = vld [vmem:[#allocation16 + $0xc0] sm:$0xff]
    %v3626 = vld [vmem:[#allocation16 + $0xc8] sm:$0xff]
    %v3627 = vld [vmem:[#allocation16 + $0xd0] sm:$0xff]
    %v3628 = vld [vmem:[#allocation16 + $0xd8] sm:$0xff]
    %v3629 = vld [vmem:[#allocation16 + $0xe0] sm:$0xff]
    %v3630 = vld [vmem:[#allocation16 + $0xe8] sm:$0xff]
    %v3631 = vld [vmem:[#allocation16 + $0xf0] sm:$0xff]
    %v3632 = vld [vmem:[#allocation16 + $0xf8] sm:$0xff]
    %v3633 = vld [vmem:[#allocation16 + $0x100] sm:$0xff]
    %v3634 = vld [vmem:[#allocation16 + $0x108] sm:$0xff]
    %v3635 = vld [vmem:[#allocation16 + $0x110] sm:$0xff]
    %v3636 = vld [vmem:[#allocation16 + $0x118] sm:$0xff]
    %v3637 = vld [vmem:[#allocation16 + $0x120] sm:$0xff]
    %v3638 = vld [vmem:[#allocation16 + $0x128] sm:$0xff]
    %v3639 = vld [vmem:[#allocation16 + $0x130] sm:$0xff]
    %v3640 = vld [vmem:[#allocation16 + $0x138] sm:$0xff]
    %v3641 = vld [vmem:[#allocation16 + $0x140] sm:$0xff]
    %v3642 = vld [vmem:[#allocation16 + $0x148] sm:$0xff]
    %v3643 = vld [vmem:[#allocation16 + $0x150] sm:$0xff]
    %v3644 = vld [vmem:[#allocation16 + $0x158] sm:$0xff]
    %v3645 = vld [vmem:[#allocation16 + $0x160] sm:$0xff]
    %v3646 = vld [vmem:[#allocation16 + $0x168] sm:$0xff]
    %v3647 = vld [vmem:[#allocation16 + $0x170] sm:$0xff]
    %v3648 = vld [vmem:[#allocation16 + $0x178] sm:$0xff]
    %v3649 = vld [vmem:[%s13] sm:$0x7]
    %v3651 = vlaneseq
    %v3652 = vshrl.u32 %v3651, 7
    %v3653 = vsub.s32 0, %v3652
    %v3654 = vrot.slane %v3649, %v3653
    %v3655 = vlaneseq
    %v3656 = vshrl.u32 %v3655, 7
    %v3657 = vsub.s32 1, %v3656
    %v3658 = vrot.slane %v3649, %v3657
    %v3659 = vlaneseq
    %v3660 = vshrl.u32 %v3659, 7
    %v3661 = vsub.s32 2, %v3660
    %v3662 = vrot.slane %v3649, %v3661
    %3666 = vmatprep.subr.mxu0 %v3602
    %3667 = vmatpush1.msra.mxu0 %v3601
    %3668 = vmatprep.subr.mxu0 %v3605
    %3669 = vmatpush1.msra.mxu0 %v3604
    %3670 = vmatprep.subr.mxu0 %v3608
    %3671 = vmatpush1.msra.mxu0 %v3607
    %3672 = vmatprep.subr.mxu0 %v3611
    %3673 = vmatpush1.msra.mxu0 %v3610
    %3674 = vmatprep.subr.mxu0 %v3614
    %3675 = vmatpush1.msra.mxu0 %v3613
    %3676 = vmatprep.subr.mxu0 %v3617
    %3677 = vmatpush1.msra.mxu0 %v3616
    %3678 = vmatprep.subr.mxu0 %v3620
    %3679 = vmatpush1.msra.mxu0 %v3619
    %3680 = vmatprep.subr.mxu0 %v3623
    %3681 = vmatpush1.msra.mxu0 %v3622
    %3682 = vmatprep.subr.mxu0 %v3626
    %3683 = vmatpush1.msra.mxu0 %v3625
    %3684 = vmatprep.subr.mxu0 %v3629
    %3685 = vmatpush1.msra.mxu0 %v3628
    %3686 = vmatprep.subr.mxu0 %v3632
    %3687 = vmatpush1.msra.mxu0 %v3631
    %3688 = vmatprep.subr.mxu0 %v3635
    %3689 = vmatpush1.msra.mxu0 %v3634
    %3690 = vmatprep.subr.mxu0 %v3638
    %3691 = vmatpush1.msra.mxu0 %v3637
    %3692 = vmatprep.subr.mxu0 %v3641
    %3693 = vmatpush1.msra.mxu0 %v3640
    %3694 = vmatprep.subr.mxu0 %v3644
    %3695 = vmatpush1.msra.mxu0 %v3643
    %3696 = vmatprep.subr.mxu0 %v3647
    %3697 = vmatpush1.msra.mxu0 %v3646
    %3698 = vmatprep.subr.mxu0 0.0
    %3699 = vmatpush1.msra.mxu0 0.0
    %3700 = vmatprep.subr.mxu0 0.0
    %3701 = vmatpush1.msra.mxu0 0.0
    %3702 = vmatprep.subr.mxu0 0.0
    %3703 = vmatpush1.msra.mxu0 0.0
    %3704 = vmatprep.subr.mxu0 0.0
    %3705 = vmatpush1.msra.mxu0 0.0
    %3706 = vmatprep.subr.mxu0 0.0
    %3707 = vmatpush1.msra.mxu0 0.0
    %3708 = vmatprep.subr.mxu0 0.0
    %3709 = vmatpush1.msra.mxu0 0.0
    %3710 = vmatprep.subr.mxu0 0.0
    %3711 = vmatpush1.msra.mxu0 0.0
    %3712 = vmatprep.subr.mxu0 0.0
    %3713 = vmatpush1.msra.mxu0 0.0
    %3714 = vmatprep.subr.mxu0 0.0
    %3715 = vmatpush1.msra.mxu0 0.0
    %3716 = vmatprep.subr.mxu0 0.0
    %3717 = vmatpush1.msra.mxu0 0.0
    %3718 = vmatprep.subr.mxu0 0.0
    %3719 = vmatpush1.msra.mxu0 0.0
    %3720 = vmatprep.subr.mxu0 0.0
    %3721 = vmatpush1.msra.mxu0 0.0
    %3722 = vmatprep.subr.mxu0 0.0
    %3723 = vmatpush1.msra.mxu0 0.0
    %3724 = vmatprep.subr.mxu0 0.0
    %3725 = vmatpush1.msra.mxu0 0.0
    %3726 = vmatprep.subr.mxu0 0.0
    %3727 = vmatpush1.msra.mxu0 0.0
    %3728 = vmatprep.subr.mxu0 0.0
    %3729 = vmatpush1.msra.mxu0 0.0
    %3730 = vmatprep.mubr.f32.mxu0 0.0
    %3731 = vmatmul.mubr.f32.gmra.mrb[0].mxu0 %v3593
    %v3732 = vpop.f32.mrb[0].mxu0
    %v3733 = vadd.f32 %v3654, %v3732
    %v3734 = vpop.f32.mrb[0].mxu0
    %v3735 = vadd.f32 %v3658, %v3734
    %3736 = vdwg.mxu0
    %3737 = vmatprep.subr.mxu0 0.0
    %3738 = vmatpush1.msra.mxu0 %v3603
    %3739 = vmatprep.subr.mxu0 0.0
    %3740 = vmatpush1.msra.mxu0 %v3606
    %3741 = vmatprep.subr.mxu0 0.0
    %3742 = vmatpush1.msra.mxu0 %v3609
    %3743 = vmatprep.subr.mxu0 0.0
    %3744 = vmatpush1.msra.mxu0 %v3612
    %3745 = vmatprep.subr.mxu0 0.0
    %3746 = vmatpush1.msra.mxu0 %v3615
    %3747 = vmatprep.subr.mxu0 0.0
    %3748 = vmatpush1.msra.mxu0 %v3618
    %3749 = vmatprep.subr.mxu0 0.0
    %3750 = vmatpush1.msra.mxu0 %v3621
    %3751 = vmatprep.subr.mxu0 0.0
    %3752 = vmatpush1.msra.mxu0 %v3624
    %3753 = vmatprep.subr.mxu0 0.0
    %3754 = vmatpush1.msra.mxu0 %v3627
    %3755 = vmatprep.subr.mxu0 0.0
    %3756 = vmatpush1.msra.mxu0 %v3630
    %3757 = vmatprep.subr.mxu0 0.0
    %3758 = vmatpush1.msra.mxu0 %v3633
    %3759 = vmatprep.subr.mxu0 0.0
    %3760 = vmatpush1.msra.mxu0 %v3636
    %3761 = vmatprep.subr.mxu0 0.0
    %3762 = vmatpush1.msra.mxu0 %v3639
    %3763 = vmatprep.subr.mxu0 0.0
    %3764 = vmatpush1.msra.mxu0 %v3642
    %3765 = vmatprep.subr.mxu0 0.0
    %3766 = vmatpush1.msra.mxu0 %v3645
    %3767 = vmatprep.subr.mxu0 0.0
    %3768 = vmatpush1.msra.mxu0 %v3648
    %3769 = vmatprep.subr.mxu0 0.0
    %3770 = vmatpush1.msra.mxu0 0.0
    %3771 = vmatprep.subr.mxu0 0.0
    %3772 = vmatpush1.msra.mxu0 0.0
    %3773 = vmatprep.subr.mxu0 0.0
    %3774 = vmatpush1.msra.mxu0 0.0
    %3775 = vmatprep.subr.mxu0 0.0
    %3776 = vmatpush1.msra.mxu0 0.0
    %3777 = vmatprep.subr.mxu0 0.0
    %3778 = vmatpush1.msra.mxu0 0.0
    %3779 = vmatprep.subr.mxu0 0.0
    %3780 = vmatpush1.msra.mxu0 0.0
    %3781 = vmatprep.subr.mxu0 0.0
    %3782 = vmatpush1.msra.mxu0 0.0
    %3783 = vmatprep.subr.mxu0 0.0
    %3784 = vmatpush1.msra.mxu0 0.0
    %3785 = vmatprep.subr.mxu0 0.0
    %3786 = vmatpush1.msra.mxu0 0.0
    %3787 = vmatprep.subr.mxu0 0.0
    %3788 = vmatpush1.msra.mxu0 0.0
    %3789 = vmatprep.subr.mxu0 0.0
    %3790 = vmatpush1.msra.mxu0 0.0
    %3791 = vmatprep.subr.mxu0 0.0
    %3792 = vmatpush1.msra.mxu0 0.0
    %3793 = vmatprep.subr.mxu0 0.0
    %3794 = vmatpush1.msra.mxu0 0.0
    %3795 = vmatprep.subr.mxu0 0.0
    %3796 = vmatpush1.msra.mxu0 0.0
    %3797 = vmatprep.subr.mxu0 0.0
    %3798 = vmatpush1.msra.mxu0 0.0
    %3799 = vmatprep.subr.mxu0 0.0
    %3800 = vmatpush1.msra.mxu0 0.0
    %3801 = vmatprep.mubr.f32.mxu0 0.0
    %3802 = vmatmul.mubr.f32.gmra.mrb[0].mxu0 %v3593
    %v3803 = vpop.f32.mrb[0].mxu0
    %v3804 = vadd.f32 %v3662, %v3803
    %v3805 = vpop.f32.mrb[0].mxu0
    %3806 = vdwg.mxu0
    %v3807 = vadd.f32 %v3598, %v3733
    %v3808 = vxor.u32 %v3807, 2147483648
    %v3809 = vmul.f32 %v3808, 1.442695
    %v3810 = vpow.pop %v3809
    %v3811 = vadd.f32 %v3810, 1.0
    %v3812 = vrcp.pop %v3811
    %v3813 = vmul.f32 1.0, %v3812
    %v3814 = vadd.f32 %v3599, %v3735
    %v3815 = vxor.u32 %v3814, 2147483648
    %v3816 = vmul.f32 %v3815, 1.442695
    %v3817 = vpow.pop %v3816
    %v3818 = vadd.f32 %v3817, 1.0
    %v3819 = vrcp.pop %v3818
    %v3820 = vmul.f32 1.0, %v3819
    %v3821 = vmul.f32 %v3813, %v3804
    %v3822 = vadd.f32 %v3600, %v3821
    %v3823 = vtanh.pop %v3822
    %v3824 = vsub.f32 1.0, %v3820
    %v3825 = vmul.f32 %v3824, %v3823
    %v3826 = vmul.f32 %v3820, %v3593
    %v3827 = vadd.f32 %v3825, %v3826
    %s3828 = scalar_lea.vmem [#allocation4], 40
    %3829 = vst [vmem:[%s3828] sm:$0xff] %v3827
    %s3830 = smul.addr %s1909, 8
    %s3831 = scalar_lea.vmem [#allocation3], %s3830
    %v3832 = vld [vmem:[%s3831] sm:$0xff]
    %v3833 = vld [vmem:[%s3831 + $0x8] sm:$0xff]
    %v3834 = vld [vmem:[%s3831 + $0x10] sm:$0xff]
    %v3835 = vld [vmem:[#allocation16] sm:$0xff]
    %v3836 = vld [vmem:[#allocation16 + $0x8] sm:$0xff]
    %v3837 = vld [vmem:[#allocation16 + $0x10] sm:$0xff]
    %v3838 = vld [vmem:[#allocation16 + $0x18] sm:$0xff]
    %v3839 = vld [vmem:[#allocation16 + $0x20] sm:$0xff]
    %v3840 = vld [vmem:[#allocation16 + $0x28] sm:$0xff]
    %v3841 = vld [vmem:[#allocation16 + $0x30] sm:$0xff]
    %v3842 = vld [vmem:[#allocation16 + $0x38] sm:$0xff]
    %v3843 = vld [vmem:[#allocation16 + $0x40] sm:$0xff]
    %v3844 = vld [vmem:[#allocation16 + $0x48] sm:$0xff]
    %v3845 = vld [vmem:[#allocation16 + $0x50] sm:$0xff]
    %v3846 = vld [vmem:[#allocation16 + $0x58] sm:$0xff]
    %v3847 = vld [vmem:[#allocation16 + $0x60] sm:$0xff]
    %v3848 = vld [vmem:[#allocation16 + $0x68] sm:$0xff]
    %v3849 = vld [vmem:[#allocation16 + $0x70] sm:$0xff]
    %v3850 = vld [vmem:[#allocation16 + $0x78] sm:$0xff]
    %v3851 = vld [vmem:[#allocation16 + $0x80] sm:$0xff]
    %v3852 = vld [vmem:[#allocation16 + $0x88] sm:$0xff]
    %v3853 = vld [vmem:[#allocation16 + $0x90] sm:$0xff]
    %v3854 = vld [vmem:[#allocation16 + $0x98] sm:$0xff]
    %v3855 = vld [vmem:[#allocation16 + $0xa0] sm:$0xff]
    %v3856 = vld [vmem:[#allocation16 + $0xa8] sm:$0xff]
    %v3857 = vld [vmem:[#allocation16 + $0xb0] sm:$0xff]
    %v3858 = vld [vmem:[#allocation16 + $0xb8] sm:$0xff]
    %v3859 = vld [vmem:[#allocation16 + $0xc0] sm:$0xff]
    %v3860 = vld [vmem:[#allocation16 + $0xc8] sm:$0xff]
    %v3861 = vld [vmem:[#allocation16 + $0xd0] sm:$0xff]
    %v3862 = vld [vmem:[#allocation16 + $0xd8] sm:$0xff]
    %v3863 = vld [vmem:[#allocation16 + $0xe0] sm:$0xff]
    %v3864 = vld [vmem:[#allocation16 + $0xe8] sm:$0xff]
    %v3865 = vld [vmem:[#allocation16 + $0xf0] sm:$0xff]
    %v3866 = vld [vmem:[#allocation16 + $0xf8] sm:$0xff]
    %v3867 = vld [vmem:[#allocation16 + $0x100] sm:$0xff]
    %v3868 = vld [vmem:[#allocation16 + $0x108] sm:$0xff]
    %v3869 = vld [vmem:[#allocation16 + $0x110] sm:$0xff]
    %v3870 = vld [vmem:[#allocation16 + $0x118] sm:$0xff]
    %v3871 = vld [vmem:[#allocation16 + $0x120] sm:$0xff]
    %v3872 = vld [vmem:[#allocation16 + $0x128] sm:$0xff]
    %v3873 = vld [vmem:[#allocation16 + $0x130] sm:$0xff]
    %v3874 = vld [vmem:[#allocation16 + $0x138] sm:$0xff]
    %v3875 = vld [vmem:[#allocation16 + $0x140] sm:$0xff]
    %v3876 = vld [vmem:[#allocation16 + $0x148] sm:$0xff]
    %v3877 = vld [vmem:[#allocation16 + $0x150] sm:$0xff]
    %v3878 = vld [vmem:[#allocation16 + $0x158] sm:$0xff]
    %v3879 = vld [vmem:[#allocation16 + $0x160] sm:$0xff]
    %v3880 = vld [vmem:[#allocation16 + $0x168] sm:$0xff]
    %v3881 = vld [vmem:[#allocation16 + $0x170] sm:$0xff]
    %v3882 = vld [vmem:[#allocation16 + $0x178] sm:$0xff]
    %v3883 = vld [vmem:[%s13] sm:$0x7]
    %v3885 = vlaneseq
    %v3886 = vshrl.u32 %v3885, 7
    %v3887 = vsub.s32 0, %v3886
    %v3888 = vrot.slane %v3883, %v3887
    %v3889 = vlaneseq
    %v3890 = vshrl.u32 %v3889, 7
    %v3891 = vsub.s32 1, %v3890
    %v3892 = vrot.slane %v3883, %v3891
    %v3893 = vlaneseq
    %v3894 = vshrl.u32 %v3893, 7
    %v3895 = vsub.s32 2, %v3894
    %v3896 = vrot.slane %v3883, %v3895
    %3900 = vmatprep.subr.mxu0 %v3836
    %3901 = vmatpush1.msra.mxu0 %v3835
    %3902 = vmatprep.subr.mxu0 %v3839
    %3903 = vmatpush1.msra.mxu0 %v3838
    %3904 = vmatprep.subr.mxu0 %v3842
    %3905 = vmatpush1.msra.mxu0 %v3841
    %3906 = vmatprep.subr.mxu0 %v3845
    %3907 = vmatpush1.msra.mxu0 %v3844
    %3908 = vmatprep.subr.mxu0 %v3848
    %3909 = vmatpush1.msra.mxu0 %v3847
    %3910 = vmatprep.subr.mxu0 %v3851
    %3911 = vmatpush1.msra.mxu0 %v3850
    %3912 = vmatprep.subr.mxu0 %v3854
    %3913 = vmatpush1.msra.mxu0 %v3853
    %3914 = vmatprep.subr.mxu0 %v3857
    %3915 = vmatpush1.msra.mxu0 %v3856
    %3916 = vmatprep.subr.mxu0 %v3860
    %3917 = vmatpush1.msra.mxu0 %v3859
    %3918 = vmatprep.subr.mxu0 %v3863
    %3919 = vmatpush1.msra.mxu0 %v3862
    %3920 = vmatprep.subr.mxu0 %v3866
    %3921 = vmatpush1.msra.mxu0 %v3865
    %3922 = vmatprep.subr.mxu0 %v3869
    %3923 = vmatpush1.msra.mxu0 %v3868
    %3924 = vmatprep.subr.mxu0 %v3872
    %3925 = vmatpush1.msra.mxu0 %v3871
    %3926 = vmatprep.subr.mxu0 %v3875
    %3927 = vmatpush1.msra.mxu0 %v3874
    %3928 = vmatprep.subr.mxu0 %v3878
    %3929 = vmatpush1.msra.mxu0 %v3877
    %3930 = vmatprep.subr.mxu0 %v3881
    %3931 = vmatpush1.msra.mxu0 %v3880
    %3932 = vmatprep.subr.mxu0 0.0
    %3933 = vmatpush1.msra.mxu0 0.0
    %3934 = vmatprep.subr.mxu0 0.0
    %3935 = vmatpush1.msra.mxu0 0.0
    %3936 = vmatprep.subr.mxu0 0.0
    %3937 = vmatpush1.msra.mxu0 0.0
    %3938 = vmatprep.subr.mxu0 0.0
    %3939 = vmatpush1.msra.mxu0 0.0
    %3940 = vmatprep.subr.mxu0 0.0
    %3941 = vmatpush1.msra.mxu0 0.0
    %3942 = vmatprep.subr.mxu0 0.0
    %3943 = vmatpush1.msra.mxu0 0.0
    %3944 = vmatprep.subr.mxu0 0.0
    %3945 = vmatpush1.msra.mxu0 0.0
    %3946 = vmatprep.subr.mxu0 0.0
    %3947 = vmatpush1.msra.mxu0 0.0
    %3948 = vmatprep.subr.mxu0 0.0
    %3949 = vmatpush1.msra.mxu0 0.0
    %3950 = vmatprep.subr.mxu0 0.0
    %3951 = vmatpush1.msra.mxu0 0.0
    %3952 = vmatprep.subr.mxu0 0.0
    %3953 = vmatpush1.msra.mxu0 0.0
    %3954 = vmatprep.subr.mxu0 0.0
    %3955 = vmatpush1.msra.mxu0 0.0
    %3956 = vmatprep.subr.mxu0 0.0
    %3957 = vmatpush1.msra.mxu0 0.0
    %3958 = vmatprep.subr.mxu0 0.0
    %3959 = vmatpush1.msra.mxu0 0.0
    %3960 = vmatprep.subr.mxu0 0.0
    %3961 = vmatpush1.msra.mxu0 0.0
    %3962 = vmatprep.subr.mxu0 0.0
    %3963 = vmatpush1.msra.mxu0 0.0
    %3964 = vmatprep.mubr.f32.mxu0 0.0
    %3965 = vmatmul.mubr.f32.gmra.mrb[0].mxu0 %v3827
    %v3966 = vpop.f32.mrb[0].mxu0
    %v3967 = vadd.f32 %v3888, %v3966
    %v3968 = vpop.f32.mrb[0].mxu0
    %v3969 = vadd.f32 %v3892, %v3968
    %3970 = vdwg.mxu0
    %3971 = vmatprep.subr.mxu0 0.0
    %3972 = vmatpush1.msra.mxu0 %v3837
    %3973 = vmatprep.subr.mxu0 0.0
    %3974 = vmatpush1.msra.mxu0 %v3840
    %3975 = vmatprep.subr.mxu0 0.0
    %3976 = vmatpush1.msra.mxu0 %v3843
    %3977 = vmatprep.subr.mxu0 0.0
    %3978 = vmatpush1.msra.mxu0 %v3846
    %3979 = vmatprep.subr.mxu0 0.0
    %3980 = vmatpush1.msra.mxu0 %v3849
    %3981 = vmatprep.subr.mxu0 0.0
    %3982 = vmatpush1.msra.mxu0 %v3852
    %3983 = vmatprep.subr.mxu0 0.0
    %3984 = vmatpush1.msra.mxu0 %v3855
    %3985 = vmatprep.subr.mxu0 0.0
    %3986 = vmatpush1.msra.mxu0 %v3858
    %3987 = vmatprep.subr.mxu0 0.0
    %3988 = vmatpush1.msra.mxu0 %v3861
    %3989 = vmatprep.subr.mxu0 0.0
    %3990 = vmatpush1.msra.mxu0 %v3864
    %3991 = vmatprep.subr.mxu0 0.0
    %3992 = vmatpush1.msra.mxu0 %v3867
    %3993 = vmatprep.subr.mxu0 0.0
    %3994 = vmatpush1.msra.mxu0 %v3870
    %3995 = vmatprep.subr.mxu0 0.0
    %3996 = vmatpush1.msra.mxu0 %v3873
    %3997 = vmatprep.subr.mxu0 0.0
    %3998 = vmatpush1.msra.mxu0 %v3876
    %3999 = vmatprep.subr.mxu0 0.0
    %4000 = vmatpush1.msra.mxu0 %v3879
    %4001 = vmatprep.subr.mxu0 0.0
    %4002 = vmatpush1.msra.mxu0 %v3882
    %4003 = vmatprep.subr.mxu0 0.0
    %4004 = vmatpush1.msra.mxu0 0.0
    %4005 = vmatprep.subr.mxu0 0.0
    %4006 = vmatpush1.msra.mxu0 0.0
    %4007 = vmatprep.subr.mxu0 0.0
    %4008 = vmatpush1.msra.mxu0 0.0
    %4009 = vmatprep.subr.mxu0 0.0
    %4010 = vmatpush1.msra.mxu0 0.0
    %4011 = vmatprep.subr.mxu0 0.0
    %4012 = vmatpush1.msra.mxu0 0.0
    %4013 = vmatprep.subr.mxu0 0.0
    %4014 = vmatpush1.msra.mxu0 0.0
    %4015 = vmatprep.subr.mxu0 0.0
    %4016 = vmatpush1.msra.mxu0 0.0
    %4017 = vmatprep.subr.mxu0 0.0
    %4018 = vmatpush1.msra.mxu0 0.0
    %4019 = vmatprep.subr.mxu0 0.0
    %4020 = vmatpush1.msra.mxu0 0.0
    %4021 = vmatprep.subr.mxu0 0.0
    %4022 = vmatpush1.msra.mxu0 0.0
    %4023 = vmatprep.subr.mxu0 0.0
    %4024 = vmatpush1.msra.mxu0 0.0
    %4025 = vmatprep.subr.mxu0 0.0
    %4026 = vmatpush1.msra.mxu0 0.0
    %4027 = vmatprep.subr.mxu0 0.0
    %4028 = vmatpush1.msra.mxu0 0.0
    %4029 = vmatprep.subr.mxu0 0.0
    %4030 = vmatpush1.msra.mxu0 0.0
    %4031 = vmatprep.subr.mxu0 0.0
    %4032 = vmatpush1.msra.mxu0 0.0
    %4033 = vmatprep.subr.mxu0 0.0
    %4034 = vmatpush1.msra.mxu0 0.0
    %4035 = vmatprep.mubr.f32.mxu0 0.0
    %4036 = vmatmul.mubr.f32.gmra.mrb[0].mxu0 %v3827
    %v4037 = vpop.f32.mrb[0].mxu0
    %v4038 = vadd.f32 %v3896, %v4037
    %v4039 = vpop.f32.mrb[0].mxu0
    %4040 = vdwg.mxu0
    %v4041 = vadd.f32 %v3832, %v3967
    %v4042 = vxor.u32 %v4041, 2147483648
    %v4043 = vmul.f32 %v4042, 1.442695
    %v4044 = vpow.pop %v4043
    %v4045 = vadd.f32 %v4044, 1.0
    %v4046 = vrcp.pop %v4045
    %v4047 = vmul.f32 1.0, %v4046
    %v4048 = vadd.f32 %v3833, %v3969
    %v4049 = vxor.u32 %v4048, 2147483648
    %v4050 = vmul.f32 %v4049, 1.442695
    %v4051 = vpow.pop %v4050
    %v4052 = vadd.f32 %v4051, 1.0
    %v4053 = vrcp.pop %v4052
    %v4054 = vmul.f32 1.0, %v4053
    %v4055 = vmul.f32 %v4047, %v4038
    %v4056 = vadd.f32 %v3834, %v4055
    %v4057 = vtanh.pop %v4056
    %v4058 = vsub.f32 1.0, %v4054
    %v4059 = vmul.f32 %v4058, %v4057
    %v4060 = vmul.f32 %v4054, %v3827
    %v4061 = vadd.f32 %v4059, %v4060
    %s4062 = scalar_lea.vmem [#allocation4], 48
    %4063 = vst [vmem:[%s4062] sm:$0xff] %v4061
    %s4064 = smul.addr %s2084, 8
    %s4065 = scalar_lea.vmem [#allocation3], %s4064
    %v4066 = vld [vmem:[%s4065] sm:$0xff]
    %v4067 = vld [vmem:[%s4065 + $0x8] sm:$0xff]
    %v4068 = vld [vmem:[%s4065 + $0x10] sm:$0xff]
    %v4069 = vld [vmem:[#allocation16] sm:$0xff]
    %v4070 = vld [vmem:[#allocation16 + $0x8] sm:$0xff]
    %v4071 = vld [vmem:[#allocation16 + $0x10] sm:$0xff]
    %v4072 = vld [vmem:[#allocation16 + $0x18] sm:$0xff]
    %v4073 = vld [vmem:[#allocation16 + $0x20] sm:$0xff]
    %v4074 = vld [vmem:[#allocation16 + $0x28] sm:$0xff]
    %v4075 = vld [vmem:[#allocation16 + $0x30] sm:$0xff]
    %v4076 = vld [vmem:[#allocation16 + $0x38] sm:$0xff]
    %v4077 = vld [vmem:[#allocation16 + $0x40] sm:$0xff]
    %v4078 = vld [vmem:[#allocation16 + $0x48] sm:$0xff]
    %v4079 = vld [vmem:[#allocation16 + $0x50] sm:$0xff]
    %v4080 = vld [vmem:[#allocation16 + $0x58] sm:$0xff]
    %v4081 = vld [vmem:[#allocation16 + $0x60] sm:$0xff]
    %v4082 = vld [vmem:[#allocation16 + $0x68] sm:$0xff]
    %v4083 = vld [vmem:[#allocation16 + $0x70] sm:$0xff]
    %v4084 = vld [vmem:[#allocation16 + $0x78] sm:$0xff]
    %v4085 = vld [vmem:[#allocation16 + $0x80] sm:$0xff]
    %v4086 = vld [vmem:[#allocation16 + $0x88] sm:$0xff]
    %v4087 = vld [vmem:[#allocation16 + $0x90] sm:$0xff]
    %v4088 = vld [vmem:[#allocation16 + $0x98] sm:$0xff]
    %v4089 = vld [vmem:[#allocation16 + $0xa0] sm:$0xff]
    %v4090 = vld [vmem:[#allocation16 + $0xa8] sm:$0xff]
    %v4091 = vld [vmem:[#allocation16 + $0xb0] sm:$0xff]
    %v4092 = vld [vmem:[#allocation16 + $0xb8] sm:$0xff]
    %v4093 = vld [vmem:[#allocation16 + $0xc0] sm:$0xff]
    %v4094 = vld [vmem:[#allocation16 + $0xc8] sm:$0xff]
    %v4095 = vld [vmem:[#allocation16 + $0xd0] sm:$0xff]
    %v4096 = vld [vmem:[#allocation16 + $0xd8] sm:$0xff]
    %v4097 = vld [vmem:[#allocation16 + $0xe0] sm:$0xff]
    %v4098 = vld [vmem:[#allocation16 + $0xe8] sm:$0xff]
    %v4099 = vld [vmem:[#allocation16 + $0xf0] sm:$0xff]
    %v4100 = vld [vmem:[#allocation16 + $0xf8] sm:$0xff]
    %v4101 = vld [vmem:[#allocation16 + $0x100] sm:$0xff]
    %v4102 = vld [vmem:[#allocation16 + $0x108] sm:$0xff]
    %v4103 = vld [vmem:[#allocation16 + $0x110] sm:$0xff]
    %v4104 = vld [vmem:[#allocation16 + $0x118] sm:$0xff]
    %v4105 = vld [vmem:[#allocation16 + $0x120] sm:$0xff]
    %v4106 = vld [vmem:[#allocation16 + $0x128] sm:$0xff]
    %v4107 = vld [vmem:[#allocation16 + $0x130] sm:$0xff]
    %v4108 = vld [vmem:[#allocation16 + $0x138] sm:$0xff]
    %v4109 = vld [vmem:[#allocation16 + $0x140] sm:$0xff]
    %v4110 = vld [vmem:[#allocation16 + $0x148] sm:$0xff]
    %v4111 = vld [vmem:[#allocation16 + $0x150] sm:$0xff]
    %v4112 = vld [vmem:[#allocation16 + $0x158] sm:$0xff]
    %v4113 = vld [vmem:[#allocation16 + $0x160] sm:$0xff]
    %v4114 = vld [vmem:[#allocation16 + $0x168] sm:$0xff]
    %v4115 = vld [vmem:[#allocation16 + $0x170] sm:$0xff]
    %v4116 = vld [vmem:[#allocation16 + $0x178] sm:$0xff]
    %v4117 = vld [vmem:[%s13] sm:$0x7]
    %v4119 = vlaneseq
    %v4120 = vshrl.u32 %v4119, 7
    %v4121 = vsub.s32 0, %v4120
    %v4122 = vrot.slane %v4117, %v4121
    %v4123 = vlaneseq
    %v4124 = vshrl.u32 %v4123, 7
    %v4125 = vsub.s32 1, %v4124
    %v4126 = vrot.slane %v4117, %v4125
    %v4127 = vlaneseq
    %v4128 = vshrl.u32 %v4127, 7
    %v4129 = vsub.s32 2, %v4128
    %v4130 = vrot.slane %v4117, %v4129
    %4134 = vmatprep.subr.mxu0 %v4070
    %4135 = vmatpush1.msra.mxu0 %v4069
    %4136 = vmatprep.subr.mxu0 %v4073
    %4137 = vmatpush1.msra.mxu0 %v4072
    %4138 = vmatprep.subr.mxu0 %v4076
    %4139 = vmatpush1.msra.mxu0 %v4075
    %4140 = vmatprep.subr.mxu0 %v4079
    %4141 = vmatpush1.msra.mxu0 %v4078
    %4142 = vmatprep.subr.mxu0 %v4082
    %4143 = vmatpush1.msra.mxu0 %v4081
    %4144 = vmatprep.subr.mxu0 %v4085
    %4145 = vmatpush1.msra.mxu0 %v4084
    %4146 = vmatprep.subr.mxu0 %v4088
    %4147 = vmatpush1.msra.mxu0 %v4087
    %4148 = vmatprep.subr.mxu0 %v4091
    %4149 = vmatpush1.msra.mxu0 %v4090
    %4150 = vmatprep.subr.mxu0 %v4094
    %4151 = vmatpush1.msra.mxu0 %v4093
    %4152 = vmatprep.subr.mxu0 %v4097
    %4153 = vmatpush1.msra.mxu0 %v4096
    %4154 = vmatprep.subr.mxu0 %v4100
    %4155 = vmatpush1.msra.mxu0 %v4099
    %4156 = vmatprep.subr.mxu0 %v4103
    %4157 = vmatpush1.msra.mxu0 %v4102
    %4158 = vmatprep.subr.mxu0 %v4106
    %4159 = vmatpush1.msra.mxu0 %v4105
    %4160 = vmatprep.subr.mxu0 %v4109
    %4161 = vmatpush1.msra.mxu0 %v4108
    %4162 = vmatprep.subr.mxu0 %v4112
    %4163 = vmatpush1.msra.mxu0 %v4111
    %4164 = vmatprep.subr.mxu0 %v4115
    %4165 = vmatpush1.msra.mxu0 %v4114
    %4166 = vmatprep.subr.mxu0 0.0
    %4167 = vmatpush1.msra.mxu0 0.0
    %4168 = vmatprep.subr.mxu0 0.0
    %4169 = vmatpush1.msra.mxu0 0.0
    %4170 = vmatprep.subr.mxu0 0.0
    %4171 = vmatpush1.msra.mxu0 0.0
    %4172 = vmatprep.subr.mxu0 0.0
    %4173 = vmatpush1.msra.mxu0 0.0
    %4174 = vmatprep.subr.mxu0 0.0
    %4175 = vmatpush1.msra.mxu0 0.0
    %4176 = vmatprep.subr.mxu0 0.0
    %4177 = vmatpush1.msra.mxu0 0.0
    %4178 = vmatprep.subr.mxu0 0.0
    %4179 = vmatpush1.msra.mxu0 0.0
    %4180 = vmatprep.subr.mxu0 0.0
    %4181 = vmatpush1.msra.mxu0 0.0
    %4182 = vmatprep.subr.mxu0 0.0
    %4183 = vmatpush1.msra.mxu0 0.0
    %4184 = vmatprep.subr.mxu0 0.0
    %4185 = vmatpush1.msra.mxu0 0.0
    %4186 = vmatprep.subr.mxu0 0.0
    %4187 = vmatpush1.msra.mxu0 0.0
    %4188 = vmatprep.subr.mxu0 0.0
    %4189 = vmatpush1.msra.mxu0 0.0
    %4190 = vmatprep.subr.mxu0 0.0
    %4191 = vmatpush1.msra.mxu0 0.0
    %4192 = vmatprep.subr.mxu0 0.0
    %4193 = vmatpush1.msra.mxu0 0.0
    %4194 = vmatprep.subr.mxu0 0.0
    %4195 = vmatpush1.msra.mxu0 0.0
    %4196 = vmatprep.subr.mxu0 0.0
    %4197 = vmatpush1.msra.mxu0 0.0
    %4198 = vmatprep.mubr.f32.mxu0 0.0
    %4199 = vmatmul.mubr.f32.gmra.mrb[0].mxu0 %v4061
    %v4200 = vpop.f32.mrb[0].mxu0
    %v4201 = vadd.f32 %v4122, %v4200
    %v4202 = vpop.f32.mrb[0].mxu0
    %v4203 = vadd.f32 %v4126, %v4202
    %4204 = vdwg.mxu0
    %4205 = vmatprep.subr.mxu0 0.0
    %4206 = vmatpush1.msra.mxu0 %v4071
    %4207 = vmatprep.subr.mxu0 0.0
    %4208 = vmatpush1.msra.mxu0 %v4074
    %4209 = vmatprep.subr.mxu0 0.0
    %4210 = vmatpush1.msra.mxu0 %v4077
    %4211 = vmatprep.subr.mxu0 0.0
    %4212 = vmatpush1.msra.mxu0 %v4080
    %4213 = vmatprep.subr.mxu0 0.0
    %4214 = vmatpush1.msra.mxu0 %v4083
    %4215 = vmatprep.subr.mxu0 0.0
    %4216 = vmatpush1.msra.mxu0 %v4086
    %4217 = vmatprep.subr.mxu0 0.0
    %4218 = vmatpush1.msra.mxu0 %v4089
    %4219 = vmatprep.subr.mxu0 0.0
    %4220 = vmatpush1.msra.mxu0 %v4092
    %4221 = vmatprep.subr.mxu0 0.0
    %4222 = vmatpush1.msra.mxu0 %v4095
    %4223 = vmatprep.subr.mxu0 0.0
    %4224 = vmatpush1.msra.mxu0 %v4098
    %4225 = vmatprep.subr.mxu0 0.0
    %4226 = vmatpush1.msra.mxu0 %v4101
    %4227 = vmatprep.subr.mxu0 0.0
    %4228 = vmatpush1.msra.mxu0 %v4104
    %4229 = vmatprep.subr.mxu0 0.0
    %4230 = vmatpush1.msra.mxu0 %v4107
    %4231 = vmatprep.subr.mxu0 0.0
    %4232 = vmatpush1.msra.mxu0 %v4110
    %4233 = vmatprep.subr.mxu0 0.0
    %4234 = vmatpush1.msra.mxu0 %v4113
    %4235 = vmatprep.subr.mxu0 0.0
    %4236 = vmatpush1.msra.mxu0 %v4116
    %4237 = vmatprep.subr.mxu0 0.0
    %4238 = vmatpush1.msra.mxu0 0.0
    %4239 = vmatprep.subr.mxu0 0.0
    %4240 = vmatpush1.msra.mxu0 0.0
    %4241 = vmatprep.subr.mxu0 0.0
    %4242 = vmatpush1.msra.mxu0 0.0
    %4243 = vmatprep.subr.mxu0 0.0
    %4244 = vmatpush1.msra.mxu0 0.0
    %4245 = vmatprep.subr.mxu0 0.0
    %4246 = vmatpush1.msra.mxu0 0.0
    %4247 = vmatprep.subr.mxu0 0.0
    %4248 = vmatpush1.msra.mxu0 0.0
    %4249 = vmatprep.subr.mxu0 0.0
    %4250 = vmatpush1.msra.mxu0 0.0
    %4251 = vmatprep.subr.mxu0 0.0
    %4252 = vmatpush1.msra.mxu0 0.0
    %4253 = vmatprep.subr.mxu0 0.0
    %4254 = vmatpush1.msra.mxu0 0.0
    %4255 = vmatprep.subr.mxu0 0.0
    %4256 = vmatpush1.msra.mxu0 0.0
    %4257 = vmatprep.subr.mxu0 0.0
    %4258 = vmatpush1.msra.mxu0 0.0
    %4259 = vmatprep.subr.mxu0 0.0
    %4260 = vmatpush1.msra.mxu0 0.0
    %4261 = vmatprep.subr.mxu0 0.0
    %4262 = vmatpush1.msra.mxu0 0.0
    %4263 = vmatprep.subr.mxu0 0.0
    %4264 = vmatpush1.msra.mxu0 0.0
    %4265 = vmatprep.subr.mxu0 0.0
    %4266 = vmatpush1.msra.mxu0 0.0
    %4267 = vmatprep.subr.mxu0 0.0
    %4268 = vmatpush1.msra.mxu0 0.0
    %4269 = vmatprep.mubr.f32.mxu0 0.0
    %4270 = vmatmul.mubr.f32.gmra.mrb[0].mxu0 %v4061
    %v4271 = vpop.f32.mrb[0].mxu0
    %v4272 = vadd.f32 %v4130, %v4271
    %v4273 = vpop.f32.mrb[0].mxu0
    %4274 = vdwg.mxu0
    %v4275 = vadd.f32 %v4066, %v4201
    %v4276 = vxor.u32 %v4275, 2147483648
    %v4277 = vmul.f32 %v4276, 1.442695
    %v4278 = vpow.pop %v4277
    %v4279 = vadd.f32 %v4278, 1.0
    %v4280 = vrcp.pop %v4279
    %v4281 = vmul.f32 1.0, %v4280
    %v4282 = vadd.f32 %v4067, %v4203
    %v4283 = vxor.u32 %v4282, 2147483648
    %v4284 = vmul.f32 %v4283, 1.442695
    %v4285 = vpow.pop %v4284
    %v4286 = vadd.f32 %v4285, 1.0
    %v4287 = vrcp.pop %v4286
    %v4288 = vmul.f32 1.0, %v4287
    %v4289 = vmul.f32 %v4281, %v4272
    %v4290 = vadd.f32 %v4068, %v4289
    %v4291 = vtanh.pop %v4290
    %v4292 = vsub.f32 1.0, %v4288
    %v4293 = vmul.f32 %v4292, %v4291
    %v4294 = vmul.f32 %v4288, %v4061
    %v4295 = vadd.f32 %v4293, %v4294
    %s4296 = scalar_lea.vmem [#allocation4], 56
    %4297 = vst [vmem:[%s4296] sm:$0xff] %v4295
    %v4298 = vld [vmem:[#allocation4] sm:$0xff]
    %v4299 = vld [vmem:[#allocation4 + $0x8] sm:$0xff]
    %v4300 = vld [vmem:[#allocation4 + $0x10] sm:$0xff]
    %v4301 = vld [vmem:[#allocation4 + $0x18] sm:$0xff]
    %v4302 = vld [vmem:[#allocation4 + $0x20] sm:$0xff]
    %v4303 = vld [vmem:[#allocation4 + $0x28] sm:$0xff]
    %v4304 = vld [vmem:[#allocation4 + $0x30] sm:$0xff]
    %v4305 = vld [vmem:[#allocation4 + $0x38] sm:$0xff]
    %v4306 = vld [vmem:[#allocation17] sm:$0xff]
    %v4307 = vld [vmem:[#allocation17 + $0x8] sm:$0xff]
    %v4308 = vld [vmem:[#allocation17 + $0x10] sm:$0xff]
    %v4309 = vld [vmem:[#allocation17 + $0x18] sm:$0xff]
    %v4310 = vld [vmem:[#allocation17 + $0x20] sm:$0xff]
    %v4311 = vld [vmem:[#allocation17 + $0x28] sm:$0xff]
    %v4312 = vld [vmem:[#allocation17 + $0x30] sm:$0xff]
    %v4313 = vld [vmem:[#allocation17 + $0x38] sm:$0xff]
    %v4314 = vld [vmem:[#allocation17 + $0x40] sm:$0xff]
    %v4315 = vld [vmem:[#allocation17 + $0x48] sm:$0xff]
    %v4316 = vld [vmem:[#allocation17 + $0x50] sm:$0xff]
    %v4317 = vld [vmem:[#allocation17 + $0x58] sm:$0xff]
    %v4318 = vld [vmem:[#allocation17 + $0x60] sm:$0xff]
    %v4319 = vld [vmem:[#allocation17 + $0x68] sm:$0xff]
    %v4320 = vld [vmem:[#allocation17 + $0x70] sm:$0xff]
    %v4321 = vld [vmem:[#allocation17 + $0x78] sm:$0xff]
    %v4322 = vld [vmem:[%s15] sm:$0x1]
    %v4324 = vlaneseq
    %v4325 = vshrl.u32 %v4324, 7
    %v4326 = vsub.s32 0, %v4325
    %v4327 = vrot.slane %v4322, %v4326
    %4329 = vmatprep.subr.mxu0 0.0
    %4330 = vmatpush1.msra.mxu0 %v4306
    %4331 = vmatprep.subr.mxu0 0.0
    %4332 = vmatpush1.msra.mxu0 %v4307
    %4333 = vmatprep.subr.mxu0 0.0
    %4334 = vmatpush1.msra.mxu0 %v4308
    %4335 = vmatprep.subr.mxu0 0.0
    %4336 = vmatpush1.msra.mxu0 %v4309
    %4337 = vmatprep.subr.mxu0 0.0
    %4338 = vmatpush1.msra.mxu0 %v4310
    %4339 = vmatprep.subr.mxu0 0.0
    %4340 = vmatpush1.msra.mxu0 %v4311
    %4341 = vmatprep.subr.mxu0 0.0
    %4342 = vmatpush1.msra.mxu0 %v4312
    %4343 = vmatprep.subr.mxu0 0.0
    %4344 = vmatpush1.msra.mxu0 %v4313
    %4345 = vmatprep.subr.mxu0 0.0
    %4346 = vmatpush1.msra.mxu0 %v4314
    %4347 = vmatprep.subr.mxu0 0.0
    %4348 = vmatpush1.msra.mxu0 %v4315
    %4349 = vmatprep.subr.mxu0 0.0
    %4350 = vmatpush1.msra.mxu0 %v4316
    %4351 = vmatprep.subr.mxu0 0.0
    %4352 = vmatpush1.msra.mxu0 %v4317
    %4353 = vmatprep.subr.mxu0 0.0
    %4354 = vmatpush1.msra.mxu0 %v4318
    %4355 = vmatprep.subr.mxu0 0.0
    %4356 = vmatpush1.msra.mxu0 %v4319
    %4357 = vmatprep.subr.mxu0 0.0
    %4358 = vmatpush1.msra.mxu0 %v4320
    %4359 = vmatprep.subr.mxu0 0.0
    %4360 = vmatpush1.msra.mxu0 %v4321
    %4361 = vmatprep.subr.mxu0 0.0
    %4362 = vmatpush1.msra.mxu0 0.0
    %4363 = vmatprep.subr.mxu0 0.0
    %4364 = vmatpush1.msra.mxu0 0.0
    %4365 = vmatprep.subr.mxu0 0.0
    %4366 = vmatpush1.msra.mxu0 0.0
    %4367 = vmatprep.subr.mxu0 0.0
    %4368 = vmatpush1.msra.mxu0 0.0
    %4369 = vmatprep.subr.mxu0 0.0
    %4370 = vmatpush1.msra.mxu0 0.0
    %4371 = vmatprep.subr.mxu0 0.0
    %4372 = vmatpush1.msra.mxu0 0.0
    %4373 = vmatprep.subr.mxu0 0.0
    %4374 = vmatpush1.msra.mxu0 0.0
    %4375 = vmatprep.subr.mxu0 0.0
    %4376 = vmatpush1.msra.mxu0 0.0
    %4377 = vmatprep.subr.mxu0 0.0
    %4378 = vmatpush1.msra.mxu0 0.0
    %4379 = vmatprep.subr.mxu0 0.0
    %4380 = vmatpush1.msra.mxu0 0.0
    %4381 = vmatprep.subr.mxu0 0.0
    %4382 = vmatpush1.msra.mxu0 0.0
    %4383 = vmatprep.subr.mxu0 0.0
    %4384 = vmatpush1.msra.mxu0 0.0
    %4385 = vmatprep.subr.mxu0 0.0
    %4386 = vmatpush1.msra.mxu0 0.0
    %4387 = vmatprep.subr.mxu0 0.0
    %4388 = vmatpush1.msra.mxu0 0.0
    %4389 = vmatprep.subr.mxu0 0.0
    %4390 = vmatpush1.msra.mxu0 0.0
    %4391 = vmatprep.subr.mxu0 0.0
    %4392 = vmatpush1.msra.mxu0 0.0
    %4393 = vmatprep.mubr.f32.mxu0 0.0
    %4394 = vmatmul.mubr.f32.gmra.mrb[0].mxu0 %v4298
    %v4395 = vpop.f32.mrb[0].mxu0
    %v4396 = vadd.f32 %v4327, %v4395
    %v4397 = vpop.f32.mrb[0].mxu0
    %4398 = vmatprep.mubr.f32.mxu0 0.0
    %4399 = vmatmul.mubr.f32.gmra.mrb[0].mxu0 %v4299
    %v4400 = vpop.f32.mrb[0].mxu0
    %v4401 = vadd.f32 %v4327, %v4400
    %v4402 = vpop.f32.mrb[0].mxu0
    %4403 = vmatprep.mubr.f32.mxu0 0.0
    %4404 = vmatmul.mubr.f32.gmra.mrb[0].mxu0 %v4300
    %v4405 = vpop.f32.mrb[0].mxu0
    %v4406 = vadd.f32 %v4327, %v4405
    %v4407 = vpop.f32.mrb[0].mxu0
    %4408 = vmatprep.mubr.f32.mxu0 0.0
    %4409 = vmatmul.mubr.f32.gmra.mrb[0].mxu0 %v4301
    %v4410 = vpop.f32.mrb[0].mxu0
    %v4411 = vadd.f32 %v4327, %v4410
    %v4412 = vpop.f32.mrb[0].mxu0
    %4413 = vmatprep.mubr.f32.mxu0 0.0
    %4414 = vmatmul.mubr.f32.gmra.mrb[0].mxu0 %v4302
    %v4415 = vpop.f32.mrb[0].mxu0
    %v4416 = vadd.f32 %v4327, %v4415
    %v4417 = vpop.f32.mrb[0].mxu0
    %4418 = vmatprep.mubr.f32.mxu0 0.0
    %4419 = vmatmul.mubr.f32.gmra.mrb[0].mxu0 %v4303
    %v4420 = vpop.f32.mrb[0].mxu0
    %v4421 = vadd.f32 %v4327, %v4420
    %v4422 = vpop.f32.mrb[0].mxu0
    %4423 = vmatprep.mubr.f32.mxu0 0.0
    %4424 = vmatmul.mubr.f32.gmra.mrb[0].mxu0 %v4304
    %v4425 = vpop.f32.mrb[0].mxu0
    %v4426 = vadd.f32 %v4327, %v4425
    %v4427 = vpop.f32.mrb[0].mxu0
    %4428 = vmatprep.mubr.f32.mxu0 0.0
    %4429 = vmatmul.mubr.f32.gmra.mrb[0].mxu0 %v4305
    %v4430 = vpop.f32.mrb[0].mxu0
    %v4431 = vadd.f32 %v4327, %v4430
    %v4432 = vpop.f32.mrb[0].mxu0
    %4433 = vdwg.mxu0
    %4434 = vst [vmem:[#allocation19] sm:$0xff] %v4396
    %4435 = vst [vmem:[#allocation19 + $0x8] sm:$0xff] %v4401
    %4436 = vst [vmem:[#allocation19 + $0x10] sm:$0xff] %v4406
    %4437 = vst [vmem:[#allocation19 + $0x18] sm:$0xff] %v4411
    %4438 = vst [vmem:[#allocation19 + $0x20] sm:$0xff] %v4416
    %4439 = vst [vmem:[#allocation19 + $0x28] sm:$0xff] %v4421
    %4440 = vst [vmem:[#allocation19 + $0x30] sm:$0xff] %v4426
    %4441 = vst [vmem:[#allocation19 + $0x38] sm:$0xff] %v4431
    // Predicated region
    $region98: #{tpu_custom_call.1} parent=1 // pred_check
      _
    $region99: #{tpu_custom_call.1} parent=1 // pred_check_branch
      %4443 = sbr.rel (0) target = $region101
    $region100: #{tpu_custom_call.1} parent=1 // pred_region
      %s4445 = ssub.s32 1024, 1024
      %4446 = vsyncadd [#allocation7], %s4445
      %s4447 = sshll.u32 [#allocation19], 4
      %s4448 = int_to_ptr.vmem [resolvable:$true] %s4447
      %4453 = dma.vmem_to_hbm [thread:$0]  %s4448, 1024, %s16, [#allocation7], 128, 128, 8
    $region101: #{tpu_custom_call.1} parent=1 // pred_fallthru
      _
    // Predicated region
    $region102: #{tpu_custom_call.1} parent=1 // pred_check
      _
    $region103: #{tpu_custom_call.1} parent=1 // pred_check_branch
      %4455 = sbr.rel (0) target = $region105
    $region104: #{tpu_custom_call.1} parent=1 // pred_region
      %4456 = dma.done [#allocation7], 1024
    $region105: #{tpu_custom_call.1} parent=1 // pred_fallthru
      _
    %4457 = vsyncpa [#allocation6], 1
    %4458 = vsyncpa [#allocation9], 1
    %4459 = vsyncpa [#allocation12], 1
    %4460 = vsyncpa [#allocation15], 1
    %4461 = vsyncpa [#allocation18], 1
    %4462 = vsyncpa [#allocation7], 1

</llo_original>
